<compile_context>
chip_gen: v7x
topology: tpu7x:2x2x1
jax: 0.10.0
libtpu: 0.0.40
codegen_flags: <defaults>
</compile_context>

<pallas_src>
import functools

import jax
import jax.numpy as jnp
from jax import lax
from jax.experimental import pallas as pl
from jax.experimental.pallas import tpu as pltpu

_I32_MAX = 0x7FFFFFFF
_I32_MIN = -0x80000000
_UNROLL_N = 4096          # unroll the bisection only for small rows
_MIB = 1024 * 1024


# --------------------------------------------------------------------------
# Order-preserving f32 <-> int32 key (involution on the bit pattern).
# --------------------------------------------------------------------------
def _f32_to_key(x):
    b = pltpu.bitcast(x, jnp.int32)
    return b ^ jnp.where(b < 0, jnp.int32(_I32_MAX), jnp.int32(0))


def _key_to_f32(k):
    b = k ^ jnp.where(k < 0, jnp.int32(_I32_MAX), jnp.int32(0))
    return pltpu.bitcast(b, jnp.float32)


# --------------------------------------------------------------------------
# Shared 31-step exact bisection for the lower median of two (R, N) tensors.
# --------------------------------------------------------------------------
def _two_lower_medians(key_p, key_y, n):
    """key_p, key_y: (R, N) int32 order keys of two f32 tensors.  Returns the
    per-row lower median (== torch.median(d, dim=-1)) of each as (R, 1) f32,
    using one shared 31-step bisection chain (both counts per step)."""
    k = (n - 1) // 2                                    # 0-indexed lower-median rank

    def init(key):
        neg = jnp.sum((key < 0).astype(jnp.int32), axis=-1, keepdims=True)
        in_neg = neg > k                                # rank-k element is negative
        lo = jnp.where(in_neg, jnp.int32(_I32_MIN), jnp.int32(0))
        hi = jnp.where(in_neg, jnp.int32(-1), jnp.int32(_I32_MAX))
        return lo, hi                                   # hi - lo <= 2^31 - 1

    def step(key, lo, hi):
        mid = lo + jnp.right_shift(hi - lo, 1)          # hi - lo >= 0
        cnt = jnp.sum((key <= mid).astype(jnp.int32), axis=-1, keepdims=True)
        take_low = cnt >= (k + 1)
        return jnp.where(take_low, lo, mid + 1), jnp.where(take_low, mid, hi)

    def body(_, carry):
        lp, hp, ly, hy = carry
        lp, hp = step(key_p, lp, hp)                    # independent -> ILP within the
        ly, hy = step(key_y, ly, hy)                    # single 31-step serial chain
        return lp, hp, ly, hy

    carry = init(key_p) + init(key_y)
    if n <= _UNROLL_N:
        for _ in range(31):                             # small rows: full unroll
            carry = body(0, carry)
    else:
        carry = lax.fori_loop(0, 31, body, carry)       # large rows: bounded live ranges
    lp, _, ly, _ = carry
    return _key_to_f32(lp), _key_to_f32(ly)             # exact data values


# --------------------------------------------------------------------------
# Kernel: one (block_b, N) sublane-packed tile of images per grid step.
# --------------------------------------------------------------------------
def _loss_teacher_kernel(pred_ref, y_ref, out_ref, *, eps, disparity):
    n = pred_ref.shape[-1]

    pred = pred_ref[...].astype(jnp.float32)            # (R, N)
    y = y_ref[...].astype(jnp.float32)                  # (R, N)

    if not disparity:                                   # static branch
        y = pl.reciprocal(y + eps, approx=False)

    # ---- Pass 1: per-row scalar statistics --------------------------------
    # The GT min-max normalization is a monotone non-decreasing per-row map,
    # so the lower median of the normalized row is the mapped lower median of
    # the raw row; no normalized full-size tile is needed for the median.
    y_min = jnp.min(y, axis=-1, keepdims=True)
    y_max = jnp.max(y, axis=-1, keepdims=True)
    inv_rng = pl.reciprocal(y_max - y_min + eps, approx=False)

    med_p, med_y = _two_lower_medians(_f32_to_key(pred), _f32_to_key(y), n)
    med_yn = (med_y - y_min) * inv_rng                  # median of normalized GT

    # Mean-absolute-deviation scales (reductions to (R, 1) scalars).
    s_p = jnp.sum(jnp.abs(pred - med_p), axis=-1, keepdims=True) / n + eps
    r_p = pl.reciprocal(s_p, approx=False)
    yn = (y - y_min) * inv_rng                          # normalized GT (single live tile)
    s_y = jnp.sum(jnp.abs(yn - med_yn), axis=-1, keepdims=True) / n + eps
    r_y = pl.reciprocal(s_y, approx=False)

    # TODO(synk): the forward's debug print() of full tensors (y[0], pred[0]
    # and their sums) is a host-side side effect with no Pallas equivalent; it
    # does not affect the returned loss and is omitted.

    # ---- Pass 2: fused |d_hat(pred) - d_hat(y)| accumulation --------------
    # d_hat(pred) and d_hat(y) are never materialized as simultaneous tiles.
    rho_sum = jnp.sum(
        jnp.abs((pred - med_p) * r_p - (yn - med_yn) * r_y),
        axis=-1, keepdims=True)
    out_ref[...] = rho_sum / n                          # (R, 1) per-image loss


# --------------------------------------------------------------------------
# Wrapper: adaptive block size, VMEM budget, grid setup.
# --------------------------------------------------------------------------
def _round_up(x, m):
    return ((x + m - 1) // m) * m


def _device_info():
    try:
        kind = jax.devices()[0].device_kind.lower()
    except Exception:
        kind = ""
    try:
        vmem_cap = int(pltpu.get_tpu_info().vmem_capacity_bytes)
    except Exception:
        vmem_cap = 128 * _MIB                           # v4/v5e/v5p/v6e default
    return kind, vmem_cap


def _choose_block_b(n, itemsize, budget, batch):
    """Rows per grid step: big for small images (amortize ~0.35us/step), capped
    by a conservative per-step VMEM footprint and by the (padded) batch."""
    cap = max(8, _round_up(batch, 8))
    for bb in (64, 32, 16, 8):
        if bb > cap:
            continue
        # single-buffered inputs + f32 casts + two int32 key tiles (upper bound)
        need = 2 * bb * n * itemsize + 4 * bb * n * 4
        if need <= int(0.9 * budget):
            return bb
    return 8


@functools.partial(jax.jit, static_argnames=("disparity", "eps"))
def loss_teacher(pred, y, disparity=True, eps=1e-8):
    """pred, y: (B, H, W) float arrays. Returns scalar f32 == Loss_teacher.forward."""
    B, H, W = pred.shape
    n = H * W
    pred2 = jnp.reshape(pred, (B, n))                   # original dtype; cast in-kernel
    y2 = jnp.reshape(jnp.squeeze(y), (B, n))
    itemsize = max(pred2.dtype.itemsize, y2.dtype.itemsize)

    kind, vmem_cap = _device_info()
    is_v7 = "v7" in kind
    vmem_limit = min(int(0.85 * vmem_cap), 100 * _MIB)  # ~100 MiB v5e/v6e, ~54 MiB v7x

    block_b = _choose_block_b(n, itemsize, vmem_limit, B)
    # v7x has 2 TensorCores: split the batch into >=2 "parallel" grid steps
    # whenever possible (B > 8).  For B <= 8 a single (8, N) block is minimal
    # (8-sublane floor), so padding to 2 steps cannot spread the real work.
    if is_v7 and B > 8 and -(-B // block_b) < 2:
        block_b = max(8, _round_up(-(-B // 2), 8))

    # Pad the batch to a block multiple; padded rows produce loss 0, sliced out.
    bp = _round_up(B, block_b)
    if bp != B:
        pred2 = jnp.pad(pred2, ((0, bp - B), (0, 0)))
        y2 = jnp.pad(y2, ((0, bp - B), (0, 0)))

    # Single-buffer the (large) inputs only if double-buffering would not fit:
    # the kernel is VALU-bound by >10x, so losing DMA/compute overlap is cheap.
    dbl_need = 2 * 2 * block_b * n * itemsize + 4 * block_b * n * 4
    single_buffer = dbl_need > int(0.9 * vmem_limit)

    def make_in_spec():
        if single_buffer:
            return pl.BlockSpec((block_b, n), lambda b: (b, 0),
                                pipeline_mode=pl.Buffered(1))
        return pl.BlockSpec((block_b, n), lambda b: (b, 0))

    kernel = functools.partial(_loss_teacher_kernel,
                               eps=float(eps), disparity=bool(disparity))

    cost = pl.CostEstimate(
        flops=int(bp) * int(n) * 160,                   # shared bisection + elementwise
        transcendentals=0,
        bytes_accessed=int(bp) * int(n)
        * (pred2.dtype.itemsize + y2.dtype.itemsize) + int(bp) * 4,
    )

    per_image = pl.pallas_call(
        kernel,
        out_shape=jax.ShapeDtypeStruct((bp, 1), jnp.float32),
        grid=(bp // block_b,),
        in_specs=[make_in_spec(), make_in_spec()],
        out_specs=pl.BlockSpec((block_b, 1), lambda b: (b, 0)),
        compiler_params=pltpu.CompilerParams(
            dimension_semantics=("parallel",),
            vmem_limit_bytes=int(vmem_limit),
        ),
        cost_estimate=cost,
    )(pred2, y2)

    return jnp.mean(per_image[:B, 0])


# --------------------------------------------------------------------------
# Pure-JAX reference mirroring the PyTorch module exactly.
# --------------------------------------------------------------------------
def _reference_loss(pred, y, eps=1e-8, disparity=True):
    B, H, W = pred.shape
    n = H * W
    p = jnp.reshape(pred, (B, n)).astype(jnp.float32)
    yy = jnp.reshape(jnp.squeeze(y), (B, n)).astype(jnp.float32)
    if not disparity:
        yy = 1.0 / (yy + eps)
    mn = yy.min(axis=-1, keepdims=True)
    mx = yy.max(axis=-1, keepdims=True)
    yy = (yy - mn) / (mx - mn + eps)

    def dhat(d):
        k = (n - 1) // 2                                # torch lower median
        med = jnp.sort(d, axis=-1)[:, k:k + 1]
        s = jnp.sum(jnp.abs(d - med), axis=-1, keepdims=True) / n + eps
        return (d - med) / s

    rho = jnp.abs(dhat(p) - dhat(yy))
    return jnp.mean(jnp.sum(rho, axis=-1) / n)


if __name__ == "__main__":
    key = jax.random.PRNGKey(0)

    # (B, H, W, disparity): padding inside one block, non-disparity branch,
    # multi-image batch (adaptive block), and n > _UNROLL_N (fori_loop path).
    configs = [
        (2, 16, 16, True),
        (3, 16, 16, False),
        (16, 8, 16, True),
        (2, 64, 80, True),
    ]
    for i, (B, H, W, disparity) in enumerate(configs):
        k1, k2 = jax.random.split(jax.random.fold_in(key, i))
        pred = jax.random.uniform(k1, (B, H, W), dtype=jnp.float32)
        y = jax.random.uniform(k2, (B, H, W), dtype=jnp.float32,
                               minval=0.1, maxval=2.0)

        loss = loss_teacher(pred, y, disparity=disparity)
        jax.block_until_ready(loss)

        ref = _reference_loss(pred, y, disparity=disparity)
        assert jnp.isfinite(loss), (i, float(loss))
        assert jnp.allclose(loss, ref, atol=5e-5, rtol=5e-5), \
            (i, float(loss), float(ref))

    print("KERNEL_OK")
</pallas_src>

<mosaic_0001>
module attributes {stable_mosaic.version = 11 : i64} {
  func.func @_loss_teacher_kernel(%arg0: i32, %arg1: memref<8x256xf32, #tpu.memory_space<vmem>>, %arg2: memref<8x256xf32, #tpu.memory_space<vmem>>, %arg3: memref<8x1xf32, #tpu.memory_space<vmem>>) attributes {dimension_semantics = [#tpu.dimension_semantics<parallel>], iteration_bounds = array<i64: 1>, scalar_prefetch = 0 : i64, scratch_operands = 0 : i64, tpu.core_type = #tpu.core_type<tc>, window_params = [{transform_indices = @transform_0, window_bounds = array<i64: 8, 256>}, {transform_indices = @transform_1, window_bounds = array<i64: 8, 256>}, {transform_indices = @transform_2, window_bounds = array<i64: 8, 1>}]} {
    %c0 = arith.constant 0 : index
    %c0_0 = arith.constant 0 : index
    %0 = vector.load %arg1[%c0, %c0_0] : memref<8x256xf32, #tpu.memory_space<vmem>>, vector<8x256xf32>
    %c0_1 = arith.constant 0 : index
    %c0_2 = arith.constant 0 : index
    %1 = vector.load %arg2[%c0_1, %c0_2] : memref<8x256xf32, #tpu.memory_space<vmem>>, vector<8x256xf32>
    %cst = arith.constant dense<0x7F800000> : vector<8xf32>
    %2 = vector.multi_reduction <minimumf>, %1, %cst [1] : vector<8x256xf32> to vector<8xf32>
    %3 = vector.shape_cast %2 : vector<8xf32> to vector<8x1xf32>
    %cst_3 = arith.constant dense<0xFF800000> : vector<8xf32>
    %4 = vector.multi_reduction <maximumf>, %1, %cst_3 [1] : vector<8x256xf32> to vector<8xf32>
    %5 = vector.shape_cast %4 : vector<8xf32> to vector<8x1xf32>
    %6 = arith.subf %5, %3 : vector<8x1xf32>
    %cst_4 = arith.constant 9.99999993E-9 : f32
    %7 = vector.broadcast %cst_4 : f32 to vector<8x1xf32>
    %8 = arith.addf %6, %7 : vector<8x1xf32>
    %9 = tpu.reciprocal %8 : vector<8x1xf32> -> vector<8x1xf32>
    %10 = tpu.bitcast %0 : vector<8x256xf32> -> vector<8x256xi32>
    %c0_i32 = arith.constant 0 : i32
    %11 = vector.broadcast %c0_i32 : i32 to vector<8x256xi32>
    %12 = arith.cmpi slt, %10, %11 : vector<8x256xi32>
    %c2147483647_i32 = arith.constant 2147483647 : i32
    %c0_i32_5 = arith.constant 0 : i32
    %13 = vector.broadcast %c2147483647_i32 : i32 to vector<8x256xi32>
    %14 = vector.broadcast %c0_i32_5 : i32 to vector<8x256xi32>
    %15 = arith.select %12, %13, %14 : vector<8x256xi1>, vector<8x256xi32>
    %16 = arith.xori %10, %15 : vector<8x256xi32>
    %17 = tpu.bitcast %1 : vector<8x256xf32> -> vector<8x256xi32>
    %c0_i32_6 = arith.constant 0 : i32
    %18 = vector.broadcast %c0_i32_6 : i32 to vector<8x256xi32>
    %19 = arith.cmpi slt, %17, %18 : vector<8x256xi32>
    %c2147483647_i32_7 = arith.constant 2147483647 : i32
    %c0_i32_8 = arith.constant 0 : i32
    %20 = vector.broadcast %c2147483647_i32_7 : i32 to vector<8x256xi32>
    %21 = vector.broadcast %c0_i32_8 : i32 to vector<8x256xi32>
    %22 = arith.select %19, %20, %21 : vector<8x256xi1>, vector<8x256xi32>
    %23 = arith.xori %17, %22 : vector<8x256xi32>
    %c0_i32_9 = arith.constant 0 : i32
    %24 = vector.broadcast %c0_i32_9 : i32 to vector<8x256xi32>
    %25 = arith.cmpi slt, %16, %24 : vector<8x256xi32>
    %26 = arith.extui %25 : vector<8x256xi1> to vector<8x256xi32>
    %cst_10 = arith.constant dense<0> : vector<8xi32>
    %27 = vector.multi_reduction <add>, %26, %cst_10 [1] : vector<8x256xi32> to vector<8xi32>
    %28 = vector.shape_cast %27 : vector<8xi32> to vector<8x1xi32>
    %c127_i32 = arith.constant 127 : i32
    %29 = vector.broadcast %c127_i32 : i32 to vector<8x1xi32>
    %30 = arith.cmpi sgt, %28, %29 : vector<8x1xi32>
    %c-2147483648_i32 = arith.constant -2147483648 : i32
    %c0_i32_11 = arith.constant 0 : i32
    %31 = vector.broadcast %c-2147483648_i32 : i32 to vector<8x1xi32>
    %32 = vector.broadcast %c0_i32_11 : i32 to vector<8x1xi32>
    %33 = arith.select %30, %31, %32 : vector<8x1xi1>, vector<8x1xi32>
    %c-1_i32 = arith.constant -1 : i32
    %c2147483647_i32_12 = arith.constant 2147483647 : i32
    %34 = vector.broadcast %c-1_i32 : i32 to vector<8x1xi32>
    %35 = vector.broadcast %c2147483647_i32_12 : i32 to vector<8x1xi32>
    %36 = arith.select %30, %34, %35 : vector<8x1xi1>, vector<8x1xi32>
    %c0_i32_13 = arith.constant 0 : i32
    %37 = vector.broadcast %c0_i32_13 : i32 to vector<8x256xi32>
    %38 = arith.cmpi slt, %23, %37 : vector<8x256xi32>
    %39 = arith.extui %38 : vector<8x256xi1> to vector<8x256xi32>
    %cst_14 = arith.constant dense<0> : vector<8xi32>
    %40 = vector.multi_reduction <add>, %39, %cst_14 [1] : vector<8x256xi32> to vector<8xi32>
    %41 = vector.shape_cast %40 : vector<8xi32> to vector<8x1xi32>
    %c127_i32_15 = arith.constant 127 : i32
    %42 = vector.broadcast %c127_i32_15 : i32 to vector<8x1xi32>
    %43 = arith.cmpi sgt, %41, %42 : vector<8x1xi32>
    %c-2147483648_i32_16 = arith.constant -2147483648 : i32
    %c0_i32_17 = arith.constant 0 : i32
    %44 = vector.broadcast %c-2147483648_i32_16 : i32 to vector<8x1xi32>
    %45 = vector.broadcast %c0_i32_17 : i32 to vector<8x1xi32>
    %46 = arith.select %43, %44, %45 : vector<8x1xi1>, vector<8x1xi32>
    %c-1_i32_18 = arith.constant -1 : i32
    %c2147483647_i32_19 = arith.constant 2147483647 : i32
    %47 = vector.broadcast %c-1_i32_18 : i32 to vector<8x1xi32>
    %48 = vector.broadcast %c2147483647_i32_19 : i32 to vector<8x1xi32>
    %49 = arith.select %43, %47, %48 : vector<8x1xi1>, vector<8x1xi32>
    %50 = arith.subi %36, %33 : vector<8x1xi32>
    %c1_i32 = arith.constant 1 : i32
    %51 = vector.broadcast %c1_i32 : i32 to vector<8x1xi32>
    %52 = arith.shrsi %50, %51 : vector<8x1xi32>
    %53 = arith.addi %33, %52 : vector<8x1xi32>
    %54 = vector.broadcast %53 : vector<8x1xi32> to vector<8x256xi32>
    %55 = arith.cmpi sle, %16, %54 : vector<8x256xi32>
    %56 = arith.extui %55 : vector<8x256xi1> to vector<8x256xi32>
    %cst_20 = arith.constant dense<0> : vector<8xi32>
    %57 = vector.multi_reduction <add>, %56, %cst_20 [1] : vector<8x256xi32> to vector<8xi32>
    %58 = vector.shape_cast %57 : vector<8xi32> to vector<8x1xi32>
    %c128_i32 = arith.constant 128 : i32
    %59 = vector.broadcast %c128_i32 : i32 to vector<8x1xi32>
    %60 = arith.cmpi sge, %58, %59 : vector<8x1xi32>
    %c1_i32_21 = arith.constant 1 : i32
    %61 = vector.broadcast %c1_i32_21 : i32 to vector<8x1xi32>
    %62 = arith.addi %53, %61 : vector<8x1xi32>
    %63 = arith.select %60, %33, %62 : vector<8x1xi1>, vector<8x1xi32>
    %64 = arith.select %60, %53, %36 : vector<8x1xi1>, vector<8x1xi32>
    %65 = arith.subi %49, %46 : vector<8x1xi32>
    %c1_i32_22 = arith.constant 1 : i32
    %66 = vector.broadcast %c1_i32_22 : i32 to vector<8x1xi32>
    %67 = arith.shrsi %65, %66 : vector<8x1xi32>
    %68 = arith.addi %46, %67 : vector<8x1xi32>
    %69 = vector.broadcast %68 : vector<8x1xi32> to vector<8x256xi32>
    %70 = arith.cmpi sle, %23, %69 : vector<8x256xi32>
    %71 = arith.extui %70 : vector<8x256xi1> to vector<8x256xi32>
    %cst_23 = arith.constant dense<0> : vector<8xi32>
    %72 = vector.multi_reduction <add>, %71, %cst_23 [1] : vector<8x256xi32> to vector<8xi32>
    %73 = vector.shape_cast %72 : vector<8xi32> to vector<8x1xi32>
    %c128_i32_24 = arith.constant 128 : i32
    %74 = vector.broadcast %c128_i32_24 : i32 to vector<8x1xi32>
    %75 = arith.cmpi sge, %73, %74 : vector<8x1xi32>
    %c1_i32_25 = arith.constant 1 : i32
    %76 = vector.broadcast %c1_i32_25 : i32 to vector<8x1xi32>
    %77 = arith.addi %68, %76 : vector<8x1xi32>
    %78 = arith.select %75, %46, %77 : vector<8x1xi1>, vector<8x1xi32>
    %79 = arith.select %75, %68, %49 : vector<8x1xi1>, vector<8x1xi32>
    %80 = arith.subi %64, %63 : vector<8x1xi32>
    %c1_i32_26 = arith.constant 1 : i32
    %81 = vector.broadcast %c1_i32_26 : i32 to vector<8x1xi32>
    %82 = arith.shrsi %80, %81 : vector<8x1xi32>
    %83 = arith.addi %63, %82 : vector<8x1xi32>
    %84 = vector.broadcast %83 : vector<8x1xi32> to vector<8x256xi32>
    %85 = arith.cmpi sle, %16, %84 : vector<8x256xi32>
    %86 = arith.extui %85 : vector<8x256xi1> to vector<8x256xi32>
    %cst_27 = arith.constant dense<0> : vector<8xi32>
    %87 = vector.multi_reduction <add>, %86, %cst_27 [1] : vector<8x256xi32> to vector<8xi32>
    %88 = vector.shape_cast %87 : vector<8xi32> to vector<8x1xi32>
    %c128_i32_28 = arith.constant 128 : i32
    %89 = vector.broadcast %c128_i32_28 : i32 to vector<8x1xi32>
    %90 = arith.cmpi sge, %88, %89 : vector<8x1xi32>
    %c1_i32_29 = arith.constant 1 : i32
    %91 = vector.broadcast %c1_i32_29 : i32 to vector<8x1xi32>
    %92 = arith.addi %83, %91 : vector<8x1xi32>
    %93 = arith.select %90, %63, %92 : vector<8x1xi1>, vector<8x1xi32>
    %94 = arith.select %90, %83, %64 : vector<8x1xi1>, vector<8x1xi32>
    %95 = arith.subi %79, %78 : vector<8x1xi32>
    %c1_i32_30 = arith.constant 1 : i32
    %96 = vector.broadcast %c1_i32_30 : i32 to vector<8x1xi32>
    %97 = arith.shrsi %95, %96 : vector<8x1xi32>
    %98 = arith.addi %78, %97 : vector<8x1xi32>
    %99 = vector.broadcast %98 : vector<8x1xi32> to vector<8x256xi32>
    %100 = arith.cmpi sle, %23, %99 : vector<8x256xi32>
    %101 = arith.extui %100 : vector<8x256xi1> to vector<8x256xi32>
    %cst_31 = arith.constant dense<0> : vector<8xi32>
    %102 = vector.multi_reduction <add>, %101, %cst_31 [1] : vector<8x256xi32> to vector<8xi32>
    %103 = vector.shape_cast %102 : vector<8xi32> to vector<8x1xi32>
    %c128_i32_32 = arith.constant 128 : i32
    %104 = vector.broadcast %c128_i32_32 : i32 to vector<8x1xi32>
    %105 = arith.cmpi sge, %103, %104 : vector<8x1xi32>
    %c1_i32_33 = arith.constant 1 : i32
    %106 = vector.broadcast %c1_i32_33 : i32 to vector<8x1xi32>
    %107 = arith.addi %98, %106 : vector<8x1xi32>
    %108 = arith.select %105, %78, %107 : vector<8x1xi1>, vector<8x1xi32>
    %109 = arith.select %105, %98, %79 : vector<8x1xi1>, vector<8x1xi32>
    %110 = arith.subi %94, %93 : vector<8x1xi32>
    %c1_i32_34 = arith.constant 1 : i32
    %111 = vector.broadcast %c1_i32_34 : i32 to vector<8x1xi32>
    %112 = arith.shrsi %110, %111 : vector<8x1xi32>
    %113 = arith.addi %93, %112 : vector<8x1xi32>
    %114 = vector.broadcast %113 : vector<8x1xi32> to vector<8x256xi32>
    %115 = arith.cmpi sle, %16, %114 : vector<8x256xi32>
    %116 = arith.extui %115 : vector<8x256xi1> to vector<8x256xi32>
    %cst_35 = arith.constant dense<0> : vector<8xi32>
    %117 = vector.multi_reduction <add>, %116, %cst_35 [1] : vector<8x256xi32> to vector<8xi32>
    %118 = vector.shape_cast %117 : vector<8xi32> to vector<8x1xi32>
    %c128_i32_36 = arith.constant 128 : i32
    %119 = vector.broadcast %c128_i32_36 : i32 to vector<8x1xi32>
    %120 = arith.cmpi sge, %118, %119 : vector<8x1xi32>
    %c1_i32_37 = arith.constant 1 : i32
    %121 = vector.broadcast %c1_i32_37 : i32 to vector<8x1xi32>
    %122 = arith.addi %113, %121 : vector<8x1xi32>
    %123 = arith.select %120, %93, %122 : vector<8x1xi1>, vector<8x1xi32>
    %124 = arith.select %120, %113, %94 : vector<8x1xi1>, vector<8x1xi32>
    %125 = arith.subi %109, %108 : vector<8x1xi32>
    %c1_i32_38 = arith.constant 1 : i32
    %126 = vector.broadcast %c1_i32_38 : i32 to vector<8x1xi32>
    %127 = arith.shrsi %125, %126 : vector<8x1xi32>
    %128 = arith.addi %108, %127 : vector<8x1xi32>
    %129 = vector.broadcast %128 : vector<8x1xi32> to vector<8x256xi32>
    %130 = arith.cmpi sle, %23, %129 : vector<8x256xi32>
    %131 = arith.extui %130 : vector<8x256xi1> to vector<8x256xi32>
    %cst_39 = arith.constant dense<0> : vector<8xi32>
    %132 = vector.multi_reduction <add>, %131, %cst_39 [1] : vector<8x256xi32> to vector<8xi32>
    %133 = vector.shape_cast %132 : vector<8xi32> to vector<8x1xi32>
    %c128_i32_40 = arith.constant 128 : i32
    %134 = vector.broadcast %c128_i32_40 : i32 to vector<8x1xi32>
    %135 = arith.cmpi sge, %133, %134 : vector<8x1xi32>
    %c1_i32_41 = arith.constant 1 : i32
    %136 = vector.broadcast %c1_i32_41 : i32 to vector<8x1xi32>
    %137 = arith.addi %128, %136 : vector<8x1xi32>
    %138 = arith.select %135, %108, %137 : vector<8x1xi1>, vector<8x1xi32>
    %139 = arith.select %135, %128, %109 : vector<8x1xi1>, vector<8x1xi32>
    %140 = arith.subi %124, %123 : vector<8x1xi32>
    %c1_i32_42 = arith.constant 1 : i32
    %141 = vector.broadcast %c1_i32_42 : i32 to vector<8x1xi32>
    %142 = arith.shrsi %140, %141 : vector<8x1xi32>
    %143 = arith.addi %123, %142 : vector<8x1xi32>
    %144 = vector.broadcast %143 : vector<8x1xi32> to vector<8x256xi32>
    %145 = arith.cmpi sle, %16, %144 : vector<8x256xi32>
    %146 = arith.extui %145 : vector<8x256xi1> to vector<8x256xi32>
    %cst_43 = arith.constant dense<0> : vector<8xi32>
    %147 = vector.multi_reduction <add>, %146, %cst_43 [1] : vector<8x256xi32> to vector<8xi32>
    %148 = vector.shape_cast %147 : vector<8xi32> to vector<8x1xi32>
    %c128_i32_44 = arith.constant 128 : i32
    %149 = vector.broadcast %c128_i32_44 : i32 to vector<8x1xi32>
    %150 = arith.cmpi sge, %148, %149 : vector<8x1xi32>
    %c1_i32_45 = arith.constant 1 : i32
    %151 = vector.broadcast %c1_i32_45 : i32 to vector<8x1xi32>
    %152 = arith.addi %143, %151 : vector<8x1xi32>
    %153 = arith.select %150, %123, %152 : vector<8x1xi1>, vector<8x1xi32>
    %154 = arith.select %150, %143, %124 : vector<8x1xi1>, vector<8x1xi32>
    %155 = arith.subi %139, %138 : vector<8x1xi32>
    %c1_i32_46 = arith.constant 1 : i32
    %156 = vector.broadcast %c1_i32_46 : i32 to vector<8x1xi32>
    %157 = arith.shrsi %155, %156 : vector<8x1xi32>
    %158 = arith.addi %138, %157 : vector<8x1xi32>
    %159 = vector.broadcast %158 : vector<8x1xi32> to vector<8x256xi32>
    %160 = arith.cmpi sle, %23, %159 : vector<8x256xi32>
    %161 = arith.extui %160 : vector<8x256xi1> to vector<8x256xi32>
    %cst_47 = arith.constant dense<0> : vector<8xi32>
    %162 = vector.multi_reduction <add>, %161, %cst_47 [1] : vector<8x256xi32> to vector<8xi32>
    %163 = vector.shape_cast %162 : vector<8xi32> to vector<8x1xi32>
    %c128_i32_48 = arith.constant 128 : i32
    %164 = vector.broadcast %c128_i32_48 : i32 to vector<8x1xi32>
    %165 = arith.cmpi sge, %163, %164 : vector<8x1xi32>
    %c1_i32_49 = arith.constant 1 : i32
    %166 = vector.broadcast %c1_i32_49 : i32 to vector<8x1xi32>
    %167 = arith.addi %158, %166 : vector<8x1xi32>
    %168 = arith.select %165, %138, %167 : vector<8x1xi1>, vector<8x1xi32>
    %169 = arith.select %165, %158, %139 : vector<8x1xi1>, vector<8x1xi32>
    %170 = arith.subi %154, %153 : vector<8x1xi32>
    %c1_i32_50 = arith.constant 1 : i32
    %171 = vector.broadcast %c1_i32_50 : i32 to vector<8x1xi32>
    %172 = arith.shrsi %170, %171 : vector<8x1xi32>
    %173 = arith.addi %153, %172 : vector<8x1xi32>
    %174 = vector.broadcast %173 : vector<8x1xi32> to vector<8x256xi32>
    %175 = arith.cmpi sle, %16, %174 : vector<8x256xi32>
    %176 = arith.extui %175 : vector<8x256xi1> to vector<8x256xi32>
    %cst_51 = arith.constant dense<0> : vector<8xi32>
    %177 = vector.multi_reduction <add>, %176, %cst_51 [1] : vector<8x256xi32> to vector<8xi32>
    %178 = vector.shape_cast %177 : vector<8xi32> to vector<8x1xi32>
    %c128_i32_52 = arith.constant 128 : i32
    %179 = vector.broadcast %c128_i32_52 : i32 to vector<8x1xi32>
    %180 = arith.cmpi sge, %178, %179 : vector<8x1xi32>
    %c1_i32_53 = arith.constant 1 : i32
    %181 = vector.broadcast %c1_i32_53 : i32 to vector<8x1xi32>
    %182 = arith.addi %173, %181 : vector<8x1xi32>
    %183 = arith.select %180, %153, %182 : vector<8x1xi1>, vector<8x1xi32>
    %184 = arith.select %180, %173, %154 : vector<8x1xi1>, vector<8x1xi32>
    %185 = arith.subi %169, %168 : vector<8x1xi32>
    %c1_i32_54 = arith.constant 1 : i32
    %186 = vector.broadcast %c1_i32_54 : i32 to vector<8x1xi32>
    %187 = arith.shrsi %185, %186 : vector<8x1xi32>
    %188 = arith.addi %168, %187 : vector<8x1xi32>
    %189 = vector.broadcast %188 : vector<8x1xi32> to vector<8x256xi32>
    %190 = arith.cmpi sle, %23, %189 : vector<8x256xi32>
    %191 = arith.extui %190 : vector<8x256xi1> to vector<8x256xi32>
    %cst_55 = arith.constant dense<0> : vector<8xi32>
    %192 = vector.multi_reduction <add>, %191, %cst_55 [1] : vector<8x256xi32> to vector<8xi32>
    %193 = vector.shape_cast %192 : vector<8xi32> to vector<8x1xi32>
    %c128_i32_56 = arith.constant 128 : i32
    %194 = vector.broadcast %c128_i32_56 : i32 to vector<8x1xi32>
    %195 = arith.cmpi sge, %193, %194 : vector<8x1xi32>
    %c1_i32_57 = arith.constant 1 : i32
    %196 = vector.broadcast %c1_i32_57 : i32 to vector<8x1xi32>
    %197 = arith.addi %188, %196 : vector<8x1xi32>
    %198 = arith.select %195, %168, %197 : vector<8x1xi1>, vector<8x1xi32>
    %199 = arith.select %195, %188, %169 : vector<8x1xi1>, vector<8x1xi32>
    %200 = arith.subi %184, %183 : vector<8x1xi32>
    %c1_i32_58 = arith.constant 1 : i32
    %201 = vector.broadcast %c1_i32_58 : i32 to vector<8x1xi32>
    %202 = arith.shrsi %200, %201 : vector<8x1xi32>
    %203 = arith.addi %183, %202 : vector<8x1xi32>
    %204 = vector.broadcast %203 : vector<8x1xi32> to vector<8x256xi32>
    %205 = arith.cmpi sle, %16, %204 : vector<8x256xi32>
    %206 = arith.extui %205 : vector<8x256xi1> to vector<8x256xi32>
    %cst_59 = arith.constant dense<0> : vector<8xi32>
    %207 = vector.multi_reduction <add>, %206, %cst_59 [1] : vector<8x256xi32> to vector<8xi32>
    %208 = vector.shape_cast %207 : vector<8xi32> to vector<8x1xi32>
    %c128_i32_60 = arith.constant 128 : i32
    %209 = vector.broadcast %c128_i32_60 : i32 to vector<8x1xi32>
    %210 = arith.cmpi sge, %208, %209 : vector<8x1xi32>
    %c1_i32_61 = arith.constant 1 : i32
    %211 = vector.broadcast %c1_i32_61 : i32 to vector<8x1xi32>
    %212 = arith.addi %203, %211 : vector<8x1xi32>
    %213 = arith.select %210, %183, %212 : vector<8x1xi1>, vector<8x1xi32>
    %214 = arith.select %210, %203, %184 : vector<8x1xi1>, vector<8x1xi32>
    %215 = arith.subi %199, %198 : vector<8x1xi32>
    %c1_i32_62 = arith.constant 1 : i32
    %216 = vector.broadcast %c1_i32_62 : i32 to vector<8x1xi32>
    %217 = arith.shrsi %215, %216 : vector<8x1xi32>
    %218 = arith.addi %198, %217 : vector<8x1xi32>
    %219 = vector.broadcast %218 : vector<8x1xi32> to vector<8x256xi32>
    %220 = arith.cmpi sle, %23, %219 : vector<8x256xi32>
    %221 = arith.extui %220 : vector<8x256xi1> to vector<8x256xi32>
    %cst_63 = arith.constant dense<0> : vector<8xi32>
    %222 = vector.multi_reduction <add>, %221, %cst_63 [1] : vector<8x256xi32> to vector<8xi32>
    %223 = vector.shape_cast %222 : vector<8xi32> to vector<8x1xi32>
    %c128_i32_64 = arith.constant 128 : i32
    %224 = vector.broadcast %c128_i32_64 : i32 to vector<8x1xi32>
    %225 = arith.cmpi sge, %223, %224 : vector<8x1xi32>
    %c1_i32_65 = arith.constant 1 : i32
    %226 = vector.broadcast %c1_i32_65 : i32 to vector<8x1xi32>
    %227 = arith.addi %218, %226 : vector<8x1xi32>
    %228 = arith.select %225, %198, %227 : vector<8x1xi1>, vector<8x1xi32>
    %229 = arith.select %225, %218, %199 : vector<8x1xi1>, vector<8x1xi32>
    %230 = arith.subi %214, %213 : vector<8x1xi32>
    %c1_i32_66 = arith.constant 1 : i32
    %231 = vector.broadcast %c1_i32_66 : i32 to vector<8x1xi32>
    %232 = arith.shrsi %230, %231 : vector<8x1xi32>
    %233 = arith.addi %213, %232 : vector<8x1xi32>
    %234 = vector.broadcast %233 : vector<8x1xi32> to vector<8x256xi32>
    %235 = arith.cmpi sle, %16, %234 : vector<8x256xi32>
    %236 = arith.extui %235 : vector<8x256xi1> to vector<8x256xi32>
    %cst_67 = arith.constant dense<0> : vector<8xi32>
    %237 = vector.multi_reduction <add>, %236, %cst_67 [1] : vector<8x256xi32> to vector<8xi32>
    %238 = vector.shape_cast %237 : vector<8xi32> to vector<8x1xi32>
    %c128_i32_68 = arith.constant 128 : i32
    %239 = vector.broadcast %c128_i32_68 : i32 to vector<8x1xi32>
    %240 = arith.cmpi sge, %238, %239 : vector<8x1xi32>
    %c1_i32_69 = arith.constant 1 : i32
    %241 = vector.broadcast %c1_i32_69 : i32 to vector<8x1xi32>
    %242 = arith.addi %233, %241 : vector<8x1xi32>
    %243 = arith.select %240, %213, %242 : vector<8x1xi1>, vector<8x1xi32>
    %244 = arith.select %240, %233, %214 : vector<8x1xi1>, vector<8x1xi32>
    %245 = arith.subi %229, %228 : vector<8x1xi32>
    %c1_i32_70 = arith.constant 1 : i32
    %246 = vector.broadcast %c1_i32_70 : i32 to vector<8x1xi32>
    %247 = arith.shrsi %245, %246 : vector<8x1xi32>
    %248 = arith.addi %228, %247 : vector<8x1xi32>
    %249 = vector.broadcast %248 : vector<8x1xi32> to vector<8x256xi32>
    %250 = arith.cmpi sle, %23, %249 : vector<8x256xi32>
    %251 = arith.extui %250 : vector<8x256xi1> to vector<8x256xi32>
    %cst_71 = arith.constant dense<0> : vector<8xi32>
    %252 = vector.multi_reduction <add>, %251, %cst_71 [1] : vector<8x256xi32> to vector<8xi32>
    %253 = vector.shape_cast %252 : vector<8xi32> to vector<8x1xi32>
    %c128_i32_72 = arith.constant 128 : i32
    %254 = vector.broadcast %c128_i32_72 : i32 to vector<8x1xi32>
    %255 = arith.cmpi sge, %253, %254 : vector<8x1xi32>
    %c1_i32_73 = arith.constant 1 : i32
    %256 = vector.broadcast %c1_i32_73 : i32 to vector<8x1xi32>
    %257 = arith.addi %248, %256 : vector<8x1xi32>
    %258 = arith.select %255, %228, %257 : vector<8x1xi1>, vector<8x1xi32>
    %259 = arith.select %255, %248, %229 : vector<8x1xi1>, vector<8x1xi32>
    %260 = arith.subi %244, %243 : vector<8x1xi32>
    %c1_i32_74 = arith.constant 1 : i32
    %261 = vector.broadcast %c1_i32_74 : i32 to vector<8x1xi32>
    %262 = arith.shrsi %260, %261 : vector<8x1xi32>
    %263 = arith.addi %243, %262 : vector<8x1xi32>
    %264 = vector.broadcast %263 : vector<8x1xi32> to vector<8x256xi32>
    %265 = arith.cmpi sle, %16, %264 : vector<8x256xi32>
    %266 = arith.extui %265 : vector<8x256xi1> to vector<8x256xi32>
    %cst_75 = arith.constant dense<0> : vector<8xi32>
    %267 = vector.multi_reduction <add>, %266, %cst_75 [1] : vector<8x256xi32> to vector<8xi32>
    %268 = vector.shape_cast %267 : vector<8xi32> to vector<8x1xi32>
    %c128_i32_76 = arith.constant 128 : i32
    %269 = vector.broadcast %c128_i32_76 : i32 to vector<8x1xi32>
    %270 = arith.cmpi sge, %268, %269 : vector<8x1xi32>
    %c1_i32_77 = arith.constant 1 : i32
    %271 = vector.broadcast %c1_i32_77 : i32 to vector<8x1xi32>
    %272 = arith.addi %263, %271 : vector<8x1xi32>
    %273 = arith.select %270, %243, %272 : vector<8x1xi1>, vector<8x1xi32>
    %274 = arith.select %270, %263, %244 : vector<8x1xi1>, vector<8x1xi32>
    %275 = arith.subi %259, %258 : vector<8x1xi32>
    %c1_i32_78 = arith.constant 1 : i32
    %276 = vector.broadcast %c1_i32_78 : i32 to vector<8x1xi32>
    %277 = arith.shrsi %275, %276 : vector<8x1xi32>
    %278 = arith.addi %258, %277 : vector<8x1xi32>
    %279 = vector.broadcast %278 : vector<8x1xi32> to vector<8x256xi32>
    %280 = arith.cmpi sle, %23, %279 : vector<8x256xi32>
    %281 = arith.extui %280 : vector<8x256xi1> to vector<8x256xi32>
    %cst_79 = arith.constant dense<0> : vector<8xi32>
    %282 = vector.multi_reduction <add>, %281, %cst_79 [1] : vector<8x256xi32> to vector<8xi32>
    %283 = vector.shape_cast %282 : vector<8xi32> to vector<8x1xi32>
    %c128_i32_80 = arith.constant 128 : i32
    %284 = vector.broadcast %c128_i32_80 : i32 to vector<8x1xi32>
    %285 = arith.cmpi sge, %283, %284 : vector<8x1xi32>
    %c1_i32_81 = arith.constant 1 : i32
    %286 = vector.broadcast %c1_i32_81 : i32 to vector<8x1xi32>
    %287 = arith.addi %278, %286 : vector<8x1xi32>
    %288 = arith.select %285, %258, %287 : vector<8x1xi1>, vector<8x1xi32>
    %289 = arith.select %285, %278, %259 : vector<8x1xi1>, vector<8x1xi32>
    %290 = arith.subi %274, %273 : vector<8x1xi32>
    %c1_i32_82 = arith.constant 1 : i32
    %291 = vector.broadcast %c1_i32_82 : i32 to vector<8x1xi32>
    %292 = arith.shrsi %290, %291 : vector<8x1xi32>
    %293 = arith.addi %273, %292 : vector<8x1xi32>
    %294 = vector.broadcast %293 : vector<8x1xi32> to vector<8x256xi32>
    %295 = arith.cmpi sle, %16, %294 : vector<8x256xi32>
    %296 = arith.extui %295 : vector<8x256xi1> to vector<8x256xi32>
    %cst_83 = arith.constant dense<0> : vector<8xi32>
    %297 = vector.multi_reduction <add>, %296, %cst_83 [1] : vector<8x256xi32> to vector<8xi32>
    %298 = vector.shape_cast %297 : vector<8xi32> to vector<8x1xi32>
    %c128_i32_84 = arith.constant 128 : i32
    %299 = vector.broadcast %c128_i32_84 : i32 to vector<8x1xi32>
    %300 = arith.cmpi sge, %298, %299 : vector<8x1xi32>
    %c1_i32_85 = arith.constant 1 : i32
    %301 = vector.broadcast %c1_i32_85 : i32 to vector<8x1xi32>
    %302 = arith.addi %293, %301 : vector<8x1xi32>
    %303 = arith.select %300, %273, %302 : vector<8x1xi1>, vector<8x1xi32>
    %304 = arith.select %300, %293, %274 : vector<8x1xi1>, vector<8x1xi32>
    %305 = arith.subi %289, %288 : vector<8x1xi32>
    %c1_i32_86 = arith.constant 1 : i32
    %306 = vector.broadcast %c1_i32_86 : i32 to vector<8x1xi32>
    %307 = arith.shrsi %305, %306 : vector<8x1xi32>
    %308 = arith.addi %288, %307 : vector<8x1xi32>
    %309 = vector.broadcast %308 : vector<8x1xi32> to vector<8x256xi32>
    %310 = arith.cmpi sle, %23, %309 : vector<8x256xi32>
    %311 = arith.extui %310 : vector<8x256xi1> to vector<8x256xi32>
    %cst_87 = arith.constant dense<0> : vector<8xi32>
    %312 = vector.multi_reduction <add>, %311, %cst_87 [1] : vector<8x256xi32> to vector<8xi32>
    %313 = vector.shape_cast %312 : vector<8xi32> to vector<8x1xi32>
    %c128_i32_88 = arith.constant 128 : i32
    %314 = vector.broadcast %c128_i32_88 : i32 to vector<8x1xi32>
    %315 = arith.cmpi sge, %313, %314 : vector<8x1xi32>
    %c1_i32_89 = arith.constant 1 : i32
    %316 = vector.broadcast %c1_i32_89 : i32 to vector<8x1xi32>
    %317 = arith.addi %308, %316 : vector<8x1xi32>
    %318 = arith.select %315, %288, %317 : vector<8x1xi1>, vector<8x1xi32>
    %319 = arith.select %315, %308, %289 : vector<8x1xi1>, vector<8x1xi32>
    %320 = arith.subi %304, %303 : vector<8x1xi32>
    %c1_i32_90 = arith.constant 1 : i32
    %321 = vector.broadcast %c1_i32_90 : i32 to vector<8x1xi32>
    %322 = arith.shrsi %320, %321 : vector<8x1xi32>
    %323 = arith.addi %303, %322 : vector<8x1xi32>
    %324 = vector.broadcast %323 : vector<8x1xi32> to vector<8x256xi32>
    %325 = arith.cmpi sle, %16, %324 : vector<8x256xi32>
    %326 = arith.extui %325 : vector<8x256xi1> to vector<8x256xi32>
    %cst_91 = arith.constant dense<0> : vector<8xi32>
    %327 = vector.multi_reduction <add>, %326, %cst_91 [1] : vector<8x256xi32> to vector<8xi32>
    %328 = vector.shape_cast %327 : vector<8xi32> to vector<8x1xi32>
    %c128_i32_92 = arith.constant 128 : i32
    %329 = vector.broadcast %c128_i32_92 : i32 to vector<8x1xi32>
    %330 = arith.cmpi sge, %328, %329 : vector<8x1xi32>
    %c1_i32_93 = arith.constant 1 : i32
    %331 = vector.broadcast %c1_i32_93 : i32 to vector<8x1xi32>
    %332 = arith.addi %323, %331 : vector<8x1xi32>
    %333 = arith.select %330, %303, %332 : vector<8x1xi1>, vector<8x1xi32>
    %334 = arith.select %330, %323, %304 : vector<8x1xi1>, vector<8x1xi32>
    %335 = arith.subi %319, %318 : vector<8x1xi32>
    %c1_i32_94 = arith.constant 1 : i32
    %336 = vector.broadcast %c1_i32_94 : i32 to vector<8x1xi32>
    %337 = arith.shrsi %335, %336 : vector<8x1xi32>
    %338 = arith.addi %318, %337 : vector<8x1xi32>
    %339 = vector.broadcast %338 : vector<8x1xi32> to vector<8x256xi32>
    %340 = arith.cmpi sle, %23, %339 : vector<8x256xi32>
    %341 = arith.extui %340 : vector<8x256xi1> to vector<8x256xi32>
    %cst_95 = arith.constant dense<0> : vector<8xi32>
    %342 = vector.multi_reduction <add>, %341, %cst_95 [1] : vector<8x256xi32> to vector<8xi32>
    %343 = vector.shape_cast %342 : vector<8xi32> to vector<8x1xi32>
    %c128_i32_96 = arith.constant 128 : i32
    %344 = vector.broadcast %c128_i32_96 : i32 to vector<8x1xi32>
    %345 = arith.cmpi sge, %343, %344 : vector<8x1xi32>
    %c1_i32_97 = arith.constant 1 : i32
    %346 = vector.broadcast %c1_i32_97 : i32 to vector<8x1xi32>
    %347 = arith.addi %338, %346 : vector<8x1xi32>
    %348 = arith.select %345, %318, %347 : vector<8x1xi1>, vector<8x1xi32>
    %349 = arith.select %345, %338, %319 : vector<8x1xi1>, vector<8x1xi32>
    %350 = arith.subi %334, %333 : vector<8x1xi32>
    %c1_i32_98 = arith.constant 1 : i32
    %351 = vector.broadcast %c1_i32_98 : i32 to vector<8x1xi32>
    %352 = arith.shrsi %350, %351 : vector<8x1xi32>
    %353 = arith.addi %333, %352 : vector<8x1xi32>
    %354 = vector.broadcast %353 : vector<8x1xi32> to vector<8x256xi32>
    %355 = arith.cmpi sle, %16, %354 : vector<8x256xi32>
    %356 = arith.extui %355 : vector<8x256xi1> to vector<8x256xi32>
    %cst_99 = arith.constant dense<0> : vector<8xi32>
    %357 = vector.multi_reduction <add>, %356, %cst_99 [1] : vector<8x256xi32> to vector<8xi32>
    %358 = vector.shape_cast %357 : vector<8xi32> to vector<8x1xi32>
    %c128_i32_100 = arith.constant 128 : i32
    %359 = vector.broadcast %c128_i32_100 : i32 to vector<8x1xi32>
    %360 = arith.cmpi sge, %358, %359 : vector<8x1xi32>
    %c1_i32_101 = arith.constant 1 : i32
    %361 = vector.broadcast %c1_i32_101 : i32 to vector<8x1xi32>
    %362 = arith.addi %353, %361 : vector<8x1xi32>
    %363 = arith.select %360, %333, %362 : vector<8x1xi1>, vector<8x1xi32>
    %364 = arith.select %360, %353, %334 : vector<8x1xi1>, vector<8x1xi32>
    %365 = arith.subi %349, %348 : vector<8x1xi32>
    %c1_i32_102 = arith.constant 1 : i32
    %366 = vector.broadcast %c1_i32_102 : i32 to vector<8x1xi32>
    %367 = arith.shrsi %365, %366 : vector<8x1xi32>
    %368 = arith.addi %348, %367 : vector<8x1xi32>
    %369 = vector.broadcast %368 : vector<8x1xi32> to vector<8x256xi32>
    %370 = arith.cmpi sle, %23, %369 : vector<8x256xi32>
    %371 = arith.extui %370 : vector<8x256xi1> to vector<8x256xi32>
    %cst_103 = arith.constant dense<0> : vector<8xi32>
    %372 = vector.multi_reduction <add>, %371, %cst_103 [1] : vector<8x256xi32> to vector<8xi32>
    %373 = vector.shape_cast %372 : vector<8xi32> to vector<8x1xi32>
    %c128_i32_104 = arith.constant 128 : i32
    %374 = vector.broadcast %c128_i32_104 : i32 to vector<8x1xi32>
    %375 = arith.cmpi sge, %373, %374 : vector<8x1xi32>
    %c1_i32_105 = arith.constant 1 : i32
    %376 = vector.broadcast %c1_i32_105 : i32 to vector<8x1xi32>
    %377 = arith.addi %368, %376 : vector<8x1xi32>
    %378 = arith.select %375, %348, %377 : vector<8x1xi1>, vector<8x1xi32>
    %379 = arith.select %375, %368, %349 : vector<8x1xi1>, vector<8x1xi32>
    %380 = arith.subi %364, %363 : vector<8x1xi32>
    %c1_i32_106 = arith.constant 1 : i32
    %381 = vector.broadcast %c1_i32_106 : i32 to vector<8x1xi32>
    %382 = arith.shrsi %380, %381 : vector<8x1xi32>
    %383 = arith.addi %363, %382 : vector<8x1xi32>
    %384 = vector.broadcast %383 : vector<8x1xi32> to vector<8x256xi32>
    %385 = arith.cmpi sle, %16, %384 : vector<8x256xi32>
    %386 = arith.extui %385 : vector<8x256xi1> to vector<8x256xi32>
    %cst_107 = arith.constant dense<0> : vector<8xi32>
    %387 = vector.multi_reduction <add>, %386, %cst_107 [1] : vector<8x256xi32> to vector<8xi32>
    %388 = vector.shape_cast %387 : vector<8xi32> to vector<8x1xi32>
    %c128_i32_108 = arith.constant 128 : i32
    %389 = vector.broadcast %c128_i32_108 : i32 to vector<8x1xi32>
    %390 = arith.cmpi sge, %388, %389 : vector<8x1xi32>
    %c1_i32_109 = arith.constant 1 : i32
    %391 = vector.broadcast %c1_i32_109 : i32 to vector<8x1xi32>
    %392 = arith.addi %383, %391 : vector<8x1xi32>
    %393 = arith.select %390, %363, %392 : vector<8x1xi1>, vector<8x1xi32>
    %394 = arith.select %390, %383, %364 : vector<8x1xi1>, vector<8x1xi32>
    %395 = arith.subi %379, %378 : vector<8x1xi32>
    %c1_i32_110 = arith.constant 1 : i32
    %396 = vector.broadcast %c1_i32_110 : i32 to vector<8x1xi32>
    %397 = arith.shrsi %395, %396 : vector<8x1xi32>
    %398 = arith.addi %378, %397 : vector<8x1xi32>
    %399 = vector.broadcast %398 : vector<8x1xi32> to vector<8x256xi32>
    %400 = arith.cmpi sle, %23, %399 : vector<8x256xi32>
    %401 = arith.extui %400 : vector<8x256xi1> to vector<8x256xi32>
    %cst_111 = arith.constant dense<0> : vector<8xi32>
    %402 = vector.multi_reduction <add>, %401, %cst_111 [1] : vector<8x256xi32> to vector<8xi32>
    %403 = vector.shape_cast %402 : vector<8xi32> to vector<8x1xi32>
    %c128_i32_112 = arith.constant 128 : i32
    %404 = vector.broadcast %c128_i32_112 : i32 to vector<8x1xi32>
    %405 = arith.cmpi sge, %403, %404 : vector<8x1xi32>
    %c1_i32_113 = arith.constant 1 : i32
    %406 = vector.broadcast %c1_i32_113 : i32 to vector<8x1xi32>
    %407 = arith.addi %398, %406 : vector<8x1xi32>
    %408 = arith.select %405, %378, %407 : vector<8x1xi1>, vector<8x1xi32>
    %409 = arith.select %405, %398, %379 : vector<8x1xi1>, vector<8x1xi32>
    %410 = arith.subi %394, %393 : vector<8x1xi32>
    %c1_i32_114 = arith.constant 1 : i32
    %411 = vector.broadcast %c1_i32_114 : i32 to vector<8x1xi32>
    %412 = arith.shrsi %410, %411 : vector<8x1xi32>
    %413 = arith.addi %393, %412 : vector<8x1xi32>
    %414 = vector.broadcast %413 : vector<8x1xi32> to vector<8x256xi32>
    %415 = arith.cmpi sle, %16, %414 : vector<8x256xi32>
    %416 = arith.extui %415 : vector<8x256xi1> to vector<8x256xi32>
    %cst_115 = arith.constant dense<0> : vector<8xi32>
    %417 = vector.multi_reduction <add>, %416, %cst_115 [1] : vector<8x256xi32> to vector<8xi32>
    %418 = vector.shape_cast %417 : vector<8xi32> to vector<8x1xi32>
    %c128_i32_116 = arith.constant 128 : i32
    %419 = vector.broadcast %c128_i32_116 : i32 to vector<8x1xi32>
    %420 = arith.cmpi sge, %418, %419 : vector<8x1xi32>
    %c1_i32_117 = arith.constant 1 : i32
    %421 = vector.broadcast %c1_i32_117 : i32 to vector<8x1xi32>
    %422 = arith.addi %413, %421 : vector<8x1xi32>
    %423 = arith.select %420, %393, %422 : vector<8x1xi1>, vector<8x1xi32>
    %424 = arith.select %420, %413, %394 : vector<8x1xi1>, vector<8x1xi32>
    %425 = arith.subi %409, %408 : vector<8x1xi32>
    %c1_i32_118 = arith.constant 1 : i32
    %426 = vector.broadcast %c1_i32_118 : i32 to vector<8x1xi32>
    %427 = arith.shrsi %425, %426 : vector<8x1xi32>
    %428 = arith.addi %408, %427 : vector<8x1xi32>
    %429 = vector.broadcast %428 : vector<8x1xi32> to vector<8x256xi32>
    %430 = arith.cmpi sle, %23, %429 : vector<8x256xi32>
    %431 = arith.extui %430 : vector<8x256xi1> to vector<8x256xi32>
    %cst_119 = arith.constant dense<0> : vector<8xi32>
    %432 = vector.multi_reduction <add>, %431, %cst_119 [1] : vector<8x256xi32> to vector<8xi32>
    %433 = vector.shape_cast %432 : vector<8xi32> to vector<8x1xi32>
    %c128_i32_120 = arith.constant 128 : i32
    %434 = vector.broadcast %c128_i32_120 : i32 to vector<8x1xi32>
    %435 = arith.cmpi sge, %433, %434 : vector<8x1xi32>
    %c1_i32_121 = arith.constant 1 : i32
    %436 = vector.broadcast %c1_i32_121 : i32 to vector<8x1xi32>
    %437 = arith.addi %428, %436 : vector<8x1xi32>
    %438 = arith.select %435, %408, %437 : vector<8x1xi1>, vector<8x1xi32>
    %439 = arith.select %435, %428, %409 : vector<8x1xi1>, vector<8x1xi32>
    %440 = arith.subi %424, %423 : vector<8x1xi32>
    %c1_i32_122 = arith.constant 1 : i32
    %441 = vector.broadcast %c1_i32_122 : i32 to vector<8x1xi32>
    %442 = arith.shrsi %440, %441 : vector<8x1xi32>
    %443 = arith.addi %423, %442 : vector<8x1xi32>
    %444 = vector.broadcast %443 : vector<8x1xi32> to vector<8x256xi32>
    %445 = arith.cmpi sle, %16, %444 : vector<8x256xi32>
    %446 = arith.extui %445 : vector<8x256xi1> to vector<8x256xi32>
    %cst_123 = arith.constant dense<0> : vector<8xi32>
    %447 = vector.multi_reduction <add>, %446, %cst_123 [1] : vector<8x256xi32> to vector<8xi32>
    %448 = vector.shape_cast %447 : vector<8xi32> to vector<8x1xi32>
    %c128_i32_124 = arith.constant 128 : i32
    %449 = vector.broadcast %c128_i32_124 : i32 to vector<8x1xi32>
    %450 = arith.cmpi sge, %448, %449 : vector<8x1xi32>
    %c1_i32_125 = arith.constant 1 : i32
    %451 = vector.broadcast %c1_i32_125 : i32 to vector<8x1xi32>
    %452 = arith.addi %443, %451 : vector<8x1xi32>
    %453 = arith.select %450, %423, %452 : vector<8x1xi1>, vector<8x1xi32>
    %454 = arith.select %450, %443, %424 : vector<8x1xi1>, vector<8x1xi32>
    %455 = arith.subi %439, %438 : vector<8x1xi32>
    %c1_i32_126 = arith.constant 1 : i32
    %456 = vector.broadcast %c1_i32_126 : i32 to vector<8x1xi32>
    %457 = arith.shrsi %455, %456 : vector<8x1xi32>
    %458 = arith.addi %438, %457 : vector<8x1xi32>
    %459 = vector.broadcast %458 : vector<8x1xi32> to vector<8x256xi32>
    %460 = arith.cmpi sle, %23, %459 : vector<8x256xi32>
    %461 = arith.extui %460 : vector<8x256xi1> to vector<8x256xi32>
    %cst_127 = arith.constant dense<0> : vector<8xi32>
    %462 = vector.multi_reduction <add>, %461, %cst_127 [1] : vector<8x256xi32> to vector<8xi32>
    %463 = vector.shape_cast %462 : vector<8xi32> to vector<8x1xi32>
    %c128_i32_128 = arith.constant 128 : i32
    %464 = vector.broadcast %c128_i32_128 : i32 to vector<8x1xi32>
    %465 = arith.cmpi sge, %463, %464 : vector<8x1xi32>
    %c1_i32_129 = arith.constant 1 : i32
    %466 = vector.broadcast %c1_i32_129 : i32 to vector<8x1xi32>
    %467 = arith.addi %458, %466 : vector<8x1xi32>
    %468 = arith.select %465, %438, %467 : vector<8x1xi1>, vector<8x1xi32>
    %469 = arith.select %465, %458, %439 : vector<8x1xi1>, vector<8x1xi32>
    %470 = arith.subi %454, %453 : vector<8x1xi32>
    %c1_i32_130 = arith.constant 1 : i32
    %471 = vector.broadcast %c1_i32_130 : i32 to vector<8x1xi32>
    %472 = arith.shrsi %470, %471 : vector<8x1xi32>
    %473 = arith.addi %453, %472 : vector<8x1xi32>
    %474 = vector.broadcast %473 : vector<8x1xi32> to vector<8x256xi32>
    %475 = arith.cmpi sle, %16, %474 : vector<8x256xi32>
    %476 = arith.extui %475 : vector<8x256xi1> to vector<8x256xi32>
    %cst_131 = arith.constant dense<0> : vector<8xi32>
    %477 = vector.multi_reduction <add>, %476, %cst_131 [1] : vector<8x256xi32> to vector<8xi32>
    %478 = vector.shape_cast %477 : vector<8xi32> to vector<8x1xi32>
    %c128_i32_132 = arith.constant 128 : i32
    %479 = vector.broadcast %c128_i32_132 : i32 to vector<8x1xi32>
    %480 = arith.cmpi sge, %478, %479 : vector<8x1xi32>
    %c1_i32_133 = arith.constant 1 : i32
    %481 = vector.broadcast %c1_i32_133 : i32 to vector<8x1xi32>
    %482 = arith.addi %473, %481 : vector<8x1xi32>
    %483 = arith.select %480, %453, %482 : vector<8x1xi1>, vector<8x1xi32>
    %484 = arith.select %480, %473, %454 : vector<8x1xi1>, vector<8x1xi32>
    %485 = arith.subi %469, %468 : vector<8x1xi32>
    %c1_i32_134 = arith.constant 1 : i32
    %486 = vector.broadcast %c1_i32_134 : i32 to vector<8x1xi32>
    %487 = arith.shrsi %485, %486 : vector<8x1xi32>
    %488 = arith.addi %468, %487 : vector<8x1xi32>
    %489 = vector.broadcast %488 : vector<8x1xi32> to vector<8x256xi32>
    %490 = arith.cmpi sle, %23, %489 : vector<8x256xi32>
    %491 = arith.extui %490 : vector<8x256xi1> to vector<8x256xi32>
    %cst_135 = arith.constant dense<0> : vector<8xi32>
    %492 = vector.multi_reduction <add>, %491, %cst_135 [1] : vector<8x256xi32> to vector<8xi32>
    %493 = vector.shape_cast %492 : vector<8xi32> to vector<8x1xi32>
    %c128_i32_136 = arith.constant 128 : i32
    %494 = vector.broadcast %c128_i32_136 : i32 to vector<8x1xi32>
    %495 = arith.cmpi sge, %493, %494 : vector<8x1xi32>
    %c1_i32_137 = arith.constant 1 : i32
    %496 = vector.broadcast %c1_i32_137 : i32 to vector<8x1xi32>
    %497 = arith.addi %488, %496 : vector<8x1xi32>
    %498 = arith.select %495, %468, %497 : vector<8x1xi1>, vector<8x1xi32>
    %499 = arith.select %495, %488, %469 : vector<8x1xi1>, vector<8x1xi32>
    %500 = arith.subi %484, %483 : vector<8x1xi32>
    %c1_i32_138 = arith.constant 1 : i32
    %501 = vector.broadcast %c1_i32_138 : i32 to vector<8x1xi32>
    %502 = arith.shrsi %500, %501 : vector<8x1xi32>
    %503 = arith.addi %483, %502 : vector<8x1xi32>
    %504 = vector.broadcast %503 : vector<8x1xi32> to vector<8x256xi32>
    %505 = arith.cmpi sle, %16, %504 : vector<8x256xi32>
    %506 = arith.extui %505 : vector<8x256xi1> to vector<8x256xi32>
    %cst_139 = arith.constant dense<0> : vector<8xi32>
    %507 = vector.multi_reduction <add>, %506, %cst_139 [1] : vector<8x256xi32> to vector<8xi32>
    %508 = vector.shape_cast %507 : vector<8xi32> to vector<8x1xi32>
    %c128_i32_140 = arith.constant 128 : i32
    %509 = vector.broadcast %c128_i32_140 : i32 to vector<8x1xi32>
    %510 = arith.cmpi sge, %508, %509 : vector<8x1xi32>
    %c1_i32_141 = arith.constant 1 : i32
    %511 = vector.broadcast %c1_i32_141 : i32 to vector<8x1xi32>
    %512 = arith.addi %503, %511 : vector<8x1xi32>
    %513 = arith.select %510, %483, %512 : vector<8x1xi1>, vector<8x1xi32>
    %514 = arith.select %510, %503, %484 : vector<8x1xi1>, vector<8x1xi32>
    %515 = arith.subi %499, %498 : vector<8x1xi32>
    %c1_i32_142 = arith.constant 1 : i32
    %516 = vector.broadcast %c1_i32_142 : i32 to vector<8x1xi32>
    %517 = arith.shrsi %515, %516 : vector<8x1xi32>
    %518 = arith.addi %498, %517 : vector<8x1xi32>
    %519 = vector.broadcast %518 : vector<8x1xi32> to vector<8x256xi32>
    %520 = arith.cmpi sle, %23, %519 : vector<8x256xi32>
    %521 = arith.extui %520 : vector<8x256xi1> to vector<8x256xi32>
    %cst_143 = arith.constant dense<0> : vector<8xi32>
    %522 = vector.multi_reduction <add>, %521, %cst_143 [1] : vector<8x256xi32> to vector<8xi32>
    %523 = vector.shape_cast %522 : vector<8xi32> to vector<8x1xi32>
    %c128_i32_144 = arith.constant 128 : i32
    %524 = vector.broadcast %c128_i32_144 : i32 to vector<8x1xi32>
    %525 = arith.cmpi sge, %523, %524 : vector<8x1xi32>
    %c1_i32_145 = arith.constant 1 : i32
    %526 = vector.broadcast %c1_i32_145 : i32 to vector<8x1xi32>
    %527 = arith.addi %518, %526 : vector<8x1xi32>
    %528 = arith.select %525, %498, %527 : vector<8x1xi1>, vector<8x1xi32>
    %529 = arith.select %525, %518, %499 : vector<8x1xi1>, vector<8x1xi32>
    %530 = arith.subi %514, %513 : vector<8x1xi32>
    %c1_i32_146 = arith.constant 1 : i32
    %531 = vector.broadcast %c1_i32_146 : i32 to vector<8x1xi32>
    %532 = arith.shrsi %530, %531 : vector<8x1xi32>
    %533 = arith.addi %513, %532 : vector<8x1xi32>
    %534 = vector.broadcast %533 : vector<8x1xi32> to vector<8x256xi32>
    %535 = arith.cmpi sle, %16, %534 : vector<8x256xi32>
    %536 = arith.extui %535 : vector<8x256xi1> to vector<8x256xi32>
    %cst_147 = arith.constant dense<0> : vector<8xi32>
    %537 = vector.multi_reduction <add>, %536, %cst_147 [1] : vector<8x256xi32> to vector<8xi32>
    %538 = vector.shape_cast %537 : vector<8xi32> to vector<8x1xi32>
    %c128_i32_148 = arith.constant 128 : i32
    %539 = vector.broadcast %c128_i32_148 : i32 to vector<8x1xi32>
    %540 = arith.cmpi sge, %538, %539 : vector<8x1xi32>
    %c1_i32_149 = arith.constant 1 : i32
    %541 = vector.broadcast %c1_i32_149 : i32 to vector<8x1xi32>
    %542 = arith.addi %533, %541 : vector<8x1xi32>
    %543 = arith.select %540, %513, %542 : vector<8x1xi1>, vector<8x1xi32>
    %544 = arith.select %540, %533, %514 : vector<8x1xi1>, vector<8x1xi32>
    %545 = arith.subi %529, %528 : vector<8x1xi32>
    %c1_i32_150 = arith.constant 1 : i32
    %546 = vector.broadcast %c1_i32_150 : i32 to vector<8x1xi32>
    %547 = arith.shrsi %545, %546 : vector<8x1xi32>
    %548 = arith.addi %528, %547 : vector<8x1xi32>
    %549 = vector.broadcast %548 : vector<8x1xi32> to vector<8x256xi32>
    %550 = arith.cmpi sle, %23, %549 : vector<8x256xi32>
    %551 = arith.extui %550 : vector<8x256xi1> to vector<8x256xi32>
    %cst_151 = arith.constant dense<0> : vector<8xi32>
    %552 = vector.multi_reduction <add>, %551, %cst_151 [1] : vector<8x256xi32> to vector<8xi32>
    %553 = vector.shape_cast %552 : vector<8xi32> to vector<8x1xi32>
    %c128_i32_152 = arith.constant 128 : i32
    %554 = vector.broadcast %c128_i32_152 : i32 to vector<8x1xi32>
    %555 = arith.cmpi sge, %553, %554 : vector<8x1xi32>
    %c1_i32_153 = arith.constant 1 : i32
    %556 = vector.broadcast %c1_i32_153 : i32 to vector<8x1xi32>
    %557 = arith.addi %548, %556 : vector<8x1xi32>
    %558 = arith.select %555, %528, %557 : vector<8x1xi1>, vector<8x1xi32>
    %559 = arith.select %555, %548, %529 : vector<8x1xi1>, vector<8x1xi32>
    %560 = arith.subi %544, %543 : vector<8x1xi32>
    %c1_i32_154 = arith.constant 1 : i32
    %561 = vector.broadcast %c1_i32_154 : i32 to vector<8x1xi32>
    %562 = arith.shrsi %560, %561 : vector<8x1xi32>
    %563 = arith.addi %543, %562 : vector<8x1xi32>
    %564 = vector.broadcast %563 : vector<8x1xi32> to vector<8x256xi32>
    %565 = arith.cmpi sle, %16, %564 : vector<8x256xi32>
    %566 = arith.extui %565 : vector<8x256xi1> to vector<8x256xi32>
    %cst_155 = arith.constant dense<0> : vector<8xi32>
    %567 = vector.multi_reduction <add>, %566, %cst_155 [1] : vector<8x256xi32> to vector<8xi32>
    %568 = vector.shape_cast %567 : vector<8xi32> to vector<8x1xi32>
    %c128_i32_156 = arith.constant 128 : i32
    %569 = vector.broadcast %c128_i32_156 : i32 to vector<8x1xi32>
    %570 = arith.cmpi sge, %568, %569 : vector<8x1xi32>
    %c1_i32_157 = arith.constant 1 : i32
    %571 = vector.broadcast %c1_i32_157 : i32 to vector<8x1xi32>
    %572 = arith.addi %563, %571 : vector<8x1xi32>
    %573 = arith.select %570, %543, %572 : vector<8x1xi1>, vector<8x1xi32>
    %574 = arith.select %570, %563, %544 : vector<8x1xi1>, vector<8x1xi32>
    %575 = arith.subi %559, %558 : vector<8x1xi32>
    %c1_i32_158 = arith.constant 1 : i32
    %576 = vector.broadcast %c1_i32_158 : i32 to vector<8x1xi32>
    %577 = arith.shrsi %575, %576 : vector<8x1xi32>
    %578 = arith.addi %558, %577 : vector<8x1xi32>
    %579 = vector.broadcast %578 : vector<8x1xi32> to vector<8x256xi32>
    %580 = arith.cmpi sle, %23, %579 : vector<8x256xi32>
    %581 = arith.extui %580 : vector<8x256xi1> to vector<8x256xi32>
    %cst_159 = arith.constant dense<0> : vector<8xi32>
    %582 = vector.multi_reduction <add>, %581, %cst_159 [1] : vector<8x256xi32> to vector<8xi32>
    %583 = vector.shape_cast %582 : vector<8xi32> to vector<8x1xi32>
    %c128_i32_160 = arith.constant 128 : i32
    %584 = vector.broadcast %c128_i32_160 : i32 to vector<8x1xi32>
    %585 = arith.cmpi sge, %583, %584 : vector<8x1xi32>
    %c1_i32_161 = arith.constant 1 : i32
    %586 = vector.broadcast %c1_i32_161 : i32 to vector<8x1xi32>
    %587 = arith.addi %578, %586 : vector<8x1xi32>
    %588 = arith.select %585, %558, %587 : vector<8x1xi1>, vector<8x1xi32>
    %589 = arith.select %585, %578, %559 : vector<8x1xi1>, vector<8x1xi32>
    %590 = arith.subi %574, %573 : vector<8x1xi32>
    %c1_i32_162 = arith.constant 1 : i32
    %591 = vector.broadcast %c1_i32_162 : i32 to vector<8x1xi32>
    %592 = arith.shrsi %590, %591 : vector<8x1xi32>
    %593 = arith.addi %573, %592 : vector<8x1xi32>
    %594 = vector.broadcast %593 : vector<8x1xi32> to vector<8x256xi32>
    %595 = arith.cmpi sle, %16, %594 : vector<8x256xi32>
    %596 = arith.extui %595 : vector<8x256xi1> to vector<8x256xi32>
    %cst_163 = arith.constant dense<0> : vector<8xi32>
    %597 = vector.multi_reduction <add>, %596, %cst_163 [1] : vector<8x256xi32> to vector<8xi32>
    %598 = vector.shape_cast %597 : vector<8xi32> to vector<8x1xi32>
    %c128_i32_164 = arith.constant 128 : i32
    %599 = vector.broadcast %c128_i32_164 : i32 to vector<8x1xi32>
    %600 = arith.cmpi sge, %598, %599 : vector<8x1xi32>
    %c1_i32_165 = arith.constant 1 : i32
    %601 = vector.broadcast %c1_i32_165 : i32 to vector<8x1xi32>
    %602 = arith.addi %593, %601 : vector<8x1xi32>
    %603 = arith.select %600, %573, %602 : vector<8x1xi1>, vector<8x1xi32>
    %604 = arith.select %600, %593, %574 : vector<8x1xi1>, vector<8x1xi32>
    %605 = arith.subi %589, %588 : vector<8x1xi32>
    %c1_i32_166 = arith.constant 1 : i32
    %606 = vector.broadcast %c1_i32_166 : i32 to vector<8x1xi32>
    %607 = arith.shrsi %605, %606 : vector<8x1xi32>
    %608 = arith.addi %588, %607 : vector<8x1xi32>
    %609 = vector.broadcast %608 : vector<8x1xi32> to vector<8x256xi32>
    %610 = arith.cmpi sle, %23, %609 : vector<8x256xi32>
    %611 = arith.extui %610 : vector<8x256xi1> to vector<8x256xi32>
    %cst_167 = arith.constant dense<0> : vector<8xi32>
    %612 = vector.multi_reduction <add>, %611, %cst_167 [1] : vector<8x256xi32> to vector<8xi32>
    %613 = vector.shape_cast %612 : vector<8xi32> to vector<8x1xi32>
    %c128_i32_168 = arith.constant 128 : i32
    %614 = vector.broadcast %c128_i32_168 : i32 to vector<8x1xi32>
    %615 = arith.cmpi sge, %613, %614 : vector<8x1xi32>
    %c1_i32_169 = arith.constant 1 : i32
    %616 = vector.broadcast %c1_i32_169 : i32 to vector<8x1xi32>
    %617 = arith.addi %608, %616 : vector<8x1xi32>
    %618 = arith.select %615, %588, %617 : vector<8x1xi1>, vector<8x1xi32>
    %619 = arith.select %615, %608, %589 : vector<8x1xi1>, vector<8x1xi32>
    %620 = arith.subi %604, %603 : vector<8x1xi32>
    %c1_i32_170 = arith.constant 1 : i32
    %621 = vector.broadcast %c1_i32_170 : i32 to vector<8x1xi32>
    %622 = arith.shrsi %620, %621 : vector<8x1xi32>
    %623 = arith.addi %603, %622 : vector<8x1xi32>
    %624 = vector.broadcast %623 : vector<8x1xi32> to vector<8x256xi32>
    %625 = arith.cmpi sle, %16, %624 : vector<8x256xi32>
    %626 = arith.extui %625 : vector<8x256xi1> to vector<8x256xi32>
    %cst_171 = arith.constant dense<0> : vector<8xi32>
    %627 = vector.multi_reduction <add>, %626, %cst_171 [1] : vector<8x256xi32> to vector<8xi32>
    %628 = vector.shape_cast %627 : vector<8xi32> to vector<8x1xi32>
    %c128_i32_172 = arith.constant 128 : i32
    %629 = vector.broadcast %c128_i32_172 : i32 to vector<8x1xi32>
    %630 = arith.cmpi sge, %628, %629 : vector<8x1xi32>
    %c1_i32_173 = arith.constant 1 : i32
    %631 = vector.broadcast %c1_i32_173 : i32 to vector<8x1xi32>
    %632 = arith.addi %623, %631 : vector<8x1xi32>
    %633 = arith.select %630, %603, %632 : vector<8x1xi1>, vector<8x1xi32>
    %634 = arith.select %630, %623, %604 : vector<8x1xi1>, vector<8x1xi32>
    %635 = arith.subi %619, %618 : vector<8x1xi32>
    %c1_i32_174 = arith.constant 1 : i32
    %636 = vector.broadcast %c1_i32_174 : i32 to vector<8x1xi32>
    %637 = arith.shrsi %635, %636 : vector<8x1xi32>
    %638 = arith.addi %618, %637 : vector<8x1xi32>
    %639 = vector.broadcast %638 : vector<8x1xi32> to vector<8x256xi32>
    %640 = arith.cmpi sle, %23, %639 : vector<8x256xi32>
    %641 = arith.extui %640 : vector<8x256xi1> to vector<8x256xi32>
    %cst_175 = arith.constant dense<0> : vector<8xi32>
    %642 = vector.multi_reduction <add>, %641, %cst_175 [1] : vector<8x256xi32> to vector<8xi32>
    %643 = vector.shape_cast %642 : vector<8xi32> to vector<8x1xi32>
    %c128_i32_176 = arith.constant 128 : i32
    %644 = vector.broadcast %c128_i32_176 : i32 to vector<8x1xi32>
    %645 = arith.cmpi sge, %643, %644 : vector<8x1xi32>
    %c1_i32_177 = arith.constant 1 : i32
    %646 = vector.broadcast %c1_i32_177 : i32 to vector<8x1xi32>
    %647 = arith.addi %638, %646 : vector<8x1xi32>
    %648 = arith.select %645, %618, %647 : vector<8x1xi1>, vector<8x1xi32>
    %649 = arith.select %645, %638, %619 : vector<8x1xi1>, vector<8x1xi32>
    %650 = arith.subi %634, %633 : vector<8x1xi32>
    %c1_i32_178 = arith.constant 1 : i32
    %651 = vector.broadcast %c1_i32_178 : i32 to vector<8x1xi32>
    %652 = arith.shrsi %650, %651 : vector<8x1xi32>
    %653 = arith.addi %633, %652 : vector<8x1xi32>
    %654 = vector.broadcast %653 : vector<8x1xi32> to vector<8x256xi32>
    %655 = arith.cmpi sle, %16, %654 : vector<8x256xi32>
    %656 = arith.extui %655 : vector<8x256xi1> to vector<8x256xi32>
    %cst_179 = arith.constant dense<0> : vector<8xi32>
    %657 = vector.multi_reduction <add>, %656, %cst_179 [1] : vector<8x256xi32> to vector<8xi32>
    %658 = vector.shape_cast %657 : vector<8xi32> to vector<8x1xi32>
    %c128_i32_180 = arith.constant 128 : i32
    %659 = vector.broadcast %c128_i32_180 : i32 to vector<8x1xi32>
    %660 = arith.cmpi sge, %658, %659 : vector<8x1xi32>
    %c1_i32_181 = arith.constant 1 : i32
    %661 = vector.broadcast %c1_i32_181 : i32 to vector<8x1xi32>
    %662 = arith.addi %653, %661 : vector<8x1xi32>
    %663 = arith.select %660, %633, %662 : vector<8x1xi1>, vector<8x1xi32>
    %664 = arith.select %660, %653, %634 : vector<8x1xi1>, vector<8x1xi32>
    %665 = arith.subi %649, %648 : vector<8x1xi32>
    %c1_i32_182 = arith.constant 1 : i32
    %666 = vector.broadcast %c1_i32_182 : i32 to vector<8x1xi32>
    %667 = arith.shrsi %665, %666 : vector<8x1xi32>
    %668 = arith.addi %648, %667 : vector<8x1xi32>
    %669 = vector.broadcast %668 : vector<8x1xi32> to vector<8x256xi32>
    %670 = arith.cmpi sle, %23, %669 : vector<8x256xi32>
    %671 = arith.extui %670 : vector<8x256xi1> to vector<8x256xi32>
    %cst_183 = arith.constant dense<0> : vector<8xi32>
    %672 = vector.multi_reduction <add>, %671, %cst_183 [1] : vector<8x256xi32> to vector<8xi32>
    %673 = vector.shape_cast %672 : vector<8xi32> to vector<8x1xi32>
    %c128_i32_184 = arith.constant 128 : i32
    %674 = vector.broadcast %c128_i32_184 : i32 to vector<8x1xi32>
    %675 = arith.cmpi sge, %673, %674 : vector<8x1xi32>
    %c1_i32_185 = arith.constant 1 : i32
    %676 = vector.broadcast %c1_i32_185 : i32 to vector<8x1xi32>
    %677 = arith.addi %668, %676 : vector<8x1xi32>
    %678 = arith.select %675, %648, %677 : vector<8x1xi1>, vector<8x1xi32>
    %679 = arith.select %675, %668, %649 : vector<8x1xi1>, vector<8x1xi32>
    %680 = arith.subi %664, %663 : vector<8x1xi32>
    %c1_i32_186 = arith.constant 1 : i32
    %681 = vector.broadcast %c1_i32_186 : i32 to vector<8x1xi32>
    %682 = arith.shrsi %680, %681 : vector<8x1xi32>
    %683 = arith.addi %663, %682 : vector<8x1xi32>
    %684 = vector.broadcast %683 : vector<8x1xi32> to vector<8x256xi32>
    %685 = arith.cmpi sle, %16, %684 : vector<8x256xi32>
    %686 = arith.extui %685 : vector<8x256xi1> to vector<8x256xi32>
    %cst_187 = arith.constant dense<0> : vector<8xi32>
    %687 = vector.multi_reduction <add>, %686, %cst_187 [1] : vector<8x256xi32> to vector<8xi32>
    %688 = vector.shape_cast %687 : vector<8xi32> to vector<8x1xi32>
    %c128_i32_188 = arith.constant 128 : i32
    %689 = vector.broadcast %c128_i32_188 : i32 to vector<8x1xi32>
    %690 = arith.cmpi sge, %688, %689 : vector<8x1xi32>
    %c1_i32_189 = arith.constant 1 : i32
    %691 = vector.broadcast %c1_i32_189 : i32 to vector<8x1xi32>
    %692 = arith.addi %683, %691 : vector<8x1xi32>
    %693 = arith.select %690, %663, %692 : vector<8x1xi1>, vector<8x1xi32>
    %694 = arith.select %690, %683, %664 : vector<8x1xi1>, vector<8x1xi32>
    %695 = arith.subi %679, %678 : vector<8x1xi32>
    %c1_i32_190 = arith.constant 1 : i32
    %696 = vector.broadcast %c1_i32_190 : i32 to vector<8x1xi32>
    %697 = arith.shrsi %695, %696 : vector<8x1xi32>
    %698 = arith.addi %678, %697 : vector<8x1xi32>
    %699 = vector.broadcast %698 : vector<8x1xi32> to vector<8x256xi32>
    %700 = arith.cmpi sle, %23, %699 : vector<8x256xi32>
    %701 = arith.extui %700 : vector<8x256xi1> to vector<8x256xi32>
    %cst_191 = arith.constant dense<0> : vector<8xi32>
    %702 = vector.multi_reduction <add>, %701, %cst_191 [1] : vector<8x256xi32> to vector<8xi32>
    %703 = vector.shape_cast %702 : vector<8xi32> to vector<8x1xi32>
    %c128_i32_192 = arith.constant 128 : i32
    %704 = vector.broadcast %c128_i32_192 : i32 to vector<8x1xi32>
    %705 = arith.cmpi sge, %703, %704 : vector<8x1xi32>
    %c1_i32_193 = arith.constant 1 : i32
    %706 = vector.broadcast %c1_i32_193 : i32 to vector<8x1xi32>
    %707 = arith.addi %698, %706 : vector<8x1xi32>
    %708 = arith.select %705, %678, %707 : vector<8x1xi1>, vector<8x1xi32>
    %709 = arith.select %705, %698, %679 : vector<8x1xi1>, vector<8x1xi32>
    %710 = arith.subi %694, %693 : vector<8x1xi32>
    %c1_i32_194 = arith.constant 1 : i32
    %711 = vector.broadcast %c1_i32_194 : i32 to vector<8x1xi32>
    %712 = arith.shrsi %710, %711 : vector<8x1xi32>
    %713 = arith.addi %693, %712 : vector<8x1xi32>
    %714 = vector.broadcast %713 : vector<8x1xi32> to vector<8x256xi32>
    %715 = arith.cmpi sle, %16, %714 : vector<8x256xi32>
    %716 = arith.extui %715 : vector<8x256xi1> to vector<8x256xi32>
    %cst_195 = arith.constant dense<0> : vector<8xi32>
    %717 = vector.multi_reduction <add>, %716, %cst_195 [1] : vector<8x256xi32> to vector<8xi32>
    %718 = vector.shape_cast %717 : vector<8xi32> to vector<8x1xi32>
    %c128_i32_196 = arith.constant 128 : i32
    %719 = vector.broadcast %c128_i32_196 : i32 to vector<8x1xi32>
    %720 = arith.cmpi sge, %718, %719 : vector<8x1xi32>
    %c1_i32_197 = arith.constant 1 : i32
    %721 = vector.broadcast %c1_i32_197 : i32 to vector<8x1xi32>
    %722 = arith.addi %713, %721 : vector<8x1xi32>
    %723 = arith.select %720, %693, %722 : vector<8x1xi1>, vector<8x1xi32>
    %724 = arith.select %720, %713, %694 : vector<8x1xi1>, vector<8x1xi32>
    %725 = arith.subi %709, %708 : vector<8x1xi32>
    %c1_i32_198 = arith.constant 1 : i32
    %726 = vector.broadcast %c1_i32_198 : i32 to vector<8x1xi32>
    %727 = arith.shrsi %725, %726 : vector<8x1xi32>
    %728 = arith.addi %708, %727 : vector<8x1xi32>
    %729 = vector.broadcast %728 : vector<8x1xi32> to vector<8x256xi32>
    %730 = arith.cmpi sle, %23, %729 : vector<8x256xi32>
    %731 = arith.extui %730 : vector<8x256xi1> to vector<8x256xi32>
    %cst_199 = arith.constant dense<0> : vector<8xi32>
    %732 = vector.multi_reduction <add>, %731, %cst_199 [1] : vector<8x256xi32> to vector<8xi32>
    %733 = vector.shape_cast %732 : vector<8xi32> to vector<8x1xi32>
    %c128_i32_200 = arith.constant 128 : i32
    %734 = vector.broadcast %c128_i32_200 : i32 to vector<8x1xi32>
    %735 = arith.cmpi sge, %733, %734 : vector<8x1xi32>
    %c1_i32_201 = arith.constant 1 : i32
    %736 = vector.broadcast %c1_i32_201 : i32 to vector<8x1xi32>
    %737 = arith.addi %728, %736 : vector<8x1xi32>
    %738 = arith.select %735, %708, %737 : vector<8x1xi1>, vector<8x1xi32>
    %739 = arith.select %735, %728, %709 : vector<8x1xi1>, vector<8x1xi32>
    %740 = arith.subi %724, %723 : vector<8x1xi32>
    %c1_i32_202 = arith.constant 1 : i32
    %741 = vector.broadcast %c1_i32_202 : i32 to vector<8x1xi32>
    %742 = arith.shrsi %740, %741 : vector<8x1xi32>
    %743 = arith.addi %723, %742 : vector<8x1xi32>
    %744 = vector.broadcast %743 : vector<8x1xi32> to vector<8x256xi32>
    %745 = arith.cmpi sle, %16, %744 : vector<8x256xi32>
    %746 = arith.extui %745 : vector<8x256xi1> to vector<8x256xi32>
    %cst_203 = arith.constant dense<0> : vector<8xi32>
    %747 = vector.multi_reduction <add>, %746, %cst_203 [1] : vector<8x256xi32> to vector<8xi32>
    %748 = vector.shape_cast %747 : vector<8xi32> to vector<8x1xi32>
    %c128_i32_204 = arith.constant 128 : i32
    %749 = vector.broadcast %c128_i32_204 : i32 to vector<8x1xi32>
    %750 = arith.cmpi sge, %748, %749 : vector<8x1xi32>
    %c1_i32_205 = arith.constant 1 : i32
    %751 = vector.broadcast %c1_i32_205 : i32 to vector<8x1xi32>
    %752 = arith.addi %743, %751 : vector<8x1xi32>
    %753 = arith.select %750, %723, %752 : vector<8x1xi1>, vector<8x1xi32>
    %754 = arith.select %750, %743, %724 : vector<8x1xi1>, vector<8x1xi32>
    %755 = arith.subi %739, %738 : vector<8x1xi32>
    %c1_i32_206 = arith.constant 1 : i32
    %756 = vector.broadcast %c1_i32_206 : i32 to vector<8x1xi32>
    %757 = arith.shrsi %755, %756 : vector<8x1xi32>
    %758 = arith.addi %738, %757 : vector<8x1xi32>
    %759 = vector.broadcast %758 : vector<8x1xi32> to vector<8x256xi32>
    %760 = arith.cmpi sle, %23, %759 : vector<8x256xi32>
    %761 = arith.extui %760 : vector<8x256xi1> to vector<8x256xi32>
    %cst_207 = arith.constant dense<0> : vector<8xi32>
    %762 = vector.multi_reduction <add>, %761, %cst_207 [1] : vector<8x256xi32> to vector<8xi32>
    %763 = vector.shape_cast %762 : vector<8xi32> to vector<8x1xi32>
    %c128_i32_208 = arith.constant 128 : i32
    %764 = vector.broadcast %c128_i32_208 : i32 to vector<8x1xi32>
    %765 = arith.cmpi sge, %763, %764 : vector<8x1xi32>
    %c1_i32_209 = arith.constant 1 : i32
    %766 = vector.broadcast %c1_i32_209 : i32 to vector<8x1xi32>
    %767 = arith.addi %758, %766 : vector<8x1xi32>
    %768 = arith.select %765, %738, %767 : vector<8x1xi1>, vector<8x1xi32>
    %769 = arith.select %765, %758, %739 : vector<8x1xi1>, vector<8x1xi32>
    %770 = arith.subi %754, %753 : vector<8x1xi32>
    %c1_i32_210 = arith.constant 1 : i32
    %771 = vector.broadcast %c1_i32_210 : i32 to vector<8x1xi32>
    %772 = arith.shrsi %770, %771 : vector<8x1xi32>
    %773 = arith.addi %753, %772 : vector<8x1xi32>
    %774 = vector.broadcast %773 : vector<8x1xi32> to vector<8x256xi32>
    %775 = arith.cmpi sle, %16, %774 : vector<8x256xi32>
    %776 = arith.extui %775 : vector<8x256xi1> to vector<8x256xi32>
    %cst_211 = arith.constant dense<0> : vector<8xi32>
    %777 = vector.multi_reduction <add>, %776, %cst_211 [1] : vector<8x256xi32> to vector<8xi32>
    %778 = vector.shape_cast %777 : vector<8xi32> to vector<8x1xi32>
    %c128_i32_212 = arith.constant 128 : i32
    %779 = vector.broadcast %c128_i32_212 : i32 to vector<8x1xi32>
    %780 = arith.cmpi sge, %778, %779 : vector<8x1xi32>
    %c1_i32_213 = arith.constant 1 : i32
    %781 = vector.broadcast %c1_i32_213 : i32 to vector<8x1xi32>
    %782 = arith.addi %773, %781 : vector<8x1xi32>
    %783 = arith.select %780, %753, %782 : vector<8x1xi1>, vector<8x1xi32>
    %784 = arith.select %780, %773, %754 : vector<8x1xi1>, vector<8x1xi32>
    %785 = arith.subi %769, %768 : vector<8x1xi32>
    %c1_i32_214 = arith.constant 1 : i32
    %786 = vector.broadcast %c1_i32_214 : i32 to vector<8x1xi32>
    %787 = arith.shrsi %785, %786 : vector<8x1xi32>
    %788 = arith.addi %768, %787 : vector<8x1xi32>
    %789 = vector.broadcast %788 : vector<8x1xi32> to vector<8x256xi32>
    %790 = arith.cmpi sle, %23, %789 : vector<8x256xi32>
    %791 = arith.extui %790 : vector<8x256xi1> to vector<8x256xi32>
    %cst_215 = arith.constant dense<0> : vector<8xi32>
    %792 = vector.multi_reduction <add>, %791, %cst_215 [1] : vector<8x256xi32> to vector<8xi32>
    %793 = vector.shape_cast %792 : vector<8xi32> to vector<8x1xi32>
    %c128_i32_216 = arith.constant 128 : i32
    %794 = vector.broadcast %c128_i32_216 : i32 to vector<8x1xi32>
    %795 = arith.cmpi sge, %793, %794 : vector<8x1xi32>
    %c1_i32_217 = arith.constant 1 : i32
    %796 = vector.broadcast %c1_i32_217 : i32 to vector<8x1xi32>
    %797 = arith.addi %788, %796 : vector<8x1xi32>
    %798 = arith.select %795, %768, %797 : vector<8x1xi1>, vector<8x1xi32>
    %799 = arith.select %795, %788, %769 : vector<8x1xi1>, vector<8x1xi32>
    %800 = arith.subi %784, %783 : vector<8x1xi32>
    %c1_i32_218 = arith.constant 1 : i32
    %801 = vector.broadcast %c1_i32_218 : i32 to vector<8x1xi32>
    %802 = arith.shrsi %800, %801 : vector<8x1xi32>
    %803 = arith.addi %783, %802 : vector<8x1xi32>
    %804 = vector.broadcast %803 : vector<8x1xi32> to vector<8x256xi32>
    %805 = arith.cmpi sle, %16, %804 : vector<8x256xi32>
    %806 = arith.extui %805 : vector<8x256xi1> to vector<8x256xi32>
    %cst_219 = arith.constant dense<0> : vector<8xi32>
    %807 = vector.multi_reduction <add>, %806, %cst_219 [1] : vector<8x256xi32> to vector<8xi32>
    %808 = vector.shape_cast %807 : vector<8xi32> to vector<8x1xi32>
    %c128_i32_220 = arith.constant 128 : i32
    %809 = vector.broadcast %c128_i32_220 : i32 to vector<8x1xi32>
    %810 = arith.cmpi sge, %808, %809 : vector<8x1xi32>
    %c1_i32_221 = arith.constant 1 : i32
    %811 = vector.broadcast %c1_i32_221 : i32 to vector<8x1xi32>
    %812 = arith.addi %803, %811 : vector<8x1xi32>
    %813 = arith.select %810, %783, %812 : vector<8x1xi1>, vector<8x1xi32>
    %814 = arith.select %810, %803, %784 : vector<8x1xi1>, vector<8x1xi32>
    %815 = arith.subi %799, %798 : vector<8x1xi32>
    %c1_i32_222 = arith.constant 1 : i32
    %816 = vector.broadcast %c1_i32_222 : i32 to vector<8x1xi32>
    %817 = arith.shrsi %815, %816 : vector<8x1xi32>
    %818 = arith.addi %798, %817 : vector<8x1xi32>
    %819 = vector.broadcast %818 : vector<8x1xi32> to vector<8x256xi32>
    %820 = arith.cmpi sle, %23, %819 : vector<8x256xi32>
    %821 = arith.extui %820 : vector<8x256xi1> to vector<8x256xi32>
    %cst_223 = arith.constant dense<0> : vector<8xi32>
    %822 = vector.multi_reduction <add>, %821, %cst_223 [1] : vector<8x256xi32> to vector<8xi32>
    %823 = vector.shape_cast %822 : vector<8xi32> to vector<8x1xi32>
    %c128_i32_224 = arith.constant 128 : i32
    %824 = vector.broadcast %c128_i32_224 : i32 to vector<8x1xi32>
    %825 = arith.cmpi sge, %823, %824 : vector<8x1xi32>
    %c1_i32_225 = arith.constant 1 : i32
    %826 = vector.broadcast %c1_i32_225 : i32 to vector<8x1xi32>
    %827 = arith.addi %818, %826 : vector<8x1xi32>
    %828 = arith.select %825, %798, %827 : vector<8x1xi1>, vector<8x1xi32>
    %829 = arith.select %825, %818, %799 : vector<8x1xi1>, vector<8x1xi32>
    %830 = arith.subi %814, %813 : vector<8x1xi32>
    %c1_i32_226 = arith.constant 1 : i32
    %831 = vector.broadcast %c1_i32_226 : i32 to vector<8x1xi32>
    %832 = arith.shrsi %830, %831 : vector<8x1xi32>
    %833 = arith.addi %813, %832 : vector<8x1xi32>
    %834 = vector.broadcast %833 : vector<8x1xi32> to vector<8x256xi32>
    %835 = arith.cmpi sle, %16, %834 : vector<8x256xi32>
    %836 = arith.extui %835 : vector<8x256xi1> to vector<8x256xi32>
    %cst_227 = arith.constant dense<0> : vector<8xi32>
    %837 = vector.multi_reduction <add>, %836, %cst_227 [1] : vector<8x256xi32> to vector<8xi32>
    %838 = vector.shape_cast %837 : vector<8xi32> to vector<8x1xi32>
    %c128_i32_228 = arith.constant 128 : i32
    %839 = vector.broadcast %c128_i32_228 : i32 to vector<8x1xi32>
    %840 = arith.cmpi sge, %838, %839 : vector<8x1xi32>
    %c1_i32_229 = arith.constant 1 : i32
    %841 = vector.broadcast %c1_i32_229 : i32 to vector<8x1xi32>
    %842 = arith.addi %833, %841 : vector<8x1xi32>
    %843 = arith.select %840, %813, %842 : vector<8x1xi1>, vector<8x1xi32>
    %844 = arith.select %840, %833, %814 : vector<8x1xi1>, vector<8x1xi32>
    %845 = arith.subi %829, %828 : vector<8x1xi32>
    %c1_i32_230 = arith.constant 1 : i32
    %846 = vector.broadcast %c1_i32_230 : i32 to vector<8x1xi32>
    %847 = arith.shrsi %845, %846 : vector<8x1xi32>
    %848 = arith.addi %828, %847 : vector<8x1xi32>
    %849 = vector.broadcast %848 : vector<8x1xi32> to vector<8x256xi32>
    %850 = arith.cmpi sle, %23, %849 : vector<8x256xi32>
    %851 = arith.extui %850 : vector<8x256xi1> to vector<8x256xi32>
    %cst_231 = arith.constant dense<0> : vector<8xi32>
    %852 = vector.multi_reduction <add>, %851, %cst_231 [1] : vector<8x256xi32> to vector<8xi32>
    %853 = vector.shape_cast %852 : vector<8xi32> to vector<8x1xi32>
    %c128_i32_232 = arith.constant 128 : i32
    %854 = vector.broadcast %c128_i32_232 : i32 to vector<8x1xi32>
    %855 = arith.cmpi sge, %853, %854 : vector<8x1xi32>
    %c1_i32_233 = arith.constant 1 : i32
    %856 = vector.broadcast %c1_i32_233 : i32 to vector<8x1xi32>
    %857 = arith.addi %848, %856 : vector<8x1xi32>
    %858 = arith.select %855, %828, %857 : vector<8x1xi1>, vector<8x1xi32>
    %859 = arith.select %855, %848, %829 : vector<8x1xi1>, vector<8x1xi32>
    %860 = arith.subi %844, %843 : vector<8x1xi32>
    %c1_i32_234 = arith.constant 1 : i32
    %861 = vector.broadcast %c1_i32_234 : i32 to vector<8x1xi32>
    %862 = arith.shrsi %860, %861 : vector<8x1xi32>
    %863 = arith.addi %843, %862 : vector<8x1xi32>
    %864 = vector.broadcast %863 : vector<8x1xi32> to vector<8x256xi32>
    %865 = arith.cmpi sle, %16, %864 : vector<8x256xi32>
    %866 = arith.extui %865 : vector<8x256xi1> to vector<8x256xi32>
    %cst_235 = arith.constant dense<0> : vector<8xi32>
    %867 = vector.multi_reduction <add>, %866, %cst_235 [1] : vector<8x256xi32> to vector<8xi32>
    %868 = vector.shape_cast %867 : vector<8xi32> to vector<8x1xi32>
    %c128_i32_236 = arith.constant 128 : i32
    %869 = vector.broadcast %c128_i32_236 : i32 to vector<8x1xi32>
    %870 = arith.cmpi sge, %868, %869 : vector<8x1xi32>
    %c1_i32_237 = arith.constant 1 : i32
    %871 = vector.broadcast %c1_i32_237 : i32 to vector<8x1xi32>
    %872 = arith.addi %863, %871 : vector<8x1xi32>
    %873 = arith.select %870, %843, %872 : vector<8x1xi1>, vector<8x1xi32>
    %874 = arith.select %870, %863, %844 : vector<8x1xi1>, vector<8x1xi32>
    %875 = arith.subi %859, %858 : vector<8x1xi32>
    %c1_i32_238 = arith.constant 1 : i32
    %876 = vector.broadcast %c1_i32_238 : i32 to vector<8x1xi32>
    %877 = arith.shrsi %875, %876 : vector<8x1xi32>
    %878 = arith.addi %858, %877 : vector<8x1xi32>
    %879 = vector.broadcast %878 : vector<8x1xi32> to vector<8x256xi32>
    %880 = arith.cmpi sle, %23, %879 : vector<8x256xi32>
    %881 = arith.extui %880 : vector<8x256xi1> to vector<8x256xi32>
    %cst_239 = arith.constant dense<0> : vector<8xi32>
    %882 = vector.multi_reduction <add>, %881, %cst_239 [1] : vector<8x256xi32> to vector<8xi32>
    %883 = vector.shape_cast %882 : vector<8xi32> to vector<8x1xi32>
    %c128_i32_240 = arith.constant 128 : i32
    %884 = vector.broadcast %c128_i32_240 : i32 to vector<8x1xi32>
    %885 = arith.cmpi sge, %883, %884 : vector<8x1xi32>
    %c1_i32_241 = arith.constant 1 : i32
    %886 = vector.broadcast %c1_i32_241 : i32 to vector<8x1xi32>
    %887 = arith.addi %878, %886 : vector<8x1xi32>
    %888 = arith.select %885, %858, %887 : vector<8x1xi1>, vector<8x1xi32>
    %889 = arith.select %885, %878, %859 : vector<8x1xi1>, vector<8x1xi32>
    %890 = arith.subi %874, %873 : vector<8x1xi32>
    %c1_i32_242 = arith.constant 1 : i32
    %891 = vector.broadcast %c1_i32_242 : i32 to vector<8x1xi32>
    %892 = arith.shrsi %890, %891 : vector<8x1xi32>
    %893 = arith.addi %873, %892 : vector<8x1xi32>
    %894 = vector.broadcast %893 : vector<8x1xi32> to vector<8x256xi32>
    %895 = arith.cmpi sle, %16, %894 : vector<8x256xi32>
    %896 = arith.extui %895 : vector<8x256xi1> to vector<8x256xi32>
    %cst_243 = arith.constant dense<0> : vector<8xi32>
    %897 = vector.multi_reduction <add>, %896, %cst_243 [1] : vector<8x256xi32> to vector<8xi32>
    %898 = vector.shape_cast %897 : vector<8xi32> to vector<8x1xi32>
    %c128_i32_244 = arith.constant 128 : i32
    %899 = vector.broadcast %c128_i32_244 : i32 to vector<8x1xi32>
    %900 = arith.cmpi sge, %898, %899 : vector<8x1xi32>
    %c1_i32_245 = arith.constant 1 : i32
    %901 = vector.broadcast %c1_i32_245 : i32 to vector<8x1xi32>
    %902 = arith.addi %893, %901 : vector<8x1xi32>
    %903 = arith.select %900, %873, %902 : vector<8x1xi1>, vector<8x1xi32>
    %904 = arith.select %900, %893, %874 : vector<8x1xi1>, vector<8x1xi32>
    %905 = arith.subi %889, %888 : vector<8x1xi32>
    %c1_i32_246 = arith.constant 1 : i32
    %906 = vector.broadcast %c1_i32_246 : i32 to vector<8x1xi32>
    %907 = arith.shrsi %905, %906 : vector<8x1xi32>
    %908 = arith.addi %888, %907 : vector<8x1xi32>
    %909 = vector.broadcast %908 : vector<8x1xi32> to vector<8x256xi32>
    %910 = arith.cmpi sle, %23, %909 : vector<8x256xi32>
    %911 = arith.extui %910 : vector<8x256xi1> to vector<8x256xi32>
    %cst_247 = arith.constant dense<0> : vector<8xi32>
    %912 = vector.multi_reduction <add>, %911, %cst_247 [1] : vector<8x256xi32> to vector<8xi32>
    %913 = vector.shape_cast %912 : vector<8xi32> to vector<8x1xi32>
    %c128_i32_248 = arith.constant 128 : i32
    %914 = vector.broadcast %c128_i32_248 : i32 to vector<8x1xi32>
    %915 = arith.cmpi sge, %913, %914 : vector<8x1xi32>
    %c1_i32_249 = arith.constant 1 : i32
    %916 = vector.broadcast %c1_i32_249 : i32 to vector<8x1xi32>
    %917 = arith.addi %908, %916 : vector<8x1xi32>
    %918 = arith.select %915, %888, %917 : vector<8x1xi1>, vector<8x1xi32>
    %919 = arith.select %915, %908, %889 : vector<8x1xi1>, vector<8x1xi32>
    %920 = arith.subi %904, %903 : vector<8x1xi32>
    %c1_i32_250 = arith.constant 1 : i32
    %921 = vector.broadcast %c1_i32_250 : i32 to vector<8x1xi32>
    %922 = arith.shrsi %920, %921 : vector<8x1xi32>
    %923 = arith.addi %903, %922 : vector<8x1xi32>
    %924 = vector.broadcast %923 : vector<8x1xi32> to vector<8x256xi32>
    %925 = arith.cmpi sle, %16, %924 : vector<8x256xi32>
    %926 = arith.extui %925 : vector<8x256xi1> to vector<8x256xi32>
    %cst_251 = arith.constant dense<0> : vector<8xi32>
    %927 = vector.multi_reduction <add>, %926, %cst_251 [1] : vector<8x256xi32> to vector<8xi32>
    %928 = vector.shape_cast %927 : vector<8xi32> to vector<8x1xi32>
    %c128_i32_252 = arith.constant 128 : i32
    %929 = vector.broadcast %c128_i32_252 : i32 to vector<8x1xi32>
    %930 = arith.cmpi sge, %928, %929 : vector<8x1xi32>
    %c1_i32_253 = arith.constant 1 : i32
    %931 = vector.broadcast %c1_i32_253 : i32 to vector<8x1xi32>
    %932 = arith.addi %923, %931 : vector<8x1xi32>
    %933 = arith.select %930, %903, %932 : vector<8x1xi1>, vector<8x1xi32>
    %934 = arith.select %930, %923, %904 : vector<8x1xi1>, vector<8x1xi32>
    %935 = arith.subi %919, %918 : vector<8x1xi32>
    %c1_i32_254 = arith.constant 1 : i32
    %936 = vector.broadcast %c1_i32_254 : i32 to vector<8x1xi32>
    %937 = arith.shrsi %935, %936 : vector<8x1xi32>
    %938 = arith.addi %918, %937 : vector<8x1xi32>
    %939 = vector.broadcast %938 : vector<8x1xi32> to vector<8x256xi32>
    %940 = arith.cmpi sle, %23, %939 : vector<8x256xi32>
    %941 = arith.extui %940 : vector<8x256xi1> to vector<8x256xi32>
    %cst_255 = arith.constant dense<0> : vector<8xi32>
    %942 = vector.multi_reduction <add>, %941, %cst_255 [1] : vector<8x256xi32> to vector<8xi32>
    %943 = vector.shape_cast %942 : vector<8xi32> to vector<8x1xi32>
    %c128_i32_256 = arith.constant 128 : i32
    %944 = vector.broadcast %c128_i32_256 : i32 to vector<8x1xi32>
    %945 = arith.cmpi sge, %943, %944 : vector<8x1xi32>
    %c1_i32_257 = arith.constant 1 : i32
    %946 = vector.broadcast %c1_i32_257 : i32 to vector<8x1xi32>
    %947 = arith.addi %938, %946 : vector<8x1xi32>
    %948 = arith.select %945, %918, %947 : vector<8x1xi1>, vector<8x1xi32>
    %949 = arith.select %945, %938, %919 : vector<8x1xi1>, vector<8x1xi32>
    %950 = arith.subi %934, %933 : vector<8x1xi32>
    %c1_i32_258 = arith.constant 1 : i32
    %951 = vector.broadcast %c1_i32_258 : i32 to vector<8x1xi32>
    %952 = arith.shrsi %950, %951 : vector<8x1xi32>
    %953 = arith.addi %933, %952 : vector<8x1xi32>
    %954 = vector.broadcast %953 : vector<8x1xi32> to vector<8x256xi32>
    %955 = arith.cmpi sle, %16, %954 : vector<8x256xi32>
    %956 = arith.extui %955 : vector<8x256xi1> to vector<8x256xi32>
    %cst_259 = arith.constant dense<0> : vector<8xi32>
    %957 = vector.multi_reduction <add>, %956, %cst_259 [1] : vector<8x256xi32> to vector<8xi32>
    %958 = vector.shape_cast %957 : vector<8xi32> to vector<8x1xi32>
    %c128_i32_260 = arith.constant 128 : i32
    %959 = vector.broadcast %c128_i32_260 : i32 to vector<8x1xi32>
    %960 = arith.cmpi sge, %958, %959 : vector<8x1xi32>
    %c1_i32_261 = arith.constant 1 : i32
    %961 = vector.broadcast %c1_i32_261 : i32 to vector<8x1xi32>
    %962 = arith.addi %953, %961 : vector<8x1xi32>
    %963 = arith.select %960, %933, %962 : vector<8x1xi1>, vector<8x1xi32>
    %964 = arith.subi %949, %948 : vector<8x1xi32>
    %c1_i32_262 = arith.constant 1 : i32
    %965 = vector.broadcast %c1_i32_262 : i32 to vector<8x1xi32>
    %966 = arith.shrsi %964, %965 : vector<8x1xi32>
    %967 = arith.addi %948, %966 : vector<8x1xi32>
    %968 = vector.broadcast %967 : vector<8x1xi32> to vector<8x256xi32>
    %969 = arith.cmpi sle, %23, %968 : vector<8x256xi32>
    %970 = arith.extui %969 : vector<8x256xi1> to vector<8x256xi32>
    %cst_263 = arith.constant dense<0> : vector<8xi32>
    %971 = vector.multi_reduction <add>, %970, %cst_263 [1] : vector<8x256xi32> to vector<8xi32>
    %972 = vector.shape_cast %971 : vector<8xi32> to vector<8x1xi32>
    %c128_i32_264 = arith.constant 128 : i32
    %973 = vector.broadcast %c128_i32_264 : i32 to vector<8x1xi32>
    %974 = arith.cmpi sge, %972, %973 : vector<8x1xi32>
    %c1_i32_265 = arith.constant 1 : i32
    %975 = vector.broadcast %c1_i32_265 : i32 to vector<8x1xi32>
    %976 = arith.addi %967, %975 : vector<8x1xi32>
    %977 = arith.select %974, %948, %976 : vector<8x1xi1>, vector<8x1xi32>
    %c0_i32_266 = arith.constant 0 : i32
    %978 = vector.broadcast %c0_i32_266 : i32 to vector<8x1xi32>
    %979 = arith.cmpi slt, %963, %978 : vector<8x1xi32>
    %c2147483647_i32_267 = arith.constant 2147483647 : i32
    %c0_i32_268 = arith.constant 0 : i32
    %980 = vector.broadcast %c2147483647_i32_267 : i32 to vector<8x1xi32>
    %981 = vector.broadcast %c0_i32_268 : i32 to vector<8x1xi32>
    %982 = arith.select %979, %980, %981 : vector<8x1xi1>, vector<8x1xi32>
    %983 = arith.xori %963, %982 : vector<8x1xi32>
    %984 = tpu.bitcast %983 : vector<8x1xi32> -> vector<8x1xf32>
    %c0_i32_269 = arith.constant 0 : i32
    %985 = vector.broadcast %c0_i32_269 : i32 to vector<8x1xi32>
    %986 = arith.cmpi slt, %977, %985 : vector<8x1xi32>
    %c2147483647_i32_270 = arith.constant 2147483647 : i32
    %c0_i32_271 = arith.constant 0 : i32
    %987 = vector.broadcast %c2147483647_i32_270 : i32 to vector<8x1xi32>
    %988 = vector.broadcast %c0_i32_271 : i32 to vector<8x1xi32>
    %989 = arith.select %986, %987, %988 : vector<8x1xi1>, vector<8x1xi32>
    %990 = arith.xori %977, %989 : vector<8x1xi32>
    %991 = tpu.bitcast %990 : vector<8x1xi32> -> vector<8x1xf32>
    %992 = arith.subf %991, %3 : vector<8x1xf32>
    %993 = arith.mulf %992, %9 : vector<8x1xf32>
    %994 = vector.broadcast %984 : vector<8x1xf32> to vector<8x256xf32>
    %995 = arith.subf %0, %994 : vector<8x256xf32>
    %996 = math.absf %995 : vector<8x256xf32>
    %cst_272 = arith.constant dense<0.000000e+00> : vector<8xf32>
    %997 = vector.multi_reduction <add>, %996, %cst_272 [1] : vector<8x256xf32> to vector<8xf32>
    %998 = vector.shape_cast %997 : vector<8xf32> to vector<8x1xf32>
    %cst_273 = arith.constant 2.560000e+02 : f32
    %999 = vector.broadcast %cst_273 : f32 to vector<8x1xf32>
    %1000 = arith.divf %998, %999 : vector<8x1xf32>
    %cst_274 = arith.constant 9.99999993E-9 : f32
    %1001 = vector.broadcast %cst_274 : f32 to vector<8x1xf32>
    %1002 = arith.addf %1000, %1001 : vector<8x1xf32>
    %1003 = tpu.reciprocal %1002 : vector<8x1xf32> -> vector<8x1xf32>
    %1004 = vector.broadcast %3 : vector<8x1xf32> to vector<8x256xf32>
    %1005 = arith.subf %1, %1004 : vector<8x256xf32>
    %1006 = vector.broadcast %9 : vector<8x1xf32> to vector<8x256xf32>
    %1007 = arith.mulf %1005, %1006 : vector<8x256xf32>
    %1008 = vector.broadcast %993 : vector<8x1xf32> to vector<8x256xf32>
    %1009 = arith.subf %1007, %1008 : vector<8x256xf32>
    %1010 = math.absf %1009 : vector<8x256xf32>
    %cst_275 = arith.constant dense<0.000000e+00> : vector<8xf32>
    %1011 = vector.multi_reduction <add>, %1010, %cst_275 [1] : vector<8x256xf32> to vector<8xf32>
    %1012 = vector.shape_cast %1011 : vector<8xf32> to vector<8x1xf32>
    %cst_276 = arith.constant 2.560000e+02 : f32
    %1013 = vector.broadcast %cst_276 : f32 to vector<8x1xf32>
    %1014 = arith.divf %1012, %1013 : vector<8x1xf32>
    %cst_277 = arith.constant 9.99999993E-9 : f32
    %1015 = vector.broadcast %cst_277 : f32 to vector<8x1xf32>
    %1016 = arith.addf %1014, %1015 : vector<8x1xf32>
    %1017 = tpu.reciprocal %1016 : vector<8x1xf32> -> vector<8x1xf32>
    %1018 = vector.broadcast %984 : vector<8x1xf32> to vector<8x256xf32>
    %1019 = arith.subf %0, %1018 : vector<8x256xf32>
    %1020 = vector.broadcast %1003 : vector<8x1xf32> to vector<8x256xf32>
    %1021 = arith.mulf %1019, %1020 : vector<8x256xf32>
    %1022 = vector.broadcast %993 : vector<8x1xf32> to vector<8x256xf32>
    %1023 = arith.subf %1007, %1022 : vector<8x256xf32>
    %1024 = vector.broadcast %1017 : vector<8x1xf32> to vector<8x256xf32>
    %1025 = arith.mulf %1023, %1024 : vector<8x256xf32>
    %1026 = arith.subf %1021, %1025 : vector<8x256xf32>
    %1027 = math.absf %1026 : vector<8x256xf32>
    %cst_278 = arith.constant dense<0.000000e+00> : vector<8xf32>
    %1028 = vector.multi_reduction <add>, %1027, %cst_278 [1] : vector<8x256xf32> to vector<8xf32>
    %1029 = vector.shape_cast %1028 : vector<8xf32> to vector<8x1xf32>
    %cst_279 = arith.constant 2.560000e+02 : f32
    %1030 = vector.broadcast %cst_279 : f32 to vector<8x1xf32>
    %1031 = arith.divf %1029, %1030 : vector<8x1xf32>
    %c0_280 = arith.constant 0 : index
    %c0_281 = arith.constant 0 : index
    %1032 = vector.load %arg3[%c0_280, %c0_281] : memref<8x1xf32, #tpu.memory_space<vmem>>, vector<8x1xf32>
    tpu.vector_store %arg3[%c0_280, %c0_281], %1031 {strides = array<i32>} : memref<8x1xf32, #tpu.memory_space<vmem>>, vector<8x1xf32>,
    return
  }
  func.func @transform_0(%arg0: i32) -> (i32, i32) {
    %c0_i32 = arith.constant 0 : i32
    %c0_i32_0 = arith.constant 0 : i32
    return %arg0, %c0_i32 : i32, i32
  }
  func.func @transform_1(%arg0: i32) -> (i32, i32) {
    %c0_i32 = arith.constant 0 : i32
    %c0_i32_0 = arith.constant 0 : i32
    return %arg0, %c0_i32 : i32, i32
  }
  func.func @transform_2(%arg0: i32) -> (i32, i32) {
    %c0_i32 = arith.constant 0 : i32
    %c0_i32_0 = arith.constant 0 : i32
    return %arg0, %c0_i32 : i32, i32
  }
}

</mosaic_0001>

<llo_original>
// kernel: loss_teacher.1
$region0: #{loss_teacher.1}
  #allocation0 [shape = 'u32[]', space=smem, size = 0x4, offset = 0x4, fixed_abs, tag = 'smem constant byte address 0x4 - core index']
  #allocation1 [shape = 'u32[144,128]{1,0:T(1,128)}', space=vmem, size = 0x12000, scoped, tag = 'internal scratch']
  %s0 = inlined_call_operand.hbm [shape: f32[8,256], index: 0, kind: input, shape index: {}]
  %s1 = inlined_call_operand.hbm [shape: f32[8,256], index: 1, kind: input, shape index: {}]
  %s2 = inlined_call_operand.hbm [shape: f32[8,1], index: 2, kind: output, shape index: {}]
  %s3 = sld [smem:[#allocation0]]
  $region26: #{loss_teacher.1} parent=0
    _
  %s5 = ssub.s32 1, %s3
  %s6 = scalar_select 0, %s5, %s3
  $region1: #{loss_teacher.1} parent=0
    #allocation2 [shape = 'u8[8192]{0}', space=vmem, size = 0x2000, scoped, tag = 'input window, operand 0, single buffered']
    #allocation3 [shape = 's32[1]{0}', space=sflag, size = 0x4, scoped, tag = 'scoped memory for loss_teacher.1']
    #allocation4 [shape = 's32[1]{0}', space=sflag, size = 0x4, scoped, tag = 'scoped memory for loss_teacher.1']
    #allocation5 [shape = 'u8[8192]{0}', space=vmem, size = 0x2000, scoped, tag = 'input window, operand 1, single buffered']
    #allocation6 [shape = 's32[1]{0}', space=sflag, size = 0x4, scoped, tag = 'scoped memory for loss_teacher.1']
    #allocation7 [shape = 'u8[4096]{0}', space=vmem, size = 0x1000, scoped, tag = 'output window, operand 0, single buffered']
    %7 = vsyncpa [#allocation3], 0
    %8 = vsyncpa [#allocation6], 0
    %9 = vsyncpa [#allocation4], 0
    // Predicated region
    $region2: #{loss_teacher.1} parent=1 // pred_check
      _
    $region3: #{loss_teacher.1} parent=1 // pred_check_branch
      %11 = sbr.rel (0) target = $region5
    $region4: #{loss_teacher.1} parent=1 // pred_region
      %s13 = ssub.s32 256, 256
      %14 = vsyncadd [#allocation3], %s13
      %s16 = sshll.u32 [#allocation2], 4
      %s17 = int_to_ptr.vmem [resolvable:$true] %s16
      %19 = dma.hbm_to_vmem [thread:$0]  %s0, 256, %s17, [#allocation3]
    $region5: #{loss_teacher.1} parent=1 // pred_fallthru
      _
    // Predicated region
    $region6: #{loss_teacher.1} parent=1 // pred_check
      _
    $region7: #{loss_teacher.1} parent=1 // pred_check_branch
      %21 = sbr.rel (0) target = $region9
    $region8: #{loss_teacher.1} parent=1 // pred_region
      %s23 = ssub.s32 256, 256
      %24 = vsyncadd [#allocation6], %s23
      %s26 = sshll.u32 [#allocation5], 4
      %s27 = int_to_ptr.vmem [resolvable:$true] %s26
      %29 = dma.hbm_to_vmem [thread:$0]  %s1, 256, %s27, [#allocation6]
    $region9: #{loss_teacher.1} parent=1 // pred_fallthru
      _
    // Predicated region
    $region10: #{loss_teacher.1} parent=1 // pred_check
      _
    $region11: #{loss_teacher.1} parent=1 // pred_check_branch
      %31 = sbr.rel (0) target = $region13
    $region12: #{loss_teacher.1} parent=1 // pred_region
      %32 = dma.done [#allocation3], 256
    $region13: #{loss_teacher.1} parent=1 // pred_fallthru
      _
    // Predicated region
    $region14: #{loss_teacher.1} parent=1 // pred_check
      _
    $region15: #{loss_teacher.1} parent=1 // pred_check_branch
      %34 = sbr.rel (0) target = $region17
    $region16: #{loss_teacher.1} parent=1 // pred_region
      %35 = dma.done [#allocation6], 256
    $region17: #{loss_teacher.1} parent=1 // pred_fallthru
      _
    %v36 = vld [vmem:[#allocation2] sm:$0xff]
    %v37 = vld [vmem:[#allocation2 + $0x8] sm:$0xff]
    %v38 = vld [vmem:[#allocation5] sm:$0xff]
    %v39 = vld [vmem:[#allocation5 + $0x8] sm:$0xff]
    %v40 = vmin.f32 %v38, %v39
    %41 = vmin.xlane.f32.xlu0 %v40
    %v42 = vpop.xlane.xlu0 %41
    %v43 = vmax.f32 %v38, %v39
    %44 = vmax.xlane.f32.xlu0 %v43
    %v45 = vpop.xlane.xlu0 %44
    %v46 = vsub.f32 %v45, %v42
    %v47 = vadd.f32 %v46, 1e-08
    %v48 = vrcp.pop %v47
    %vm51 = vcmp.lt.s32.totalorder %v36, 0
    %vm52 = vcmp.lt.s32.totalorder %v37, 0
    %v53 = vsel %vm51, 2147483647, 0
    %v54 = vsel %vm52, 2147483647, 0
    %v55 = vxor.u32 %v36, %v53
    %v56 = vxor.u32 %v37, %v54
    %vm59 = vcmp.lt.s32.totalorder %v38, 0
    %vm60 = vcmp.lt.s32.totalorder %v39, 0
    %v61 = vsel %vm59, 2147483647, 0
    %v62 = vsel %vm60, 2147483647, 0
    %v63 = vxor.u32 %v38, %v61
    %v64 = vxor.u32 %v39, %v62
    %vm65 = vcmp.lt.s32.totalorder %v55, 0
    %vm66 = vcmp.lt.s32.totalorder %v56, 0
    %v67 = vsel %vm65, 1, 0
    %v68 = vsel %vm66, 1, 0
    %v69 = vadd.s32 %v67, %v68
    %v70 = vand.u32 %v69, 65535
    %v71 = vshrl.u32 %v69, 16
    %v72 = vcvt.s32.f32 %v70
    %v73 = vcvt.s32.f32 %v71
    %74 = vadd.xlane.f32.xlu0 %v72
    %v75 = vpop.xlane.xlu0 %74
    %76 = vadd.xlane.f32.xlu0 %v73
    %v77 = vpop.xlane.xlu0 %76
    %v78 = vcvt.f32.s32 %v75
    %v79 = vcvt.f32.s32 %v77
    %v80 = vshll.u32 %v79, 16
    %v81 = vadd.s32 %v80, %v78
    %vm82 = vcmp.gt.s32.totalorder %v81, 127
    %v83 = vsel %vm82, 2147483648, 0
    %v84 = vsel %vm82, 4294967295, 2147483647
    %vm85 = vcmp.lt.s32.totalorder %v63, 0
    %vm86 = vcmp.lt.s32.totalorder %v64, 0
    %v87 = vsel %vm85, 1, 0
    %v88 = vsel %vm86, 1, 0
    %v89 = vadd.s32 %v87, %v88
    %v90 = vand.u32 %v89, 65535
    %v91 = vshrl.u32 %v89, 16
    %v92 = vcvt.s32.f32 %v90
    %v93 = vcvt.s32.f32 %v91
    %94 = vadd.xlane.f32.xlu0 %v92
    %v95 = vpop.xlane.xlu0 %94
    %96 = vadd.xlane.f32.xlu0 %v93
    %v97 = vpop.xlane.xlu0 %96
    %v98 = vcvt.f32.s32 %v95
    %v99 = vcvt.f32.s32 %v97
    %v100 = vshll.u32 %v99, 16
    %v101 = vadd.s32 %v100, %v98
    %vm102 = vcmp.gt.s32.totalorder %v101, 127
    %v103 = vsel %vm102, 2147483648, 0
    %v104 = vsel %vm102, 4294967295, 2147483647
    %v105 = vsub.s32 %v84, %v83
    %v106 = vshra.s32 %v105, 1
    %v107 = vadd.s32 %v83, %v106
    %vm108 = vcmp.le.s32.totalorder %v55, %v107
    %vm109 = vcmp.le.s32.totalorder %v56, %v107
    %v110 = vsel %vm108, 1, 0
    %v111 = vsel %vm109, 1, 0
    %v112 = vadd.s32 %v110, %v111
    %v113 = vand.u32 %v112, 65535
    %v114 = vshrl.u32 %v112, 16
    %v115 = vcvt.s32.f32 %v113
    %v116 = vcvt.s32.f32 %v114
    %117 = vadd.xlane.f32.xlu0 %v115
    %v118 = vpop.xlane.xlu0 %117
    %119 = vadd.xlane.f32.xlu0 %v116
    %v120 = vpop.xlane.xlu0 %119
    %v121 = vcvt.f32.s32 %v118
    %v122 = vcvt.f32.s32 %v120
    %v123 = vshll.u32 %v122, 16
    %v124 = vadd.s32 %v123, %v121
    %vm125 = vcmp.ge.s32.totalorder %v124, 128
    %v126 = vadd.s32 %v107, 1
    %v127 = vsel %vm125, %v83, %v126
    %v128 = vsel %vm125, %v107, %v84
    %v129 = vsub.s32 %v104, %v103
    %v130 = vshra.s32 %v129, 1
    %v131 = vadd.s32 %v103, %v130
    %vm132 = vcmp.le.s32.totalorder %v63, %v131
    %vm133 = vcmp.le.s32.totalorder %v64, %v131
    %v134 = vsel %vm132, 1, 0
    %v135 = vsel %vm133, 1, 0
    %v136 = vadd.s32 %v134, %v135
    %v137 = vand.u32 %v136, 65535
    %v138 = vshrl.u32 %v136, 16
    %v139 = vcvt.s32.f32 %v137
    %v140 = vcvt.s32.f32 %v138
    %141 = vadd.xlane.f32.xlu0 %v139
    %v142 = vpop.xlane.xlu0 %141
    %143 = vadd.xlane.f32.xlu0 %v140
    %v144 = vpop.xlane.xlu0 %143
    %v145 = vcvt.f32.s32 %v142
    %v146 = vcvt.f32.s32 %v144
    %v147 = vshll.u32 %v146, 16
    %v148 = vadd.s32 %v147, %v145
    %vm149 = vcmp.ge.s32.totalorder %v148, 128
    %v150 = vadd.s32 %v131, 1
    %v151 = vsel %vm149, %v103, %v150
    %v152 = vsel %vm149, %v131, %v104
    %v153 = vsub.s32 %v128, %v127
    %v154 = vshra.s32 %v153, 1
    %v155 = vadd.s32 %v127, %v154
    %vm156 = vcmp.le.s32.totalorder %v55, %v155
    %vm157 = vcmp.le.s32.totalorder %v56, %v155
    %v158 = vsel %vm156, 1, 0
    %v159 = vsel %vm157, 1, 0
    %v160 = vadd.s32 %v158, %v159
    %v161 = vand.u32 %v160, 65535
    %v162 = vshrl.u32 %v160, 16
    %v163 = vcvt.s32.f32 %v161
    %v164 = vcvt.s32.f32 %v162
    %165 = vadd.xlane.f32.xlu0 %v163
    %v166 = vpop.xlane.xlu0 %165
    %167 = vadd.xlane.f32.xlu0 %v164
    %v168 = vpop.xlane.xlu0 %167
    %v169 = vcvt.f32.s32 %v166
    %v170 = vcvt.f32.s32 %v168
    %v171 = vshll.u32 %v170, 16
    %v172 = vadd.s32 %v171, %v169
    %vm173 = vcmp.ge.s32.totalorder %v172, 128
    %v174 = vadd.s32 %v155, 1
    %v175 = vsel %vm173, %v127, %v174
    %v176 = vsel %vm173, %v155, %v128
    %v177 = vsub.s32 %v152, %v151
    %v178 = vshra.s32 %v177, 1
    %v179 = vadd.s32 %v151, %v178
    %vm180 = vcmp.le.s32.totalorder %v63, %v179
    %vm181 = vcmp.le.s32.totalorder %v64, %v179
    %v182 = vsel %vm180, 1, 0
    %v183 = vsel %vm181, 1, 0
    %v184 = vadd.s32 %v182, %v183
    %v185 = vand.u32 %v184, 65535
    %v186 = vshrl.u32 %v184, 16
    %v187 = vcvt.s32.f32 %v185
    %v188 = vcvt.s32.f32 %v186
    %189 = vadd.xlane.f32.xlu0 %v187
    %v190 = vpop.xlane.xlu0 %189
    %191 = vadd.xlane.f32.xlu0 %v188
    %v192 = vpop.xlane.xlu0 %191
    %v193 = vcvt.f32.s32 %v190
    %v194 = vcvt.f32.s32 %v192
    %v195 = vshll.u32 %v194, 16
    %v196 = vadd.s32 %v195, %v193
    %vm197 = vcmp.ge.s32.totalorder %v196, 128
    %v198 = vadd.s32 %v179, 1
    %v199 = vsel %vm197, %v151, %v198
    %v200 = vsel %vm197, %v179, %v152
    %v201 = vsub.s32 %v176, %v175
    %v202 = vshra.s32 %v201, 1
    %v203 = vadd.s32 %v175, %v202
    %vm204 = vcmp.le.s32.totalorder %v55, %v203
    %vm205 = vcmp.le.s32.totalorder %v56, %v203
    %v206 = vsel %vm204, 1, 0
    %v207 = vsel %vm205, 1, 0
    %v208 = vadd.s32 %v206, %v207
    %v209 = vand.u32 %v208, 65535
    %v210 = vshrl.u32 %v208, 16
    %v211 = vcvt.s32.f32 %v209
    %v212 = vcvt.s32.f32 %v210
    %213 = vadd.xlane.f32.xlu0 %v211
    %v214 = vpop.xlane.xlu0 %213
    %215 = vadd.xlane.f32.xlu0 %v212
    %v216 = vpop.xlane.xlu0 %215
    %v217 = vcvt.f32.s32 %v214
    %v218 = vcvt.f32.s32 %v216
    %v219 = vshll.u32 %v218, 16
    %v220 = vadd.s32 %v219, %v217
    %vm221 = vcmp.ge.s32.totalorder %v220, 128
    %v222 = vadd.s32 %v203, 1
    %v223 = vsel %vm221, %v175, %v222
    %v224 = vsel %vm221, %v203, %v176
    %v225 = vsub.s32 %v200, %v199
    %v226 = vshra.s32 %v225, 1
    %v227 = vadd.s32 %v199, %v226
    %vm228 = vcmp.le.s32.totalorder %v63, %v227
    %vm229 = vcmp.le.s32.totalorder %v64, %v227
    %v230 = vsel %vm228, 1, 0
    %v231 = vsel %vm229, 1, 0
    %v232 = vadd.s32 %v230, %v231
    %v233 = vand.u32 %v232, 65535
    %v234 = vshrl.u32 %v232, 16
    %v235 = vcvt.s32.f32 %v233
    %v236 = vcvt.s32.f32 %v234
    %237 = vadd.xlane.f32.xlu0 %v235
    %v238 = vpop.xlane.xlu0 %237
    %239 = vadd.xlane.f32.xlu0 %v236
    %v240 = vpop.xlane.xlu0 %239
    %v241 = vcvt.f32.s32 %v238
    %v242 = vcvt.f32.s32 %v240
    %v243 = vshll.u32 %v242, 16
    %v244 = vadd.s32 %v243, %v241
    %vm245 = vcmp.ge.s32.totalorder %v244, 128
    %v246 = vadd.s32 %v227, 1
    %v247 = vsel %vm245, %v199, %v246
    %v248 = vsel %vm245, %v227, %v200
    %v249 = vsub.s32 %v224, %v223
    %v250 = vshra.s32 %v249, 1
    %v251 = vadd.s32 %v223, %v250
    %vm252 = vcmp.le.s32.totalorder %v55, %v251
    %vm253 = vcmp.le.s32.totalorder %v56, %v251
    %v254 = vsel %vm252, 1, 0
    %v255 = vsel %vm253, 1, 0
    %v256 = vadd.s32 %v254, %v255
    %v257 = vand.u32 %v256, 65535
    %v258 = vshrl.u32 %v256, 16
    %v259 = vcvt.s32.f32 %v257
    %v260 = vcvt.s32.f32 %v258
    %261 = vadd.xlane.f32.xlu0 %v259
    %v262 = vpop.xlane.xlu0 %261
    %263 = vadd.xlane.f32.xlu0 %v260
    %v264 = vpop.xlane.xlu0 %263
    %v265 = vcvt.f32.s32 %v262
    %v266 = vcvt.f32.s32 %v264
    %v267 = vshll.u32 %v266, 16
    %v268 = vadd.s32 %v267, %v265
    %vm269 = vcmp.ge.s32.totalorder %v268, 128
    %v270 = vadd.s32 %v251, 1
    %v271 = vsel %vm269, %v223, %v270
    %v272 = vsel %vm269, %v251, %v224
    %v273 = vsub.s32 %v248, %v247
    %v274 = vshra.s32 %v273, 1
    %v275 = vadd.s32 %v247, %v274
    %vm276 = vcmp.le.s32.totalorder %v63, %v275
    %vm277 = vcmp.le.s32.totalorder %v64, %v275
    %v278 = vsel %vm276, 1, 0
    %v279 = vsel %vm277, 1, 0
    %v280 = vadd.s32 %v278, %v279
    %v281 = vand.u32 %v280, 65535
    %v282 = vshrl.u32 %v280, 16
    %v283 = vcvt.s32.f32 %v281
    %v284 = vcvt.s32.f32 %v282
    %285 = vadd.xlane.f32.xlu0 %v283
    %v286 = vpop.xlane.xlu0 %285
    %287 = vadd.xlane.f32.xlu0 %v284
    %v288 = vpop.xlane.xlu0 %287
    %v289 = vcvt.f32.s32 %v286
    %v290 = vcvt.f32.s32 %v288
    %v291 = vshll.u32 %v290, 16
    %v292 = vadd.s32 %v291, %v289
    %vm293 = vcmp.ge.s32.totalorder %v292, 128
    %v294 = vadd.s32 %v275, 1
    %v295 = vsel %vm293, %v247, %v294
    %v296 = vsel %vm293, %v275, %v248
    %v297 = vsub.s32 %v272, %v271
    %v298 = vshra.s32 %v297, 1
    %v299 = vadd.s32 %v271, %v298
    %vm300 = vcmp.le.s32.totalorder %v55, %v299
    %vm301 = vcmp.le.s32.totalorder %v56, %v299
    %v302 = vsel %vm300, 1, 0
    %v303 = vsel %vm301, 1, 0
    %v304 = vadd.s32 %v302, %v303
    %v305 = vand.u32 %v304, 65535
    %v306 = vshrl.u32 %v304, 16
    %v307 = vcvt.s32.f32 %v305
    %v308 = vcvt.s32.f32 %v306
    %309 = vadd.xlane.f32.xlu0 %v307
    %v310 = vpop.xlane.xlu0 %309
    %311 = vadd.xlane.f32.xlu0 %v308
    %v312 = vpop.xlane.xlu0 %311
    %v313 = vcvt.f32.s32 %v310
    %v314 = vcvt.f32.s32 %v312
    %v315 = vshll.u32 %v314, 16
    %v316 = vadd.s32 %v315, %v313
    %vm317 = vcmp.ge.s32.totalorder %v316, 128
    %v318 = vadd.s32 %v299, 1
    %v319 = vsel %vm317, %v271, %v318
    %v320 = vsel %vm317, %v299, %v272
    %v321 = vsub.s32 %v296, %v295
    %v322 = vshra.s32 %v321, 1
    %v323 = vadd.s32 %v295, %v322
    %vm324 = vcmp.le.s32.totalorder %v63, %v323
    %vm325 = vcmp.le.s32.totalorder %v64, %v323
    %v326 = vsel %vm324, 1, 0
    %v327 = vsel %vm325, 1, 0
    %v328 = vadd.s32 %v326, %v327
    %v329 = vand.u32 %v328, 65535
    %v330 = vshrl.u32 %v328, 16
    %v331 = vcvt.s32.f32 %v329
    %v332 = vcvt.s32.f32 %v330
    %333 = vadd.xlane.f32.xlu0 %v331
    %v334 = vpop.xlane.xlu0 %333
    %335 = vadd.xlane.f32.xlu0 %v332
    %v336 = vpop.xlane.xlu0 %335
    %v337 = vcvt.f32.s32 %v334
    %v338 = vcvt.f32.s32 %v336
    %v339 = vshll.u32 %v338, 16
    %v340 = vadd.s32 %v339, %v337
    %vm341 = vcmp.ge.s32.totalorder %v340, 128
    %v342 = vadd.s32 %v323, 1
    %v343 = vsel %vm341, %v295, %v342
    %v344 = vsel %vm341, %v323, %v296
    %v345 = vsub.s32 %v320, %v319
    %v346 = vshra.s32 %v345, 1
    %v347 = vadd.s32 %v319, %v346
    %vm348 = vcmp.le.s32.totalorder %v55, %v347
    %vm349 = vcmp.le.s32.totalorder %v56, %v347
    %v350 = vsel %vm348, 1, 0
    %v351 = vsel %vm349, 1, 0
    %v352 = vadd.s32 %v350, %v351
    %v353 = vand.u32 %v352, 65535
    %v354 = vshrl.u32 %v352, 16
    %v355 = vcvt.s32.f32 %v353
    %v356 = vcvt.s32.f32 %v354
    %357 = vadd.xlane.f32.xlu0 %v355
    %v358 = vpop.xlane.xlu0 %357
    %359 = vadd.xlane.f32.xlu0 %v356
    %v360 = vpop.xlane.xlu0 %359
    %v361 = vcvt.f32.s32 %v358
    %v362 = vcvt.f32.s32 %v360
    %v363 = vshll.u32 %v362, 16
    %v364 = vadd.s32 %v363, %v361
    %vm365 = vcmp.ge.s32.totalorder %v364, 128
    %v366 = vadd.s32 %v347, 1
    %v367 = vsel %vm365, %v319, %v366
    %v368 = vsel %vm365, %v347, %v320
    %v369 = vsub.s32 %v344, %v343
    %v370 = vshra.s32 %v369, 1
    %v371 = vadd.s32 %v343, %v370
    %vm372 = vcmp.le.s32.totalorder %v63, %v371
    %vm373 = vcmp.le.s32.totalorder %v64, %v371
    %v374 = vsel %vm372, 1, 0
    %v375 = vsel %vm373, 1, 0
    %v376 = vadd.s32 %v374, %v375
    %v377 = vand.u32 %v376, 65535
    %v378 = vshrl.u32 %v376, 16
    %v379 = vcvt.s32.f32 %v377
    %v380 = vcvt.s32.f32 %v378
    %381 = vadd.xlane.f32.xlu0 %v379
    %v382 = vpop.xlane.xlu0 %381
    %383 = vadd.xlane.f32.xlu0 %v380
    %v384 = vpop.xlane.xlu0 %383
    %v385 = vcvt.f32.s32 %v382
    %v386 = vcvt.f32.s32 %v384
    %v387 = vshll.u32 %v386, 16
    %v388 = vadd.s32 %v387, %v385
    %vm389 = vcmp.ge.s32.totalorder %v388, 128
    %v390 = vadd.s32 %v371, 1
    %v391 = vsel %vm389, %v343, %v390
    %v392 = vsel %vm389, %v371, %v344
    %v393 = vsub.s32 %v368, %v367
    %v394 = vshra.s32 %v393, 1
    %v395 = vadd.s32 %v367, %v394
    %vm396 = vcmp.le.s32.totalorder %v55, %v395
    %vm397 = vcmp.le.s32.totalorder %v56, %v395
    %v398 = vsel %vm396, 1, 0
    %v399 = vsel %vm397, 1, 0
    %v400 = vadd.s32 %v398, %v399
    %v401 = vand.u32 %v400, 65535
    %v402 = vshrl.u32 %v400, 16
    %v403 = vcvt.s32.f32 %v401
    %v404 = vcvt.s32.f32 %v402
    %405 = vadd.xlane.f32.xlu0 %v403
    %v406 = vpop.xlane.xlu0 %405
    %407 = vadd.xlane.f32.xlu0 %v404
    %v408 = vpop.xlane.xlu0 %407
    %v409 = vcvt.f32.s32 %v406
    %v410 = vcvt.f32.s32 %v408
    %v411 = vshll.u32 %v410, 16
    %v412 = vadd.s32 %v411, %v409
    %vm413 = vcmp.ge.s32.totalorder %v412, 128
    %v414 = vadd.s32 %v395, 1
    %v415 = vsel %vm413, %v367, %v414
    %v416 = vsel %vm413, %v395, %v368
    %v417 = vsub.s32 %v392, %v391
    %v418 = vshra.s32 %v417, 1
    %v419 = vadd.s32 %v391, %v418
    %vm420 = vcmp.le.s32.totalorder %v63, %v419
    %vm421 = vcmp.le.s32.totalorder %v64, %v419
    %v422 = vsel %vm420, 1, 0
    %v423 = vsel %vm421, 1, 0
    %v424 = vadd.s32 %v422, %v423
    %v425 = vand.u32 %v424, 65535
    %v426 = vshrl.u32 %v424, 16
    %v427 = vcvt.s32.f32 %v425
    %v428 = vcvt.s32.f32 %v426
    %429 = vadd.xlane.f32.xlu0 %v427
    %v430 = vpop.xlane.xlu0 %429
    %431 = vadd.xlane.f32.xlu0 %v428
    %v432 = vpop.xlane.xlu0 %431
    %v433 = vcvt.f32.s32 %v430
    %v434 = vcvt.f32.s32 %v432
    %v435 = vshll.u32 %v434, 16
    %v436 = vadd.s32 %v435, %v433
    %vm437 = vcmp.ge.s32.totalorder %v436, 128
    %v438 = vadd.s32 %v419, 1
    %v439 = vsel %vm437, %v391, %v438
    %v440 = vsel %vm437, %v419, %v392
    %v441 = vsub.s32 %v416, %v415
    %v442 = vshra.s32 %v441, 1
    %v443 = vadd.s32 %v415, %v442
    %vm444 = vcmp.le.s32.totalorder %v55, %v443
    %vm445 = vcmp.le.s32.totalorder %v56, %v443
    %v446 = vsel %vm444, 1, 0
    %v447 = vsel %vm445, 1, 0
    %v448 = vadd.s32 %v446, %v447
    %v449 = vand.u32 %v448, 65535
    %v450 = vshrl.u32 %v448, 16
    %v451 = vcvt.s32.f32 %v449
    %v452 = vcvt.s32.f32 %v450
    %453 = vadd.xlane.f32.xlu0 %v451
    %v454 = vpop.xlane.xlu0 %453
    %455 = vadd.xlane.f32.xlu0 %v452
    %v456 = vpop.xlane.xlu0 %455
    %v457 = vcvt.f32.s32 %v454
    %v458 = vcvt.f32.s32 %v456
    %v459 = vshll.u32 %v458, 16
    %v460 = vadd.s32 %v459, %v457
    %vm461 = vcmp.ge.s32.totalorder %v460, 128
    %v462 = vadd.s32 %v443, 1
    %v463 = vsel %vm461, %v415, %v462
    %v464 = vsel %vm461, %v443, %v416
    %v465 = vsub.s32 %v440, %v439
    %v466 = vshra.s32 %v465, 1
    %v467 = vadd.s32 %v439, %v466
    %vm468 = vcmp.le.s32.totalorder %v63, %v467
    %vm469 = vcmp.le.s32.totalorder %v64, %v467
    %v470 = vsel %vm468, 1, 0
    %v471 = vsel %vm469, 1, 0
    %v472 = vadd.s32 %v470, %v471
    %v473 = vand.u32 %v472, 65535
    %v474 = vshrl.u32 %v472, 16
    %v475 = vcvt.s32.f32 %v473
    %v476 = vcvt.s32.f32 %v474
    %477 = vadd.xlane.f32.xlu0 %v475
    %v478 = vpop.xlane.xlu0 %477
    %479 = vadd.xlane.f32.xlu0 %v476
    %v480 = vpop.xlane.xlu0 %479
    %v481 = vcvt.f32.s32 %v478
    %v482 = vcvt.f32.s32 %v480
    %v483 = vshll.u32 %v482, 16
    %v484 = vadd.s32 %v483, %v481
    %vm485 = vcmp.ge.s32.totalorder %v484, 128
    %v486 = vadd.s32 %v467, 1
    %v487 = vsel %vm485, %v439, %v486
    %v488 = vsel %vm485, %v467, %v440
    %v489 = vsub.s32 %v464, %v463
    %v490 = vshra.s32 %v489, 1
    %v491 = vadd.s32 %v463, %v490
    %vm492 = vcmp.le.s32.totalorder %v55, %v491
    %vm493 = vcmp.le.s32.totalorder %v56, %v491
    %v494 = vsel %vm492, 1, 0
    %v495 = vsel %vm493, 1, 0
    %v496 = vadd.s32 %v494, %v495
    %v497 = vand.u32 %v496, 65535
    %v498 = vshrl.u32 %v496, 16
    %v499 = vcvt.s32.f32 %v497
    %v500 = vcvt.s32.f32 %v498
    %501 = vadd.xlane.f32.xlu0 %v499
    %v502 = vpop.xlane.xlu0 %501
    %503 = vadd.xlane.f32.xlu0 %v500
    %v504 = vpop.xlane.xlu0 %503
    %v505 = vcvt.f32.s32 %v502
    %v506 = vcvt.f32.s32 %v504
    %v507 = vshll.u32 %v506, 16
    %v508 = vadd.s32 %v507, %v505
    %vm509 = vcmp.ge.s32.totalorder %v508, 128
    %v510 = vadd.s32 %v491, 1
    %v511 = vsel %vm509, %v463, %v510
    %v512 = vsel %vm509, %v491, %v464
    %v513 = vsub.s32 %v488, %v487
    %v514 = vshra.s32 %v513, 1
    %v515 = vadd.s32 %v487, %v514
    %vm516 = vcmp.le.s32.totalorder %v63, %v515
    %vm517 = vcmp.le.s32.totalorder %v64, %v515
    %v518 = vsel %vm516, 1, 0
    %v519 = vsel %vm517, 1, 0
    %v520 = vadd.s32 %v518, %v519
    %v521 = vand.u32 %v520, 65535
    %v522 = vshrl.u32 %v520, 16
    %v523 = vcvt.s32.f32 %v521
    %v524 = vcvt.s32.f32 %v522
    %525 = vadd.xlane.f32.xlu0 %v523
    %v526 = vpop.xlane.xlu0 %525
    %527 = vadd.xlane.f32.xlu0 %v524
    %v528 = vpop.xlane.xlu0 %527
    %v529 = vcvt.f32.s32 %v526
    %v530 = vcvt.f32.s32 %v528
    %v531 = vshll.u32 %v530, 16
    %v532 = vadd.s32 %v531, %v529
    %vm533 = vcmp.ge.s32.totalorder %v532, 128
    %v534 = vadd.s32 %v515, 1
    %v535 = vsel %vm533, %v487, %v534
    %v536 = vsel %vm533, %v515, %v488
    %v537 = vsub.s32 %v512, %v511
    %v538 = vshra.s32 %v537, 1
    %v539 = vadd.s32 %v511, %v538
    %vm540 = vcmp.le.s32.totalorder %v55, %v539
    %vm541 = vcmp.le.s32.totalorder %v56, %v539
    %v542 = vsel %vm540, 1, 0
    %v543 = vsel %vm541, 1, 0
    %v544 = vadd.s32 %v542, %v543
    %v545 = vand.u32 %v544, 65535
    %v546 = vshrl.u32 %v544, 16
    %v547 = vcvt.s32.f32 %v545
    %v548 = vcvt.s32.f32 %v546
    %549 = vadd.xlane.f32.xlu0 %v547
    %v550 = vpop.xlane.xlu0 %549
    %551 = vadd.xlane.f32.xlu0 %v548
    %v552 = vpop.xlane.xlu0 %551
    %v553 = vcvt.f32.s32 %v550
    %v554 = vcvt.f32.s32 %v552
    %v555 = vshll.u32 %v554, 16
    %v556 = vadd.s32 %v555, %v553
    %vm557 = vcmp.ge.s32.totalorder %v556, 128
    %v558 = vadd.s32 %v539, 1
    %v559 = vsel %vm557, %v511, %v558
    %v560 = vsel %vm557, %v539, %v512
    %v561 = vsub.s32 %v536, %v535
    %v562 = vshra.s32 %v561, 1
    %v563 = vadd.s32 %v535, %v562
    %vm564 = vcmp.le.s32.totalorder %v63, %v563
    %vm565 = vcmp.le.s32.totalorder %v64, %v563
    %v566 = vsel %vm564, 1, 0
    %v567 = vsel %vm565, 1, 0
    %v568 = vadd.s32 %v566, %v567
    %v569 = vand.u32 %v568, 65535
    %v570 = vshrl.u32 %v568, 16
    %v571 = vcvt.s32.f32 %v569
    %v572 = vcvt.s32.f32 %v570
    %573 = vadd.xlane.f32.xlu0 %v571
    %v574 = vpop.xlane.xlu0 %573
    %575 = vadd.xlane.f32.xlu0 %v572
    %v576 = vpop.xlane.xlu0 %575
    %v577 = vcvt.f32.s32 %v574
    %v578 = vcvt.f32.s32 %v576
    %v579 = vshll.u32 %v578, 16
    %v580 = vadd.s32 %v579, %v577
    %vm581 = vcmp.ge.s32.totalorder %v580, 128
    %v582 = vadd.s32 %v563, 1
    %v583 = vsel %vm581, %v535, %v582
    %v584 = vsel %vm581, %v563, %v536
    %v585 = vsub.s32 %v560, %v559
    %v586 = vshra.s32 %v585, 1
    %v587 = vadd.s32 %v559, %v586
    %vm588 = vcmp.le.s32.totalorder %v55, %v587
    %vm589 = vcmp.le.s32.totalorder %v56, %v587
    %v590 = vsel %vm588, 1, 0
    %v591 = vsel %vm589, 1, 0
    %v592 = vadd.s32 %v590, %v591
    %v593 = vand.u32 %v592, 65535
    %v594 = vshrl.u32 %v592, 16
    %v595 = vcvt.s32.f32 %v593
    %v596 = vcvt.s32.f32 %v594
    %597 = vadd.xlane.f32.xlu0 %v595
    %v598 = vpop.xlane.xlu0 %597
    %599 = vadd.xlane.f32.xlu0 %v596
    %v600 = vpop.xlane.xlu0 %599
    %v601 = vcvt.f32.s32 %v598
    %v602 = vcvt.f32.s32 %v600
    %v603 = vshll.u32 %v602, 16
    %v604 = vadd.s32 %v603, %v601
    %vm605 = vcmp.ge.s32.totalorder %v604, 128
    %v606 = vadd.s32 %v587, 1
    %v607 = vsel %vm605, %v559, %v606
    %v608 = vsel %vm605, %v587, %v560
    %v609 = vsub.s32 %v584, %v583
    %v610 = vshra.s32 %v609, 1
    %v611 = vadd.s32 %v583, %v610
    %vm612 = vcmp.le.s32.totalorder %v63, %v611
    %vm613 = vcmp.le.s32.totalorder %v64, %v611
    %v614 = vsel %vm612, 1, 0
    %v615 = vsel %vm613, 1, 0
    %v616 = vadd.s32 %v614, %v615
    %v617 = vand.u32 %v616, 65535
    %v618 = vshrl.u32 %v616, 16
    %v619 = vcvt.s32.f32 %v617
    %v620 = vcvt.s32.f32 %v618
    %621 = vadd.xlane.f32.xlu0 %v619
    %v622 = vpop.xlane.xlu0 %621
    %623 = vadd.xlane.f32.xlu0 %v620
    %v624 = vpop.xlane.xlu0 %623
    %v625 = vcvt.f32.s32 %v622
    %v626 = vcvt.f32.s32 %v624
    %v627 = vshll.u32 %v626, 16
    %v628 = vadd.s32 %v627, %v625
    %vm629 = vcmp.ge.s32.totalorder %v628, 128
    %v630 = vadd.s32 %v611, 1
    %v631 = vsel %vm629, %v583, %v630
    %v632 = vsel %vm629, %v611, %v584
    %v633 = vsub.s32 %v608, %v607
    %v634 = vshra.s32 %v633, 1
    %v635 = vadd.s32 %v607, %v634
    %vm636 = vcmp.le.s32.totalorder %v55, %v635
    %vm637 = vcmp.le.s32.totalorder %v56, %v635
    %v638 = vsel %vm636, 1, 0
    %v639 = vsel %vm637, 1, 0
    %v640 = vadd.s32 %v638, %v639
    %v641 = vand.u32 %v640, 65535
    %v642 = vshrl.u32 %v640, 16
    %v643 = vcvt.s32.f32 %v641
    %v644 = vcvt.s32.f32 %v642
    %645 = vadd.xlane.f32.xlu0 %v643
    %v646 = vpop.xlane.xlu0 %645
    %647 = vadd.xlane.f32.xlu0 %v644
    %v648 = vpop.xlane.xlu0 %647
    %v649 = vcvt.f32.s32 %v646
    %v650 = vcvt.f32.s32 %v648
    %v651 = vshll.u32 %v650, 16
    %v652 = vadd.s32 %v651, %v649
    %vm653 = vcmp.ge.s32.totalorder %v652, 128
    %v654 = vadd.s32 %v635, 1
    %v655 = vsel %vm653, %v607, %v654
    %v656 = vsel %vm653, %v635, %v608
    %v657 = vsub.s32 %v632, %v631
    %v658 = vshra.s32 %v657, 1
    %v659 = vadd.s32 %v631, %v658
    %vm660 = vcmp.le.s32.totalorder %v63, %v659
    %vm661 = vcmp.le.s32.totalorder %v64, %v659
    %v662 = vsel %vm660, 1, 0
    %v663 = vsel %vm661, 1, 0
    %v664 = vadd.s32 %v662, %v663
    %v665 = vand.u32 %v664, 65535
    %v666 = vshrl.u32 %v664, 16
    %v667 = vcvt.s32.f32 %v665
    %v668 = vcvt.s32.f32 %v666
    %669 = vadd.xlane.f32.xlu0 %v667
    %v670 = vpop.xlane.xlu0 %669
    %671 = vadd.xlane.f32.xlu0 %v668
    %v672 = vpop.xlane.xlu0 %671
    %v673 = vcvt.f32.s32 %v670
    %v674 = vcvt.f32.s32 %v672
    %v675 = vshll.u32 %v674, 16
    %v676 = vadd.s32 %v675, %v673
    %vm677 = vcmp.ge.s32.totalorder %v676, 128
    %v678 = vadd.s32 %v659, 1
    %v679 = vsel %vm677, %v631, %v678
    %v680 = vsel %vm677, %v659, %v632
    %v681 = vsub.s32 %v656, %v655
    %v682 = vshra.s32 %v681, 1
    %v683 = vadd.s32 %v655, %v682
    %vm684 = vcmp.le.s32.totalorder %v55, %v683
    %vm685 = vcmp.le.s32.totalorder %v56, %v683
    %v686 = vsel %vm684, 1, 0
    %v687 = vsel %vm685, 1, 0
    %v688 = vadd.s32 %v686, %v687
    %v689 = vand.u32 %v688, 65535
    %v690 = vshrl.u32 %v688, 16
    %v691 = vcvt.s32.f32 %v689
    %v692 = vcvt.s32.f32 %v690
    %693 = vadd.xlane.f32.xlu0 %v691
    %v694 = vpop.xlane.xlu0 %693
    %695 = vadd.xlane.f32.xlu0 %v692
    %v696 = vpop.xlane.xlu0 %695
    %v697 = vcvt.f32.s32 %v694
    %v698 = vcvt.f32.s32 %v696
    %v699 = vshll.u32 %v698, 16
    %v700 = vadd.s32 %v699, %v697
    %vm701 = vcmp.ge.s32.totalorder %v700, 128
    %v702 = vadd.s32 %v683, 1
    %v703 = vsel %vm701, %v655, %v702
    %v704 = vsel %vm701, %v683, %v656
    %v705 = vsub.s32 %v680, %v679
    %v706 = vshra.s32 %v705, 1
    %v707 = vadd.s32 %v679, %v706
    %vm708 = vcmp.le.s32.totalorder %v63, %v707
    %vm709 = vcmp.le.s32.totalorder %v64, %v707
    %v710 = vsel %vm708, 1, 0
    %v711 = vsel %vm709, 1, 0
    %v712 = vadd.s32 %v710, %v711
    %v713 = vand.u32 %v712, 65535
    %v714 = vshrl.u32 %v712, 16
    %v715 = vcvt.s32.f32 %v713
    %v716 = vcvt.s32.f32 %v714
    %717 = vadd.xlane.f32.xlu0 %v715
    %v718 = vpop.xlane.xlu0 %717
    %719 = vadd.xlane.f32.xlu0 %v716
    %v720 = vpop.xlane.xlu0 %719
    %v721 = vcvt.f32.s32 %v718
    %v722 = vcvt.f32.s32 %v720
    %v723 = vshll.u32 %v722, 16
    %v724 = vadd.s32 %v723, %v721
    %vm725 = vcmp.ge.s32.totalorder %v724, 128
    %v726 = vadd.s32 %v707, 1
    %v727 = vsel %vm725, %v679, %v726
    %v728 = vsel %vm725, %v707, %v680
    %v729 = vsub.s32 %v704, %v703
    %v730 = vshra.s32 %v729, 1
    %v731 = vadd.s32 %v703, %v730
    %vm732 = vcmp.le.s32.totalorder %v55, %v731
    %vm733 = vcmp.le.s32.totalorder %v56, %v731
    %v734 = vsel %vm732, 1, 0
    %v735 = vsel %vm733, 1, 0
    %v736 = vadd.s32 %v734, %v735
    %v737 = vand.u32 %v736, 65535
    %v738 = vshrl.u32 %v736, 16
    %v739 = vcvt.s32.f32 %v737
    %v740 = vcvt.s32.f32 %v738
    %741 = vadd.xlane.f32.xlu0 %v739
    %v742 = vpop.xlane.xlu0 %741
    %743 = vadd.xlane.f32.xlu0 %v740
    %v744 = vpop.xlane.xlu0 %743
    %v745 = vcvt.f32.s32 %v742
    %v746 = vcvt.f32.s32 %v744
    %v747 = vshll.u32 %v746, 16
    %v748 = vadd.s32 %v747, %v745
    %vm749 = vcmp.ge.s32.totalorder %v748, 128
    %v750 = vadd.s32 %v731, 1
    %v751 = vsel %vm749, %v703, %v750
    %v752 = vsel %vm749, %v731, %v704
    %v753 = vsub.s32 %v728, %v727
    %v754 = vshra.s32 %v753, 1
    %v755 = vadd.s32 %v727, %v754
    %vm756 = vcmp.le.s32.totalorder %v63, %v755
    %vm757 = vcmp.le.s32.totalorder %v64, %v755
    %v758 = vsel %vm756, 1, 0
    %v759 = vsel %vm757, 1, 0
    %v760 = vadd.s32 %v758, %v759
    %v761 = vand.u32 %v760, 65535
    %v762 = vshrl.u32 %v760, 16
    %v763 = vcvt.s32.f32 %v761
    %v764 = vcvt.s32.f32 %v762
    %765 = vadd.xlane.f32.xlu0 %v763
    %v766 = vpop.xlane.xlu0 %765
    %767 = vadd.xlane.f32.xlu0 %v764
    %v768 = vpop.xlane.xlu0 %767
    %v769 = vcvt.f32.s32 %v766
    %v770 = vcvt.f32.s32 %v768
    %v771 = vshll.u32 %v770, 16
    %v772 = vadd.s32 %v771, %v769
    %vm773 = vcmp.ge.s32.totalorder %v772, 128
    %v774 = vadd.s32 %v755, 1
    %v775 = vsel %vm773, %v727, %v774
    %v776 = vsel %vm773, %v755, %v728
    %v777 = vsub.s32 %v752, %v751
    %v778 = vshra.s32 %v777, 1
    %v779 = vadd.s32 %v751, %v778
    %vm780 = vcmp.le.s32.totalorder %v55, %v779
    %vm781 = vcmp.le.s32.totalorder %v56, %v779
    %v782 = vsel %vm780, 1, 0
    %v783 = vsel %vm781, 1, 0
    %v784 = vadd.s32 %v782, %v783
    %v785 = vand.u32 %v784, 65535
    %v786 = vshrl.u32 %v784, 16
    %v787 = vcvt.s32.f32 %v785
    %v788 = vcvt.s32.f32 %v786
    %789 = vadd.xlane.f32.xlu0 %v787
    %v790 = vpop.xlane.xlu0 %789
    %791 = vadd.xlane.f32.xlu0 %v788
    %v792 = vpop.xlane.xlu0 %791
    %v793 = vcvt.f32.s32 %v790
    %v794 = vcvt.f32.s32 %v792
    %v795 = vshll.u32 %v794, 16
    %v796 = vadd.s32 %v795, %v793
    %vm797 = vcmp.ge.s32.totalorder %v796, 128
    %v798 = vadd.s32 %v779, 1
    %v799 = vsel %vm797, %v751, %v798
    %v800 = vsel %vm797, %v779, %v752
    %v801 = vsub.s32 %v776, %v775
    %v802 = vshra.s32 %v801, 1
    %v803 = vadd.s32 %v775, %v802
    %vm804 = vcmp.le.s32.totalorder %v63, %v803
    %vm805 = vcmp.le.s32.totalorder %v64, %v803
    %v806 = vsel %vm804, 1, 0
    %v807 = vsel %vm805, 1, 0
    %v808 = vadd.s32 %v806, %v807
    %v809 = vand.u32 %v808, 65535
    %v810 = vshrl.u32 %v808, 16
    %v811 = vcvt.s32.f32 %v809
    %v812 = vcvt.s32.f32 %v810
    %813 = vadd.xlane.f32.xlu0 %v811
    %v814 = vpop.xlane.xlu0 %813
    %815 = vadd.xlane.f32.xlu0 %v812
    %v816 = vpop.xlane.xlu0 %815
    %v817 = vcvt.f32.s32 %v814
    %v818 = vcvt.f32.s32 %v816
    %v819 = vshll.u32 %v818, 16
    %v820 = vadd.s32 %v819, %v817
    %vm821 = vcmp.ge.s32.totalorder %v820, 128
    %v822 = vadd.s32 %v803, 1
    %v823 = vsel %vm821, %v775, %v822
    %v824 = vsel %vm821, %v803, %v776
    %v825 = vsub.s32 %v800, %v799
    %v826 = vshra.s32 %v825, 1
    %v827 = vadd.s32 %v799, %v826
    %vm828 = vcmp.le.s32.totalorder %v55, %v827
    %vm829 = vcmp.le.s32.totalorder %v56, %v827
    %v830 = vsel %vm828, 1, 0
    %v831 = vsel %vm829, 1, 0
    %v832 = vadd.s32 %v830, %v831
    %v833 = vand.u32 %v832, 65535
    %v834 = vshrl.u32 %v832, 16
    %v835 = vcvt.s32.f32 %v833
    %v836 = vcvt.s32.f32 %v834
    %837 = vadd.xlane.f32.xlu0 %v835
    %v838 = vpop.xlane.xlu0 %837
    %839 = vadd.xlane.f32.xlu0 %v836
    %v840 = vpop.xlane.xlu0 %839
    %v841 = vcvt.f32.s32 %v838
    %v842 = vcvt.f32.s32 %v840
    %v843 = vshll.u32 %v842, 16
    %v844 = vadd.s32 %v843, %v841
    %vm845 = vcmp.ge.s32.totalorder %v844, 128
    %v846 = vadd.s32 %v827, 1
    %v847 = vsel %vm845, %v799, %v846
    %v848 = vsel %vm845, %v827, %v800
    %v849 = vsub.s32 %v824, %v823
    %v850 = vshra.s32 %v849, 1
    %v851 = vadd.s32 %v823, %v850
    %vm852 = vcmp.le.s32.totalorder %v63, %v851
    %vm853 = vcmp.le.s32.totalorder %v64, %v851
    %v854 = vsel %vm852, 1, 0
    %v855 = vsel %vm853, 1, 0
    %v856 = vadd.s32 %v854, %v855
    %v857 = vand.u32 %v856, 65535
    %v858 = vshrl.u32 %v856, 16
    %v859 = vcvt.s32.f32 %v857
    %v860 = vcvt.s32.f32 %v858
    %861 = vadd.xlane.f32.xlu0 %v859
    %v862 = vpop.xlane.xlu0 %861
    %863 = vadd.xlane.f32.xlu0 %v860
    %v864 = vpop.xlane.xlu0 %863
    %v865 = vcvt.f32.s32 %v862
    %v866 = vcvt.f32.s32 %v864
    %v867 = vshll.u32 %v866, 16
    %v868 = vadd.s32 %v867, %v865
    %vm869 = vcmp.ge.s32.totalorder %v868, 128
    %v870 = vadd.s32 %v851, 1
    %v871 = vsel %vm869, %v823, %v870
    %v872 = vsel %vm869, %v851, %v824
    %v873 = vsub.s32 %v848, %v847
    %v874 = vshra.s32 %v873, 1
    %v875 = vadd.s32 %v847, %v874
    %vm876 = vcmp.le.s32.totalorder %v55, %v875
    %vm877 = vcmp.le.s32.totalorder %v56, %v875
    %v878 = vsel %vm876, 1, 0
    %v879 = vsel %vm877, 1, 0
    %v880 = vadd.s32 %v878, %v879
    %v881 = vand.u32 %v880, 65535
    %v882 = vshrl.u32 %v880, 16
    %v883 = vcvt.s32.f32 %v881
    %v884 = vcvt.s32.f32 %v882
    %885 = vadd.xlane.f32.xlu0 %v883
    %v886 = vpop.xlane.xlu0 %885
    %887 = vadd.xlane.f32.xlu0 %v884
    %v888 = vpop.xlane.xlu0 %887
    %v889 = vcvt.f32.s32 %v886
    %v890 = vcvt.f32.s32 %v888
    %v891 = vshll.u32 %v890, 16
    %v892 = vadd.s32 %v891, %v889
    %vm893 = vcmp.ge.s32.totalorder %v892, 128
    %v894 = vadd.s32 %v875, 1
    %v895 = vsel %vm893, %v847, %v894
    %v896 = vsel %vm893, %v875, %v848
    %v897 = vsub.s32 %v872, %v871
    %v898 = vshra.s32 %v897, 1
    %v899 = vadd.s32 %v871, %v898
    %vm900 = vcmp.le.s32.totalorder %v63, %v899
    %vm901 = vcmp.le.s32.totalorder %v64, %v899
    %v902 = vsel %vm900, 1, 0
    %v903 = vsel %vm901, 1, 0
    %v904 = vadd.s32 %v902, %v903
    %v905 = vand.u32 %v904, 65535
    %v906 = vshrl.u32 %v904, 16
    %v907 = vcvt.s32.f32 %v905
    %v908 = vcvt.s32.f32 %v906
    %909 = vadd.xlane.f32.xlu0 %v907
    %v910 = vpop.xlane.xlu0 %909
    %911 = vadd.xlane.f32.xlu0 %v908
    %v912 = vpop.xlane.xlu0 %911
    %v913 = vcvt.f32.s32 %v910
    %v914 = vcvt.f32.s32 %v912
    %v915 = vshll.u32 %v914, 16
    %v916 = vadd.s32 %v915, %v913
    %vm917 = vcmp.ge.s32.totalorder %v916, 128
    %v918 = vadd.s32 %v899, 1
    %v919 = vsel %vm917, %v871, %v918
    %v920 = vsel %vm917, %v899, %v872
    %v921 = vsub.s32 %v896, %v895
    %v922 = vshra.s32 %v921, 1
    %v923 = vadd.s32 %v895, %v922
    %vm924 = vcmp.le.s32.totalorder %v55, %v923
    %vm925 = vcmp.le.s32.totalorder %v56, %v923
    %v926 = vsel %vm924, 1, 0
    %v927 = vsel %vm925, 1, 0
    %v928 = vadd.s32 %v926, %v927
    %v929 = vand.u32 %v928, 65535
    %v930 = vshrl.u32 %v928, 16
    %v931 = vcvt.s32.f32 %v929
    %v932 = vcvt.s32.f32 %v930
    %933 = vadd.xlane.f32.xlu0 %v931
    %v934 = vpop.xlane.xlu0 %933
    %935 = vadd.xlane.f32.xlu0 %v932
    %v936 = vpop.xlane.xlu0 %935
    %v937 = vcvt.f32.s32 %v934
    %v938 = vcvt.f32.s32 %v936
    %v939 = vshll.u32 %v938, 16
    %v940 = vadd.s32 %v939, %v937
    %vm941 = vcmp.ge.s32.totalorder %v940, 128
    %v942 = vadd.s32 %v923, 1
    %v943 = vsel %vm941, %v895, %v942
    %v944 = vsel %vm941, %v923, %v896
    %v945 = vsub.s32 %v920, %v919
    %v946 = vshra.s32 %v945, 1
    %v947 = vadd.s32 %v919, %v946
    %vm948 = vcmp.le.s32.totalorder %v63, %v947
    %vm949 = vcmp.le.s32.totalorder %v64, %v947
    %v950 = vsel %vm948, 1, 0
    %v951 = vsel %vm949, 1, 0
    %v952 = vadd.s32 %v950, %v951
    %v953 = vand.u32 %v952, 65535
    %v954 = vshrl.u32 %v952, 16
    %v955 = vcvt.s32.f32 %v953
    %v956 = vcvt.s32.f32 %v954
    %957 = vadd.xlane.f32.xlu0 %v955
    %v958 = vpop.xlane.xlu0 %957
    %959 = vadd.xlane.f32.xlu0 %v956
    %v960 = vpop.xlane.xlu0 %959
    %v961 = vcvt.f32.s32 %v958
    %v962 = vcvt.f32.s32 %v960
    %v963 = vshll.u32 %v962, 16
    %v964 = vadd.s32 %v963, %v961
    %vm965 = vcmp.ge.s32.totalorder %v964, 128
    %v966 = vadd.s32 %v947, 1
    %v967 = vsel %vm965, %v919, %v966
    %v968 = vsel %vm965, %v947, %v920
    %v969 = vsub.s32 %v944, %v943
    %v970 = vshra.s32 %v969, 1
    %v971 = vadd.s32 %v943, %v970
    %vm972 = vcmp.le.s32.totalorder %v55, %v971
    %vm973 = vcmp.le.s32.totalorder %v56, %v971
    %v974 = vsel %vm972, 1, 0
    %v975 = vsel %vm973, 1, 0
    %v976 = vadd.s32 %v974, %v975
    %v977 = vand.u32 %v976, 65535
    %v978 = vshrl.u32 %v976, 16
    %v979 = vcvt.s32.f32 %v977
    %v980 = vcvt.s32.f32 %v978
    %981 = vadd.xlane.f32.xlu0 %v979
    %v982 = vpop.xlane.xlu0 %981
    %983 = vadd.xlane.f32.xlu0 %v980
    %v984 = vpop.xlane.xlu0 %983
    %v985 = vcvt.f32.s32 %v982
    %v986 = vcvt.f32.s32 %v984
    %v987 = vshll.u32 %v986, 16
    %v988 = vadd.s32 %v987, %v985
    %vm989 = vcmp.ge.s32.totalorder %v988, 128
    %v990 = vadd.s32 %v971, 1
    %v991 = vsel %vm989, %v943, %v990
    %v992 = vsel %vm989, %v971, %v944
    %v993 = vsub.s32 %v968, %v967
    %v994 = vshra.s32 %v993, 1
    %v995 = vadd.s32 %v967, %v994
    %vm996 = vcmp.le.s32.totalorder %v63, %v995
    %vm997 = vcmp.le.s32.totalorder %v64, %v995
    %v998 = vsel %vm996, 1, 0
    %v999 = vsel %vm997, 1, 0
    %v1000 = vadd.s32 %v998, %v999
    %v1001 = vand.u32 %v1000, 65535
    %v1002 = vshrl.u32 %v1000, 16
    %v1003 = vcvt.s32.f32 %v1001
    %v1004 = vcvt.s32.f32 %v1002
    %1005 = vadd.xlane.f32.xlu0 %v1003
    %v1006 = vpop.xlane.xlu0 %1005
    %1007 = vadd.xlane.f32.xlu0 %v1004
    %v1008 = vpop.xlane.xlu0 %1007
    %v1009 = vcvt.f32.s32 %v1006
    %v1010 = vcvt.f32.s32 %v1008
    %v1011 = vshll.u32 %v1010, 16
    %v1012 = vadd.s32 %v1011, %v1009
    %vm1013 = vcmp.ge.s32.totalorder %v1012, 128
    %v1014 = vadd.s32 %v995, 1
    %v1015 = vsel %vm1013, %v967, %v1014
    %v1016 = vsel %vm1013, %v995, %v968
    %v1017 = vsub.s32 %v992, %v991
    %v1018 = vshra.s32 %v1017, 1
    %v1019 = vadd.s32 %v991, %v1018
    %vm1020 = vcmp.le.s32.totalorder %v55, %v1019
    %vm1021 = vcmp.le.s32.totalorder %v56, %v1019
    %v1022 = vsel %vm1020, 1, 0
    %v1023 = vsel %vm1021, 1, 0
    %v1024 = vadd.s32 %v1022, %v1023
    %v1025 = vand.u32 %v1024, 65535
    %v1026 = vshrl.u32 %v1024, 16
    %v1027 = vcvt.s32.f32 %v1025
    %v1028 = vcvt.s32.f32 %v1026
    %1029 = vadd.xlane.f32.xlu0 %v1027
    %v1030 = vpop.xlane.xlu0 %1029
    %1031 = vadd.xlane.f32.xlu0 %v1028
    %v1032 = vpop.xlane.xlu0 %1031
    %v1033 = vcvt.f32.s32 %v1030
    %v1034 = vcvt.f32.s32 %v1032
    %v1035 = vshll.u32 %v1034, 16
    %v1036 = vadd.s32 %v1035, %v1033
    %vm1037 = vcmp.ge.s32.totalorder %v1036, 128
    %v1038 = vadd.s32 %v1019, 1
    %v1039 = vsel %vm1037, %v991, %v1038
    %v1040 = vsel %vm1037, %v1019, %v992
    %v1041 = vsub.s32 %v1016, %v1015
    %v1042 = vshra.s32 %v1041, 1
    %v1043 = vadd.s32 %v1015, %v1042
    %vm1044 = vcmp.le.s32.totalorder %v63, %v1043
    %vm1045 = vcmp.le.s32.totalorder %v64, %v1043
    %v1046 = vsel %vm1044, 1, 0
    %v1047 = vsel %vm1045, 1, 0
    %v1048 = vadd.s32 %v1046, %v1047
    %v1049 = vand.u32 %v1048, 65535
    %v1050 = vshrl.u32 %v1048, 16
    %v1051 = vcvt.s32.f32 %v1049
    %v1052 = vcvt.s32.f32 %v1050
    %1053 = vadd.xlane.f32.xlu0 %v1051
    %v1054 = vpop.xlane.xlu0 %1053
    %1055 = vadd.xlane.f32.xlu0 %v1052
    %v1056 = vpop.xlane.xlu0 %1055
    %v1057 = vcvt.f32.s32 %v1054
    %v1058 = vcvt.f32.s32 %v1056
    %v1059 = vshll.u32 %v1058, 16
    %v1060 = vadd.s32 %v1059, %v1057
    %vm1061 = vcmp.ge.s32.totalorder %v1060, 128
    %v1062 = vadd.s32 %v1043, 1
    %v1063 = vsel %vm1061, %v1015, %v1062
    %v1064 = vsel %vm1061, %v1043, %v1016
    %v1065 = vsub.s32 %v1040, %v1039
    %v1066 = vshra.s32 %v1065, 1
    %v1067 = vadd.s32 %v1039, %v1066
    %vm1068 = vcmp.le.s32.totalorder %v55, %v1067
    %vm1069 = vcmp.le.s32.totalorder %v56, %v1067
    %v1070 = vsel %vm1068, 1, 0
    %v1071 = vsel %vm1069, 1, 0
    %v1072 = vadd.s32 %v1070, %v1071
    %v1073 = vand.u32 %v1072, 65535
    %v1074 = vshrl.u32 %v1072, 16
    %v1075 = vcvt.s32.f32 %v1073
    %v1076 = vcvt.s32.f32 %v1074
    %1077 = vadd.xlane.f32.xlu0 %v1075
    %v1078 = vpop.xlane.xlu0 %1077
    %1079 = vadd.xlane.f32.xlu0 %v1076
    %v1080 = vpop.xlane.xlu0 %1079
    %v1081 = vcvt.f32.s32 %v1078
    %v1082 = vcvt.f32.s32 %v1080
    %v1083 = vshll.u32 %v1082, 16
    %v1084 = vadd.s32 %v1083, %v1081
    %vm1085 = vcmp.ge.s32.totalorder %v1084, 128
    %v1086 = vadd.s32 %v1067, 1
    %v1087 = vsel %vm1085, %v1039, %v1086
    %v1088 = vsel %vm1085, %v1067, %v1040
    %v1089 = vsub.s32 %v1064, %v1063
    %v1090 = vshra.s32 %v1089, 1
    %v1091 = vadd.s32 %v1063, %v1090
    %vm1092 = vcmp.le.s32.totalorder %v63, %v1091
    %vm1093 = vcmp.le.s32.totalorder %v64, %v1091
    %v1094 = vsel %vm1092, 1, 0
    %v1095 = vsel %vm1093, 1, 0
    %v1096 = vadd.s32 %v1094, %v1095
    %v1097 = vand.u32 %v1096, 65535
    %v1098 = vshrl.u32 %v1096, 16
    %v1099 = vcvt.s32.f32 %v1097
    %v1100 = vcvt.s32.f32 %v1098
    %1101 = vadd.xlane.f32.xlu0 %v1099
    %v1102 = vpop.xlane.xlu0 %1101
    %1103 = vadd.xlane.f32.xlu0 %v1100
    %v1104 = vpop.xlane.xlu0 %1103
    %v1105 = vcvt.f32.s32 %v1102
    %v1106 = vcvt.f32.s32 %v1104
    %v1107 = vshll.u32 %v1106, 16
    %v1108 = vadd.s32 %v1107, %v1105
    %vm1109 = vcmp.ge.s32.totalorder %v1108, 128
    %v1110 = vadd.s32 %v1091, 1
    %v1111 = vsel %vm1109, %v1063, %v1110
    %v1112 = vsel %vm1109, %v1091, %v1064
    %v1113 = vsub.s32 %v1088, %v1087
    %v1114 = vshra.s32 %v1113, 1
    %v1115 = vadd.s32 %v1087, %v1114
    %vm1116 = vcmp.le.s32.totalorder %v55, %v1115
    %vm1117 = vcmp.le.s32.totalorder %v56, %v1115
    %v1118 = vsel %vm1116, 1, 0
    %v1119 = vsel %vm1117, 1, 0
    %v1120 = vadd.s32 %v1118, %v1119
    %v1121 = vand.u32 %v1120, 65535
    %v1122 = vshrl.u32 %v1120, 16
    %v1123 = vcvt.s32.f32 %v1121
    %v1124 = vcvt.s32.f32 %v1122
    %1125 = vadd.xlane.f32.xlu0 %v1123
    %v1126 = vpop.xlane.xlu0 %1125
    %1127 = vadd.xlane.f32.xlu0 %v1124
    %v1128 = vpop.xlane.xlu0 %1127
    %v1129 = vcvt.f32.s32 %v1126
    %v1130 = vcvt.f32.s32 %v1128
    %v1131 = vshll.u32 %v1130, 16
    %v1132 = vadd.s32 %v1131, %v1129
    %vm1133 = vcmp.ge.s32.totalorder %v1132, 128
    %v1134 = vadd.s32 %v1115, 1
    %v1135 = vsel %vm1133, %v1087, %v1134
    %v1136 = vsel %vm1133, %v1115, %v1088
    %v1137 = vsub.s32 %v1112, %v1111
    %v1138 = vshra.s32 %v1137, 1
    %v1139 = vadd.s32 %v1111, %v1138
    %vm1140 = vcmp.le.s32.totalorder %v63, %v1139
    %vm1141 = vcmp.le.s32.totalorder %v64, %v1139
    %v1142 = vsel %vm1140, 1, 0
    %v1143 = vsel %vm1141, 1, 0
    %v1144 = vadd.s32 %v1142, %v1143
    %v1145 = vand.u32 %v1144, 65535
    %v1146 = vshrl.u32 %v1144, 16
    %v1147 = vcvt.s32.f32 %v1145
    %v1148 = vcvt.s32.f32 %v1146
    %1149 = vadd.xlane.f32.xlu0 %v1147
    %v1150 = vpop.xlane.xlu0 %1149
    %1151 = vadd.xlane.f32.xlu0 %v1148
    %v1152 = vpop.xlane.xlu0 %1151
    %v1153 = vcvt.f32.s32 %v1150
    %v1154 = vcvt.f32.s32 %v1152
    %v1155 = vshll.u32 %v1154, 16
    %v1156 = vadd.s32 %v1155, %v1153
    %vm1157 = vcmp.ge.s32.totalorder %v1156, 128
    %v1158 = vadd.s32 %v1139, 1
    %v1159 = vsel %vm1157, %v1111, %v1158
    %v1160 = vsel %vm1157, %v1139, %v1112
    %v1161 = vsub.s32 %v1136, %v1135
    %v1162 = vshra.s32 %v1161, 1
    %v1163 = vadd.s32 %v1135, %v1162
    %vm1164 = vcmp.le.s32.totalorder %v55, %v1163
    %vm1165 = vcmp.le.s32.totalorder %v56, %v1163
    %v1166 = vsel %vm1164, 1, 0
    %v1167 = vsel %vm1165, 1, 0
    %v1168 = vadd.s32 %v1166, %v1167
    %v1169 = vand.u32 %v1168, 65535
    %v1170 = vshrl.u32 %v1168, 16
    %v1171 = vcvt.s32.f32 %v1169
    %v1172 = vcvt.s32.f32 %v1170
    %1173 = vadd.xlane.f32.xlu0 %v1171
    %v1174 = vpop.xlane.xlu0 %1173
    %1175 = vadd.xlane.f32.xlu0 %v1172
    %v1176 = vpop.xlane.xlu0 %1175
    %v1177 = vcvt.f32.s32 %v1174
    %v1178 = vcvt.f32.s32 %v1176
    %v1179 = vshll.u32 %v1178, 16
    %v1180 = vadd.s32 %v1179, %v1177
    %vm1181 = vcmp.ge.s32.totalorder %v1180, 128
    %v1182 = vadd.s32 %v1163, 1
    %v1183 = vsel %vm1181, %v1135, %v1182
    %v1184 = vsel %vm1181, %v1163, %v1136
    %v1185 = vsub.s32 %v1160, %v1159
    %v1186 = vshra.s32 %v1185, 1
    %v1187 = vadd.s32 %v1159, %v1186
    %vm1188 = vcmp.le.s32.totalorder %v63, %v1187
    %vm1189 = vcmp.le.s32.totalorder %v64, %v1187
    %v1190 = vsel %vm1188, 1, 0
    %v1191 = vsel %vm1189, 1, 0
    %v1192 = vadd.s32 %v1190, %v1191
    %v1193 = vand.u32 %v1192, 65535
    %v1194 = vshrl.u32 %v1192, 16
    %v1195 = vcvt.s32.f32 %v1193
    %v1196 = vcvt.s32.f32 %v1194
    %1197 = vadd.xlane.f32.xlu0 %v1195
    %v1198 = vpop.xlane.xlu0 %1197
    %1199 = vadd.xlane.f32.xlu0 %v1196
    %v1200 = vpop.xlane.xlu0 %1199
    %v1201 = vcvt.f32.s32 %v1198
    %v1202 = vcvt.f32.s32 %v1200
    %v1203 = vshll.u32 %v1202, 16
    %v1204 = vadd.s32 %v1203, %v1201
    %vm1205 = vcmp.ge.s32.totalorder %v1204, 128
    %v1206 = vadd.s32 %v1187, 1
    %v1207 = vsel %vm1205, %v1159, %v1206
    %v1208 = vsel %vm1205, %v1187, %v1160
    %v1209 = vsub.s32 %v1184, %v1183
    %v1210 = vshra.s32 %v1209, 1
    %v1211 = vadd.s32 %v1183, %v1210
    %vm1212 = vcmp.le.s32.totalorder %v55, %v1211
    %vm1213 = vcmp.le.s32.totalorder %v56, %v1211
    %v1214 = vsel %vm1212, 1, 0
    %v1215 = vsel %vm1213, 1, 0
    %v1216 = vadd.s32 %v1214, %v1215
    %v1217 = vand.u32 %v1216, 65535
    %v1218 = vshrl.u32 %v1216, 16
    %v1219 = vcvt.s32.f32 %v1217
    %v1220 = vcvt.s32.f32 %v1218
    %1221 = vadd.xlane.f32.xlu0 %v1219
    %v1222 = vpop.xlane.xlu0 %1221
    %1223 = vadd.xlane.f32.xlu0 %v1220
    %v1224 = vpop.xlane.xlu0 %1223
    %v1225 = vcvt.f32.s32 %v1222
    %v1226 = vcvt.f32.s32 %v1224
    %v1227 = vshll.u32 %v1226, 16
    %v1228 = vadd.s32 %v1227, %v1225
    %vm1229 = vcmp.ge.s32.totalorder %v1228, 128
    %v1230 = vadd.s32 %v1211, 1
    %v1231 = vsel %vm1229, %v1183, %v1230
    %v1232 = vsel %vm1229, %v1211, %v1184
    %v1233 = vsub.s32 %v1208, %v1207
    %v1234 = vshra.s32 %v1233, 1
    %v1235 = vadd.s32 %v1207, %v1234
    %vm1236 = vcmp.le.s32.totalorder %v63, %v1235
    %vm1237 = vcmp.le.s32.totalorder %v64, %v1235
    %v1238 = vsel %vm1236, 1, 0
    %v1239 = vsel %vm1237, 1, 0
    %v1240 = vadd.s32 %v1238, %v1239
    %v1241 = vand.u32 %v1240, 65535
    %v1242 = vshrl.u32 %v1240, 16
    %v1243 = vcvt.s32.f32 %v1241
    %v1244 = vcvt.s32.f32 %v1242
    %1245 = vadd.xlane.f32.xlu0 %v1243
    %v1246 = vpop.xlane.xlu0 %1245
    %1247 = vadd.xlane.f32.xlu0 %v1244
    %v1248 = vpop.xlane.xlu0 %1247
    %v1249 = vcvt.f32.s32 %v1246
    %v1250 = vcvt.f32.s32 %v1248
    %v1251 = vshll.u32 %v1250, 16
    %v1252 = vadd.s32 %v1251, %v1249
    %vm1253 = vcmp.ge.s32.totalorder %v1252, 128
    %v1254 = vadd.s32 %v1235, 1
    %v1255 = vsel %vm1253, %v1207, %v1254
    %v1256 = vsel %vm1253, %v1235, %v1208
    %v1257 = vsub.s32 %v1232, %v1231
    %v1258 = vshra.s32 %v1257, 1
    %v1259 = vadd.s32 %v1231, %v1258
    %vm1260 = vcmp.le.s32.totalorder %v55, %v1259
    %vm1261 = vcmp.le.s32.totalorder %v56, %v1259
    %v1262 = vsel %vm1260, 1, 0
    %v1263 = vsel %vm1261, 1, 0
    %v1264 = vadd.s32 %v1262, %v1263
    %v1265 = vand.u32 %v1264, 65535
    %v1266 = vshrl.u32 %v1264, 16
    %v1267 = vcvt.s32.f32 %v1265
    %v1268 = vcvt.s32.f32 %v1266
    %1269 = vadd.xlane.f32.xlu0 %v1267
    %v1270 = vpop.xlane.xlu0 %1269
    %1271 = vadd.xlane.f32.xlu0 %v1268
    %v1272 = vpop.xlane.xlu0 %1271
    %v1273 = vcvt.f32.s32 %v1270
    %v1274 = vcvt.f32.s32 %v1272
    %v1275 = vshll.u32 %v1274, 16
    %v1276 = vadd.s32 %v1275, %v1273
    %vm1277 = vcmp.ge.s32.totalorder %v1276, 128
    %v1278 = vadd.s32 %v1259, 1
    %v1279 = vsel %vm1277, %v1231, %v1278
    %v1280 = vsel %vm1277, %v1259, %v1232
    %v1281 = vsub.s32 %v1256, %v1255
    %v1282 = vshra.s32 %v1281, 1
    %v1283 = vadd.s32 %v1255, %v1282
    %vm1284 = vcmp.le.s32.totalorder %v63, %v1283
    %vm1285 = vcmp.le.s32.totalorder %v64, %v1283
    %v1286 = vsel %vm1284, 1, 0
    %v1287 = vsel %vm1285, 1, 0
    %v1288 = vadd.s32 %v1286, %v1287
    %v1289 = vand.u32 %v1288, 65535
    %v1290 = vshrl.u32 %v1288, 16
    %v1291 = vcvt.s32.f32 %v1289
    %v1292 = vcvt.s32.f32 %v1290
    %1293 = vadd.xlane.f32.xlu0 %v1291
    %v1294 = vpop.xlane.xlu0 %1293
    %1295 = vadd.xlane.f32.xlu0 %v1292
    %v1296 = vpop.xlane.xlu0 %1295
    %v1297 = vcvt.f32.s32 %v1294
    %v1298 = vcvt.f32.s32 %v1296
    %v1299 = vshll.u32 %v1298, 16
    %v1300 = vadd.s32 %v1299, %v1297
    %vm1301 = vcmp.ge.s32.totalorder %v1300, 128
    %v1302 = vadd.s32 %v1283, 1
    %v1303 = vsel %vm1301, %v1255, %v1302
    %v1304 = vsel %vm1301, %v1283, %v1256
    %v1305 = vsub.s32 %v1280, %v1279
    %v1306 = vshra.s32 %v1305, 1
    %v1307 = vadd.s32 %v1279, %v1306
    %vm1308 = vcmp.le.s32.totalorder %v55, %v1307
    %vm1309 = vcmp.le.s32.totalorder %v56, %v1307
    %v1310 = vsel %vm1308, 1, 0
    %v1311 = vsel %vm1309, 1, 0
    %v1312 = vadd.s32 %v1310, %v1311
    %v1313 = vand.u32 %v1312, 65535
    %v1314 = vshrl.u32 %v1312, 16
    %v1315 = vcvt.s32.f32 %v1313
    %v1316 = vcvt.s32.f32 %v1314
    %1317 = vadd.xlane.f32.xlu0 %v1315
    %v1318 = vpop.xlane.xlu0 %1317
    %1319 = vadd.xlane.f32.xlu0 %v1316
    %v1320 = vpop.xlane.xlu0 %1319
    %v1321 = vcvt.f32.s32 %v1318
    %v1322 = vcvt.f32.s32 %v1320
    %v1323 = vshll.u32 %v1322, 16
    %v1324 = vadd.s32 %v1323, %v1321
    %vm1325 = vcmp.ge.s32.totalorder %v1324, 128
    %v1326 = vadd.s32 %v1307, 1
    %v1327 = vsel %vm1325, %v1279, %v1326
    %v1328 = vsel %vm1325, %v1307, %v1280
    %v1329 = vsub.s32 %v1304, %v1303
    %v1330 = vshra.s32 %v1329, 1
    %v1331 = vadd.s32 %v1303, %v1330
    %vm1332 = vcmp.le.s32.totalorder %v63, %v1331
    %vm1333 = vcmp.le.s32.totalorder %v64, %v1331
    %v1334 = vsel %vm1332, 1, 0
    %v1335 = vsel %vm1333, 1, 0
    %v1336 = vadd.s32 %v1334, %v1335
    %v1337 = vand.u32 %v1336, 65535
    %v1338 = vshrl.u32 %v1336, 16
    %v1339 = vcvt.s32.f32 %v1337
    %v1340 = vcvt.s32.f32 %v1338
    %1341 = vadd.xlane.f32.xlu0 %v1339
    %v1342 = vpop.xlane.xlu0 %1341
    %1343 = vadd.xlane.f32.xlu0 %v1340
    %v1344 = vpop.xlane.xlu0 %1343
    %v1345 = vcvt.f32.s32 %v1342
    %v1346 = vcvt.f32.s32 %v1344
    %v1347 = vshll.u32 %v1346, 16
    %v1348 = vadd.s32 %v1347, %v1345
    %vm1349 = vcmp.ge.s32.totalorder %v1348, 128
    %v1350 = vadd.s32 %v1331, 1
    %v1351 = vsel %vm1349, %v1303, %v1350
    %v1352 = vsel %vm1349, %v1331, %v1304
    %v1353 = vsub.s32 %v1328, %v1327
    %v1354 = vshra.s32 %v1353, 1
    %v1355 = vadd.s32 %v1327, %v1354
    %vm1356 = vcmp.le.s32.totalorder %v55, %v1355
    %vm1357 = vcmp.le.s32.totalorder %v56, %v1355
    %v1358 = vsel %vm1356, 1, 0
    %v1359 = vsel %vm1357, 1, 0
    %v1360 = vadd.s32 %v1358, %v1359
    %v1361 = vand.u32 %v1360, 65535
    %v1362 = vshrl.u32 %v1360, 16
    %v1363 = vcvt.s32.f32 %v1361
    %v1364 = vcvt.s32.f32 %v1362
    %1365 = vadd.xlane.f32.xlu0 %v1363
    %v1366 = vpop.xlane.xlu0 %1365
    %1367 = vadd.xlane.f32.xlu0 %v1364
    %v1368 = vpop.xlane.xlu0 %1367
    %v1369 = vcvt.f32.s32 %v1366
    %v1370 = vcvt.f32.s32 %v1368
    %v1371 = vshll.u32 %v1370, 16
    %v1372 = vadd.s32 %v1371, %v1369
    %vm1373 = vcmp.ge.s32.totalorder %v1372, 128
    %v1374 = vadd.s32 %v1355, 1
    %v1375 = vsel %vm1373, %v1327, %v1374
    %v1376 = vsel %vm1373, %v1355, %v1328
    %v1377 = vsub.s32 %v1352, %v1351
    %v1378 = vshra.s32 %v1377, 1
    %v1379 = vadd.s32 %v1351, %v1378
    %vm1380 = vcmp.le.s32.totalorder %v63, %v1379
    %vm1381 = vcmp.le.s32.totalorder %v64, %v1379
    %v1382 = vsel %vm1380, 1, 0
    %v1383 = vsel %vm1381, 1, 0
    %v1384 = vadd.s32 %v1382, %v1383
    %v1385 = vand.u32 %v1384, 65535
    %v1386 = vshrl.u32 %v1384, 16
    %v1387 = vcvt.s32.f32 %v1385
    %v1388 = vcvt.s32.f32 %v1386
    %1389 = vadd.xlane.f32.xlu0 %v1387
    %v1390 = vpop.xlane.xlu0 %1389
    %1391 = vadd.xlane.f32.xlu0 %v1388
    %v1392 = vpop.xlane.xlu0 %1391
    %v1393 = vcvt.f32.s32 %v1390
    %v1394 = vcvt.f32.s32 %v1392
    %v1395 = vshll.u32 %v1394, 16
    %v1396 = vadd.s32 %v1395, %v1393
    %vm1397 = vcmp.ge.s32.totalorder %v1396, 128
    %v1398 = vadd.s32 %v1379, 1
    %v1399 = vsel %vm1397, %v1351, %v1398
    %v1400 = vsel %vm1397, %v1379, %v1352
    %v1401 = vsub.s32 %v1376, %v1375
    %v1402 = vshra.s32 %v1401, 1
    %v1403 = vadd.s32 %v1375, %v1402
    %vm1404 = vcmp.le.s32.totalorder %v55, %v1403
    %vm1405 = vcmp.le.s32.totalorder %v56, %v1403
    %v1406 = vsel %vm1404, 1, 0
    %v1407 = vsel %vm1405, 1, 0
    %v1408 = vadd.s32 %v1406, %v1407
    %v1409 = vand.u32 %v1408, 65535
    %v1410 = vshrl.u32 %v1408, 16
    %v1411 = vcvt.s32.f32 %v1409
    %v1412 = vcvt.s32.f32 %v1410
    %1413 = vadd.xlane.f32.xlu0 %v1411
    %v1414 = vpop.xlane.xlu0 %1413
    %1415 = vadd.xlane.f32.xlu0 %v1412
    %v1416 = vpop.xlane.xlu0 %1415
    %v1417 = vcvt.f32.s32 %v1414
    %v1418 = vcvt.f32.s32 %v1416
    %v1419 = vshll.u32 %v1418, 16
    %v1420 = vadd.s32 %v1419, %v1417
    %vm1421 = vcmp.ge.s32.totalorder %v1420, 128
    %v1422 = vadd.s32 %v1403, 1
    %v1423 = vsel %vm1421, %v1375, %v1422
    %v1424 = vsel %vm1421, %v1403, %v1376
    %v1425 = vsub.s32 %v1400, %v1399
    %v1426 = vshra.s32 %v1425, 1
    %v1427 = vadd.s32 %v1399, %v1426
    %vm1428 = vcmp.le.s32.totalorder %v63, %v1427
    %vm1429 = vcmp.le.s32.totalorder %v64, %v1427
    %v1430 = vsel %vm1428, 1, 0
    %v1431 = vsel %vm1429, 1, 0
    %v1432 = vadd.s32 %v1430, %v1431
    %v1433 = vand.u32 %v1432, 65535
    %v1434 = vshrl.u32 %v1432, 16
    %v1435 = vcvt.s32.f32 %v1433
    %v1436 = vcvt.s32.f32 %v1434
    %1437 = vadd.xlane.f32.xlu0 %v1435
    %v1438 = vpop.xlane.xlu0 %1437
    %1439 = vadd.xlane.f32.xlu0 %v1436
    %v1440 = vpop.xlane.xlu0 %1439
    %v1441 = vcvt.f32.s32 %v1438
    %v1442 = vcvt.f32.s32 %v1440
    %v1443 = vshll.u32 %v1442, 16
    %v1444 = vadd.s32 %v1443, %v1441
    %vm1445 = vcmp.ge.s32.totalorder %v1444, 128
    %v1446 = vadd.s32 %v1427, 1
    %v1447 = vsel %vm1445, %v1399, %v1446
    %v1448 = vsel %vm1445, %v1427, %v1400
    %v1449 = vsub.s32 %v1424, %v1423
    %v1450 = vshra.s32 %v1449, 1
    %v1451 = vadd.s32 %v1423, %v1450
    %vm1452 = vcmp.le.s32.totalorder %v55, %v1451
    %vm1453 = vcmp.le.s32.totalorder %v56, %v1451
    %v1454 = vsel %vm1452, 1, 0
    %v1455 = vsel %vm1453, 1, 0
    %v1456 = vadd.s32 %v1454, %v1455
    %v1457 = vand.u32 %v1456, 65535
    %v1458 = vshrl.u32 %v1456, 16
    %v1459 = vcvt.s32.f32 %v1457
    %v1460 = vcvt.s32.f32 %v1458
    %1461 = vadd.xlane.f32.xlu0 %v1459
    %v1462 = vpop.xlane.xlu0 %1461
    %1463 = vadd.xlane.f32.xlu0 %v1460
    %v1464 = vpop.xlane.xlu0 %1463
    %v1465 = vcvt.f32.s32 %v1462
    %v1466 = vcvt.f32.s32 %v1464
    %v1467 = vshll.u32 %v1466, 16
    %v1468 = vadd.s32 %v1467, %v1465
    %vm1469 = vcmp.ge.s32.totalorder %v1468, 128
    %v1470 = vadd.s32 %v1451, 1
    %v1471 = vsel %vm1469, %v1423, %v1470
    %v1472 = vsel %vm1469, %v1451, %v1424
    %v1473 = vsub.s32 %v1448, %v1447
    %v1474 = vshra.s32 %v1473, 1
    %v1475 = vadd.s32 %v1447, %v1474
    %vm1476 = vcmp.le.s32.totalorder %v63, %v1475
    %vm1477 = vcmp.le.s32.totalorder %v64, %v1475
    %v1478 = vsel %vm1476, 1, 0
    %v1479 = vsel %vm1477, 1, 0
    %v1480 = vadd.s32 %v1478, %v1479
    %v1481 = vand.u32 %v1480, 65535
    %v1482 = vshrl.u32 %v1480, 16
    %v1483 = vcvt.s32.f32 %v1481
    %v1484 = vcvt.s32.f32 %v1482
    %1485 = vadd.xlane.f32.xlu0 %v1483
    %v1486 = vpop.xlane.xlu0 %1485
    %1487 = vadd.xlane.f32.xlu0 %v1484
    %v1488 = vpop.xlane.xlu0 %1487
    %v1489 = vcvt.f32.s32 %v1486
    %v1490 = vcvt.f32.s32 %v1488
    %v1491 = vshll.u32 %v1490, 16
    %v1492 = vadd.s32 %v1491, %v1489
    %vm1493 = vcmp.ge.s32.totalorder %v1492, 128
    %v1494 = vadd.s32 %v1475, 1
    %v1495 = vsel %vm1493, %v1447, %v1494
    %v1496 = vsel %vm1493, %v1475, %v1448
    %v1497 = vsub.s32 %v1472, %v1471
    %v1498 = vshra.s32 %v1497, 1
    %v1499 = vadd.s32 %v1471, %v1498
    %vm1500 = vcmp.le.s32.totalorder %v55, %v1499
    %vm1501 = vcmp.le.s32.totalorder %v56, %v1499
    %v1502 = vsel %vm1500, 1, 0
    %v1503 = vsel %vm1501, 1, 0
    %v1504 = vadd.s32 %v1502, %v1503
    %v1505 = vand.u32 %v1504, 65535
    %v1506 = vshrl.u32 %v1504, 16
    %v1507 = vcvt.s32.f32 %v1505
    %v1508 = vcvt.s32.f32 %v1506
    %1509 = vadd.xlane.f32.xlu0 %v1507
    %v1510 = vpop.xlane.xlu0 %1509
    %1511 = vadd.xlane.f32.xlu0 %v1508
    %v1512 = vpop.xlane.xlu0 %1511
    %v1513 = vcvt.f32.s32 %v1510
    %v1514 = vcvt.f32.s32 %v1512
    %v1515 = vshll.u32 %v1514, 16
    %v1516 = vadd.s32 %v1515, %v1513
    %vm1517 = vcmp.ge.s32.totalorder %v1516, 128
    %v1518 = vadd.s32 %v1499, 1
    %v1519 = vsel %vm1517, %v1471, %v1518
    %v1520 = vsel %vm1517, %v1499, %v1472
    %v1521 = vsub.s32 %v1496, %v1495
    %v1522 = vshra.s32 %v1521, 1
    %v1523 = vadd.s32 %v1495, %v1522
    %vm1524 = vcmp.le.s32.totalorder %v63, %v1523
    %vm1525 = vcmp.le.s32.totalorder %v64, %v1523
    %v1526 = vsel %vm1524, 1, 0
    %v1527 = vsel %vm1525, 1, 0
    %v1528 = vadd.s32 %v1526, %v1527
    %v1529 = vand.u32 %v1528, 65535
    %v1530 = vshrl.u32 %v1528, 16
    %v1531 = vcvt.s32.f32 %v1529
    %v1532 = vcvt.s32.f32 %v1530
    %1533 = vadd.xlane.f32.xlu0 %v1531
    %v1534 = vpop.xlane.xlu0 %1533
    %1535 = vadd.xlane.f32.xlu0 %v1532
    %v1536 = vpop.xlane.xlu0 %1535
    %v1537 = vcvt.f32.s32 %v1534
    %v1538 = vcvt.f32.s32 %v1536
    %v1539 = vshll.u32 %v1538, 16
    %v1540 = vadd.s32 %v1539, %v1537
    %vm1541 = vcmp.ge.s32.totalorder %v1540, 128
    %v1542 = vadd.s32 %v1523, 1
    %v1543 = vsel %vm1541, %v1495, %v1542
    %v1544 = vsel %vm1541, %v1523, %v1496
    %v1545 = vsub.s32 %v1520, %v1519
    %v1546 = vshra.s32 %v1545, 1
    %v1547 = vadd.s32 %v1519, %v1546
    %vm1548 = vcmp.le.s32.totalorder %v55, %v1547
    %vm1549 = vcmp.le.s32.totalorder %v56, %v1547
    %v1550 = vsel %vm1548, 1, 0
    %v1551 = vsel %vm1549, 1, 0
    %v1552 = vadd.s32 %v1550, %v1551
    %v1553 = vand.u32 %v1552, 65535
    %v1554 = vshrl.u32 %v1552, 16
    %v1555 = vcvt.s32.f32 %v1553
    %v1556 = vcvt.s32.f32 %v1554
    %1557 = vadd.xlane.f32.xlu0 %v1555
    %v1558 = vpop.xlane.xlu0 %1557
    %1559 = vadd.xlane.f32.xlu0 %v1556
    %v1560 = vpop.xlane.xlu0 %1559
    %v1561 = vcvt.f32.s32 %v1558
    %v1562 = vcvt.f32.s32 %v1560
    %v1563 = vshll.u32 %v1562, 16
    %v1564 = vadd.s32 %v1563, %v1561
    %vm1565 = vcmp.ge.s32.totalorder %v1564, 128
    %v1566 = vadd.s32 %v1547, 1
    %v1567 = vsel %vm1565, %v1519, %v1566
    %v1568 = vsub.s32 %v1544, %v1543
    %v1569 = vshra.s32 %v1568, 1
    %v1570 = vadd.s32 %v1543, %v1569
    %vm1571 = vcmp.le.s32.totalorder %v63, %v1570
    %vm1572 = vcmp.le.s32.totalorder %v64, %v1570
    %v1573 = vsel %vm1571, 1, 0
    %v1574 = vsel %vm1572, 1, 0
    %v1575 = vadd.s32 %v1573, %v1574
    %v1576 = vand.u32 %v1575, 65535
    %v1577 = vshrl.u32 %v1575, 16
    %v1578 = vcvt.s32.f32 %v1576
    %v1579 = vcvt.s32.f32 %v1577
    %1580 = vadd.xlane.f32.xlu0 %v1578
    %v1581 = vpop.xlane.xlu0 %1580
    %1582 = vadd.xlane.f32.xlu0 %v1579
    %v1583 = vpop.xlane.xlu0 %1582
    %v1584 = vcvt.f32.s32 %v1581
    %v1585 = vcvt.f32.s32 %v1583
    %v1586 = vshll.u32 %v1585, 16
    %v1587 = vadd.s32 %v1586, %v1584
    %vm1588 = vcmp.ge.s32.totalorder %v1587, 128
    %v1589 = vadd.s32 %v1570, 1
    %v1590 = vsel %vm1588, %v1543, %v1589
    %vm1591 = vcmp.lt.s32.totalorder %v1567, 0
    %v1592 = vsel %vm1591, 2147483647, 0
    %v1593 = vxor.u32 %v1567, %v1592
    %vm1595 = vcmp.lt.s32.totalorder %v1590, 0
    %v1596 = vsel %vm1595, 2147483647, 0
    %v1597 = vxor.u32 %v1590, %v1596
    %v1599 = vsub.f32 %v1597, %v42
    %v1600 = vmul.f32 %v1599, %v48
    %v1601 = vsub.f32 %v36, %v1593
    %v1602 = vsub.f32 %v37, %v1593
    %v1603 = vand.u32 2147483647, %v1601
    %v1604 = vand.u32 2147483647, %v1602
    %v1605 = vadd.f32 %v1603, %v1604
    %1606 = vadd.xlane.f32.xlu0 %v1605
    %v1607 = vpop.xlane.xlu0 %1606
    %v1608 = vrcp.pop 256.0
    %v1609 = vmul.f32 %v1607, %v1608
    %v1610 = vadd.f32 %v1609, 1e-08
    %v1611 = vrcp.pop %v1610
    %v1612 = vsub.f32 %v38, %v42
    %v1613 = vsub.f32 %v39, %v42
    %v1614 = vmul.f32 %v1612, %v48
    %v1615 = vmul.f32 %v1613, %v48
    %v1616 = vsub.f32 %v1614, %v1600
    %v1617 = vsub.f32 %v1615, %v1600
    %v1618 = vand.u32 2147483647, %v1616
    %v1619 = vand.u32 2147483647, %v1617
    %v1620 = vadd.f32 %v1618, %v1619
    %1621 = vadd.xlane.f32.xlu0 %v1620
    %v1622 = vpop.xlane.xlu0 %1621
    %v1623 = vmul.f32 %v1622, %v1608
    %v1624 = vadd.f32 %v1623, 1e-08
    %v1625 = vrcp.pop %v1624
    %v1626 = vmul.f32 %v1601, %v1611
    %v1627 = vmul.f32 %v1602, %v1611
    %v1628 = vmul.f32 %v1616, %v1625
    %v1629 = vmul.f32 %v1617, %v1625
    %v1630 = vsub.f32 %v1626, %v1628
    %v1631 = vsub.f32 %v1627, %v1629
    %v1632 = vand.u32 2147483647, %v1630
    %v1633 = vand.u32 2147483647, %v1631
    %v1634 = vadd.f32 %v1632, %v1633
    %1635 = vadd.xlane.f32.xlu0 %v1634
    %v1636 = vpop.xlane.xlu0 %1635
    %v1637 = vmul.f32 %v1636, %v1608
    %vm1638 = vcmask 7168
    %1639 = vst.msk [vmem:[#allocation7] sm:$0xff] %vm1638, %v1637
    // Predicated region
    $region18: #{loss_teacher.1} parent=1 // pred_check
      _
    $region19: #{loss_teacher.1} parent=1 // pred_check_branch
      %1641 = sbr.rel (0) target = $region21
    $region20: #{loss_teacher.1} parent=1 // pred_region
      %s1643 = ssub.s32 128, 128
      %1644 = vsyncadd [#allocation4], %s1643
      %s1646 = sshll.u32 [#allocation7], 4
      %s1647 = int_to_ptr.vmem [resolvable:$true] %s1646
      %1649 = dma.vmem_to_hbm [thread:$0]  %s1647, 128, %s2, [#allocation4]
    $region21: #{loss_teacher.1} parent=1 // pred_fallthru
      _
    // Predicated region
    $region22: #{loss_teacher.1} parent=1 // pred_check
      _
    $region23: #{loss_teacher.1} parent=1 // pred_check_branch
      %1651 = sbr.rel (0) target = $region25
    $region24: #{loss_teacher.1} parent=1 // pred_region
      %1652 = dma.done [#allocation4], 128
    $region25: #{loss_teacher.1} parent=1 // pred_fallthru
      _
    %1653 = vsyncpa [#allocation3], 1
    %1654 = vsyncpa [#allocation6], 1
    %1655 = vsyncpa [#allocation4], 1

</llo_original>
